<compile_context>
chip_gen: v6e
topology: v6e:2x2x1
jax: 0.10.0
libtpu: 0.0.40
codegen_flags: <defaults>
</compile_context>

<pallas_src>
import functools

import jax
import jax.numpy as jnp
from jax import lax
from jax.experimental import pallas as pl
from jax.experimental.pallas import tpu as pltpu


# ----------------------------- helpers -----------------------------

def _tile(n, target=512, mult=128):
    """Largest tile <= target dividing n (multiple of `mult` when tiling)."""
    if n <= target:
        return n
    t = (target // mult) * mult
    while t >= mult:
        if n % t == 0:
            return t
        t -= mult
    t = (target // 8) * 8
    while t >= 8:
        if n % t == 0:
            return t
        t -= 8
    return n


@functools.lru_cache(maxsize=None)
def _vmem_limit_bytes():
    """~3/4 of physical VMEM, capped at 100 MiB (v5e/v6e: 96 MiB, v7x: 48 MiB)."""
    try:
        cap = int(pltpu.get_tpu_info().vmem_capacity_bytes)
    except Exception:
        return None          # fall back to the compiler default
    return min((cap * 3) // 4, 100 * 1024 * 1024)


def _cparams(dims):
    return pltpu.CompilerParams(dimension_semantics=dims,
                                vmem_limit_bytes=_vmem_limit_bytes())


# ----------------------------- MHA (flash-style, fused) -----------------------------

def _mha_flash_kernel(pad_ref, x_ref, kv_ref,
                      wq_ref, bq_ref, wk_ref, bk_ref, wv_ref, bv_ref,
                      wo_ref, bo_ref, g_ref, beta_ref, o_ref,
                      q_sc, m_sc, l_sc, acc_sc,
                      *, num_heads, head_dim, causal, sq_total,
                      num_q_tiles, inv_scale, eps):
    """Fused MHA block: full-width QKV projections + online-softmax attention
    over KV tiles + single out-projection + residual + LayerNorm.

    Grid: (batch ["parallel"], q-tiles ["parallel"], kv-tiles ["arbitrary"]).
    """
    qi = pl.program_id(1)
    ki = pl.program_id(2)
    H, dq = num_heads, head_dim
    tq = x_ref.shape[1]
    tk = kv_ref.shape[1]

    # ---- per (b, qi) init: project Q once, reset online-softmax state ----
    @pl.when(ki == 0)
    def _():
        xq = x_ref[0]                                              # (tq, E) bf16
        q = jnp.dot(xq, wq_ref[...],
                    preferred_element_type=jnp.float32) + bq_ref[...]
        q_sc[...] = (q * inv_scale).astype(jnp.bfloat16)           # fold 1/sqrt(dq)
        m_sc[...] = jnp.full_like(m_sc, -1e30)                     # finite min (no NaN)
        l_sc[...] = jnp.zeros_like(l_sc)
        acc_sc[...] = jnp.zeros_like(acc_sc)

    # ---- project this KV tile with full-width matmuls ----
    kv = kv_ref[0]                                                 # (tk, E) bf16
    k_all = (jnp.dot(kv, wk_ref[...], preferred_element_type=jnp.float32)
             + bk_ref[...]).astype(jnp.bfloat16)                   # (tk, H*dq)
    v_all = (jnp.dot(kv, wv_ref[...], preferred_element_type=jnp.float32)
             + bv_ref[...]).astype(jnp.bfloat16)                   # (tk, H*dq)
    q_all = q_sc[...]                                              # (tq, H*dq) bf16

    pad_bad = pad_ref[0] != 0                                      # (1, tk)
    if causal:
        # torch: triu indices of an (Sq, Sq) square, offset=1 -> only cols < Sq
        row = lax.broadcasted_iota(jnp.int32, (tq, tk), 0) + qi * tq
        col = lax.broadcasted_iota(jnp.int32, (tq, tk), 1) + ki * tk
        causal_mask = (col > row) & (col < sq_total)

    # ---- per-head online-softmax update (scores only dq-wide by nature) ----
    for h in range(H):                                             # small static unroll
        q_h = q_all[:, h * dq:(h + 1) * dq]
        k_h = k_all[:, h * dq:(h + 1) * dq]
        v_h = v_all[:, h * dq:(h + 1) * dq]
        s = lax.dot_general(q_h, k_h, (((1,), (1,)), ((), ())),
                            preferred_element_type=jnp.float32)    # (tq, tk)
        if causal:
            s = jnp.where(causal_mask, -jnp.inf, s)
        s = jnp.where(pad_bad, jnp.float32(-1e9), s)

        m_prev = m_sc[h]                                           # (tq, 1)
        m_new = jnp.maximum(m_prev, jnp.max(s, axis=-1, keepdims=True))
        alpha = jnp.exp(m_prev - m_new)
        p = jnp.exp(s - m_new)
        l_sc[h] = alpha * l_sc[h] + jnp.sum(p, axis=-1, keepdims=True)
        acc_sc[h] = alpha * acc_sc[h] + jnp.dot(p.astype(jnp.bfloat16), v_h,
                                                preferred_element_type=jnp.float32)
        m_sc[h] = m_new

    # ---- finalize: concat heads, ONE out-projection, residual + LayerNorm ----
    @pl.when(ki == pl.num_programs(2) - 1)
    def _():
        heads = [acc_sc[h] * pl.reciprocal(l_sc[h], approx=True) for h in range(H)]
        concat = jnp.concatenate(heads, axis=-1)                   # (tq, H*dq) f32
        proj = jnp.dot(concat.astype(jnp.bfloat16), wo_ref[...],
                       preferred_element_type=jnp.float32) + bo_ref[...]
        z = x_ref[0].astype(jnp.float32) + proj                    # residual (dropout=id)
        mu = jnp.mean(z, axis=-1, keepdims=True)
        var = jnp.mean((z - mu) ** 2, axis=-1, keepdims=True)
        zn = (z - mu) * lax.rsqrt(var + eps)
        o_ref[0] = (zn * g_ref[...] + beta_ref[...]).astype(o_ref.dtype)


def pallas_mha_block(pad, x, kv, p, gamma, beta, *, num_heads, causal, eps=1e-5):
    B, Sq, E = x.shape
    Sk = kv.shape[1]
    H = num_heads
    dq = E // H
    tq = _tile(Sq)
    tk = _tile(Sk)
    # TODO(synk): K/V are re-projected for every query tile; at large Sq cache
    # the projected K/V per batch (separate kernel or kv-major pass) instead.
    kernel = functools.partial(
        _mha_flash_kernel, num_heads=H, head_dim=dq, causal=causal,
        sq_total=Sq, num_q_tiles=Sq // tq,
        inv_scale=1.0 / (float(dq) ** 0.5), eps=eps)
    return pl.pallas_call(
        kernel,
        out_shape=jax.ShapeDtypeStruct((B, Sq, E), jnp.bfloat16),
        grid=(B, Sq // tq, Sk // tk),
        in_specs=[
            pl.BlockSpec((1, 1, tk), lambda b, qi, ki: (b, 0, ki)),  # pad [B,1,Sk]
            pl.BlockSpec((1, tq, E), lambda b, qi, ki: (b, qi, 0)),  # query/residual
            pl.BlockSpec((1, tk, E), lambda b, qi, ki: (b, ki, 0)),  # key/value source
            pl.BlockSpec((E, E), lambda b, qi, ki: (0, 0)),          # Wq (fused heads)
            pl.BlockSpec((1, E), lambda b, qi, ki: (0, 0)),          # bq
            pl.BlockSpec((E, E), lambda b, qi, ki: (0, 0)),          # Wk
            pl.BlockSpec((1, E), lambda b, qi, ki: (0, 0)),          # bk
            pl.BlockSpec((E, E), lambda b, qi, ki: (0, 0)),          # Wv
            pl.BlockSpec((1, E), lambda b, qi, ki: (0, 0)),          # bv
            pl.BlockSpec((E, E), lambda b, qi, ki: (0, 0)),          # Wo
            pl.BlockSpec((1, E), lambda b, qi, ki: (0, 0)),          # bo
            pl.BlockSpec((1, E), lambda b, qi, ki: (0, 0)),          # LN gamma
            pl.BlockSpec((1, E), lambda b, qi, ki: (0, 0)),          # LN beta
        ],
        out_specs=pl.BlockSpec((1, tq, E), lambda b, qi, ki: (b, qi, 0)),
        scratch_shapes=[
            pltpu.VMEM((tq, E), jnp.bfloat16),      # projected + scaled Q
            pltpu.VMEM((H, tq, 1), jnp.float32),    # running max m
            pltpu.VMEM((H, tq, 1), jnp.float32),    # running sum l
            pltpu.VMEM((H, tq, dq), jnp.float32),   # per-head output accumulator
        ],
        compiler_params=_cparams(("parallel", "parallel", "arbitrary")),
    )(pad, x, kv, p["wq"], p["bq"], p["wk"], p["bk"], p["wv"], p["bv"],
      p["wo"], p["bo"], gamma, beta)


# ----------------------------- FFN (hidden-axis streamed) -----------------------------

def _ffn_block_kernel(x_ref, w1_ref, b1_ref, w2_ref, b2_ref, g_ref, beta_ref,
                      o_ref, acc_ref, *, eps):
    """Fused FFN: stream the hidden axis; W1+ReLU+W2 partials accumulate in f32,
    residual + LayerNorm at the last hidden step."""
    j = pl.program_id(1)

    @pl.when(j == 0)
    def _():
        acc_ref[...] = jnp.zeros_like(acc_ref)

    x = x_ref[...]                                                 # (tm, E) bf16
    h = jnp.dot(x, w1_ref[...], preferred_element_type=jnp.float32) + b1_ref[...]
    h = jnp.maximum(h, 0.0)
    acc_ref[...] += jnp.dot(h.astype(jnp.bfloat16), w2_ref[...],
                            preferred_element_type=jnp.float32)

    @pl.when(j == pl.num_programs(1) - 1)
    def _():
        z = x.astype(jnp.float32) + acc_ref[...] + b2_ref[...]
        mu = jnp.mean(z, axis=-1, keepdims=True)
        var = jnp.mean((z - mu) ** 2, axis=-1, keepdims=True)
        zn = (z - mu) * lax.rsqrt(var + eps)
        o_ref[...] = (zn * g_ref[...] + beta_ref[...]).astype(o_ref.dtype)


def pallas_ffn_block(x, w1, b1, w2, b2, gamma, beta, eps=1e-5):
    M, E = x.shape
    Hd = w1.shape[1]
    tm = _tile(M)
    th = _tile(Hd, target=1024)
    kernel = functools.partial(_ffn_block_kernel, eps=eps)
    return pl.pallas_call(
        kernel,
        out_shape=jax.ShapeDtypeStruct((M, E), jnp.bfloat16),
        grid=(M // tm, Hd // th),
        in_specs=[
            pl.BlockSpec((tm, E), lambda i, j: (i, 0)),
            pl.BlockSpec((E, th), lambda i, j: (0, j)),
            pl.BlockSpec((1, th), lambda i, j: (0, j)),
            pl.BlockSpec((th, E), lambda i, j: (j, 0)),
            pl.BlockSpec((1, E), lambda i, j: (0, 0)),
            pl.BlockSpec((1, E), lambda i, j: (0, 0)),
            pl.BlockSpec((1, E), lambda i, j: (0, 0)),
        ],
        out_specs=pl.BlockSpec((tm, E), lambda i, j: (i, 0)),
        scratch_shapes=[pltpu.VMEM((tm, E), jnp.float32)],
        compiler_params=_cparams(("parallel", "arbitrary")),
    )(x, w1, b1, w2, b2, gamma, beta)


# ----------------------------- logits + softmax -----------------------------

def _logits_softmax_kernel(x_ref, emb_ref, o_ref):
    # Contract on the last dim of both operands -> no emb.T materialisation.
    logits = lax.dot_general(x_ref[...], emb_ref[...],
                             (((1,), (1,)), ((), ())),
                             preferred_element_type=jnp.float32)   # (tm, V)
    m = jnp.max(logits, axis=-1, keepdims=True)
    e = jnp.exp(logits - m)
    o_ref[...] = e / jnp.sum(e, axis=-1, keepdims=True)


def pallas_logits_softmax(x, emb):
    M, E = x.shape
    V = emb.shape[0]
    tm = _tile(M)
    # TODO(synk): for a realistic vocab, add an "arbitrary" vocab grid axis with
    # a streaming (two-pass) softmax so neither the (tm,V) logits slab nor the
    # (V,E) embedding is fully resident in VMEM.
    return pl.pallas_call(
        _logits_softmax_kernel,
        out_shape=jax.ShapeDtypeStruct((M, V), jnp.float32),
        grid=(M // tm,),
        in_specs=[
            pl.BlockSpec((tm, E), lambda i: (i, 0)),
            pl.BlockSpec((V, E), lambda i: (0, 0)),
        ],
        out_specs=pl.BlockSpec((tm, V), lambda i: (i, 0)),
        compiler_params=_cparams(("parallel",)),
    )(x, emb)


# ----------------------------- model glue (plain JAX) -----------------------------

def positional_encoding(seq_len, e_dim):
    # exact reproduction of the reference formula
    pos = jnp.arange(seq_len, dtype=jnp.float32)[:, None]
    i = jnp.arange(0, e_dim, 2, dtype=jnp.float32)[None, :]
    pe = jnp.zeros((seq_len, e_dim), jnp.float32)
    pe = pe.at[:, 0::2].set(jnp.sin(pos / (10000.0 ** (2.0 * i / e_dim))))
    pe = pe.at[:, 1::2].set(jnp.cos(pos / (10000.0 ** (2.0 * (i + 1.0) / e_dim))))
    return pe


def encoder_layer(p, x, pad, num_heads):
    B, S, E = x.shape
    x = pallas_mha_block(pad, x, x, p["attn"], p["ln1_g"], p["ln1_b"],
                         num_heads=num_heads, causal=False)
    x = pallas_ffn_block(x.reshape(B * S, E), p["w1"], p["b1"], p["w2"], p["b2"],
                         p["ln2_g"], p["ln2_b"]).reshape(B, S, E)
    return x


def decoder_layer(p, x, context, dec_pad, enc_pad, num_heads):
    B, S, E = x.shape
    x = pallas_mha_block(dec_pad, x, x, p["masked_attn"], p["ln1_g"], p["ln1_b"],
                         num_heads=num_heads, causal=True)
    # reference TransformerDecoderLayer uses masking=True for the
    # cross-attention as well -- reproduced bug-for-bug.
    x = pallas_mha_block(enc_pad, x, context, p["cross_attn"], p["ln2_g"],
                         p["ln2_b"], num_heads=num_heads, causal=True)
    x = pallas_ffn_block(x.reshape(B * S, E), p["w1"], p["b1"], p["w2"], p["b2"],
                         p["ln3_g"], p["ln3_b"]).reshape(B, S, E)
    return x


def encoder(layers, x, pad, num_heads):
    S, E = x.shape[1], x.shape[2]
    x = (x.astype(jnp.float32) + positional_encoding(S, E)).astype(jnp.bfloat16)
    for lp in layers:
        x = encoder_layer(lp, x, pad, num_heads)
    return x


def decoder(layers, x, context, dec_pad, enc_pad, num_heads):
    S, E = x.shape[1], x.shape[2]
    x = (x.astype(jnp.float32) + positional_encoding(S, E)).astype(jnp.bfloat16)
    for lp in layers:
        # reproduce the swapped pad-mask argument order of the reference code
        x = decoder_layer(lp, x, context, enc_pad, dec_pad, num_heads)
    return x


def transformer_forward(params, source, target, num_heads):
    B, Ss = source.shape
    St = target.shape[1]
    src_pad = (source == 0).astype(jnp.int32).reshape(B, 1, Ss)
    tgt_pad = (target == 0).astype(jnp.int32).reshape(B, 1, St)
    emb = params["embedding"]                      # (V, E) bf16
    src = jnp.take(emb, source, axis=0)            # embedding gather (glue)
    src = encoder(params["encoder"], src, src_pad, num_heads)
    tgt = jnp.take(emb, target, axis=0)
    tgt = decoder(params["decoder"], tgt, src, tgt_pad, src_pad, num_heads)
    B, St, E = tgt.shape
    probs = pallas_logits_softmax(tgt.reshape(B * St, E), emb)
    return probs.reshape(B, St, -1)


# ----------------------------- parameter init -----------------------------

def init_params(key, vocab, e_dim, num_heads, hidden, n_enc, n_dec):
    assert e_dim % num_heads == 0
    keys = iter(jax.random.split(key, 4096))

    def lin(din, dout):
        # matrices in bf16 (HBM / DMA savings), biases in f32
        w = (jax.random.normal(next(keys), (din, dout), jnp.float32) * 0.05
             ).astype(jnp.bfloat16)
        b = jax.random.normal(next(keys), (1, dout), jnp.float32) * 0.05
        return w, b

    def mha_params():
        # per-head Linear(E, dq) weights concatenated along the output axis
        # == one fused (E, H*dq) projection; same for K/V and the (H*dq, E) Wo.
        wq, bq = lin(e_dim, e_dim)
        wk, bk = lin(e_dim, e_dim)
        wv, bv = lin(e_dim, e_dim)
        wo, bo = lin(e_dim, e_dim)
        return dict(wq=wq, bq=bq, wk=wk, bk=bk, wv=wv, bv=bv, wo=wo, bo=bo)

    def ln():
        return jnp.ones((1, e_dim), jnp.float32), jnp.zeros((1, e_dim), jnp.float32)

    enc_layers = []
    for _ in range(n_enc):
        g1, b1 = ln(); g2, b2 = ln()
        w1, bb1 = lin(e_dim, hidden)
        w2, bb2 = lin(hidden, e_dim)
        enc_layers.append(dict(attn=mha_params(), ln1_g=g1, ln1_b=b1,
                               w1=w1, b1=bb1, w2=w2, b2=bb2,
                               ln2_g=g2, ln2_b=b2))

    dec_layers = []
    for _ in range(n_dec):
        g1, b1 = ln(); g2, b2 = ln(); g3, b3 = ln()
        w1, bb1 = lin(e_dim, hidden)
        w2, bb2 = lin(hidden, e_dim)
        dec_layers.append(dict(masked_attn=mha_params(), cross_attn=mha_params(),
                               ln1_g=g1, ln1_b=b1, ln2_g=g2, ln2_b=b2,
                               ln3_g=g3, ln3_b=b3,
                               w1=w1, b1=bb1, w2=w2, b2=bb2))

    emb = (jax.random.normal(next(keys), (vocab, e_dim), jnp.float32) * 0.1
           ).astype(jnp.bfloat16)
    return dict(embedding=emb, encoder=enc_layers, decoder=dec_layers)


# ----------------------------- main -----------------------------

if __name__ == "__main__":
    VOCAB, EMB, HEADS, HIDDEN = 32, 32, 4, 64
    N_ENC, N_DEC = 2, 2
    B, S = 2, 8   # source/target share seq length (reference masks require it)

    key = jax.random.PRNGKey(0)
    kp, ks, kt = jax.random.split(key, 3)
    params = init_params(kp, VOCAB, EMB, HEADS, HIDDEN, N_ENC, N_DEC)

    source = jax.random.randint(ks, (B, S), 1, VOCAB, dtype=jnp.int32)
    target = jax.random.randint(kt, (B, S), 1, VOCAB, dtype=jnp.int32)
    # token id 0 == padding; add some to exercise the pad masks
    source = source.at[:, -2:].set(0)
    target = target.at[:, -1:].set(0)

    fwd = jax.jit(transformer_forward, static_argnums=(3,))
    out = fwd(params, source, target, HEADS)
    out = jax.block_until_ready(out)
    assert out.shape == (B, S, VOCAB)
    assert bool(jnp.all(jnp.isfinite(out)))
    print("KERNEL_OK")
</pallas_src>

<mosaic_0001>
module attributes {stable_mosaic.version = 11 : i64} {
  func.func @_mha_flash_kernel(%arg0: i32, %arg1: i32, %arg2: i32, %arg3: memref<1x1x8xi32, #tpu.memory_space<vmem>>, %arg4: memref<1x8x32xbf16, #tpu.memory_space<vmem>>, %arg5: memref<1x8x32xbf16, #tpu.memory_space<vmem>>, %arg6: memref<32x32xbf16, #tpu.memory_space<vmem>>, %arg7: memref<1x32xf32, #tpu.memory_space<vmem>>, %arg8: memref<32x32xbf16, #tpu.memory_space<vmem>>, %arg9: memref<1x32xf32, #tpu.memory_space<vmem>>, %arg10: memref<32x32xbf16, #tpu.memory_space<vmem>>, %arg11: memref<1x32xf32, #tpu.memory_space<vmem>>, %arg12: memref<32x32xbf16, #tpu.memory_space<vmem>>, %arg13: memref<1x32xf32, #tpu.memory_space<vmem>>, %arg14: memref<1x32xf32, #tpu.memory_space<vmem>>, %arg15: memref<1x32xf32, #tpu.memory_space<vmem>>, %arg16: memref<1x8x32xbf16, #tpu.memory_space<vmem>>, %arg17: memref<8x32xbf16, #tpu.memory_space<vmem>>, %arg18: memref<4x8x1xf32, #tpu.memory_space<vmem>>, %arg19: memref<4x8x1xf32, #tpu.memory_space<vmem>>, %arg20: memref<4x8x8xf32, #tpu.memory_space<vmem>>) attributes {dimension_semantics = [#tpu.dimension_semantics<parallel>, #tpu.dimension_semantics<parallel>, #tpu.dimension_semantics<arbitrary>], iteration_bounds = array<i64: 2, 1, 1>, scalar_prefetch = 0 : i64, scratch_operands = 4 : i64, tpu.core_type = #tpu.core_type<tc>, window_params = [{transform_indices = @transform_0, window_bounds = array<i64: 1, 1, 8>}, {transform_indices = @transform_1, window_bounds = array<i64: 1, 8, 32>}, {transform_indices = @transform_2, window_bounds = array<i64: 1, 8, 32>}, {pipeline_mode = #tpu.pipeline_mode<synchronous>, transform_indices = @transform_3, window_bounds = array<i64: 32, 32>}, {pipeline_mode = #tpu.pipeline_mode<synchronous>, transform_indices = @transform_4, window_bounds = array<i64: 1, 32>}, {pipeline_mode = #tpu.pipeline_mode<synchronous>, transform_indices = @transform_5, window_bounds = array<i64: 32, 32>}, {pipeline_mode = #tpu.pipeline_mode<synchronous>, transform_indices = @transform_6, window_bounds = array<i64: 1, 32>}, {pipeline_mode = #tpu.pipeline_mode<synchronous>, transform_indices = @transform_7, window_bounds = array<i64: 32, 32>}, {pipeline_mode = #tpu.pipeline_mode<synchronous>, transform_indices = @transform_8, window_bounds = array<i64: 1, 32>}, {pipeline_mode = #tpu.pipeline_mode<synchronous>, transform_indices = @transform_9, window_bounds = array<i64: 32, 32>}, {pipeline_mode = #tpu.pipeline_mode<synchronous>, transform_indices = @transform_10, window_bounds = array<i64: 1, 32>}, {pipeline_mode = #tpu.pipeline_mode<synchronous>, transform_indices = @transform_11, window_bounds = array<i64: 1, 32>}, {pipeline_mode = #tpu.pipeline_mode<synchronous>, transform_indices = @transform_12, window_bounds = array<i64: 1, 32>}, {transform_indices = @transform_13, window_bounds = array<i64: 1, 8, 32>}]} {
    %c0_i32 = arith.constant 0 : i32
    %0 = arith.cmpi eq, %arg2, %c0_i32 : i32
    %1 = arith.extui %0 : i1 to i32
    %c0_i32_0 = arith.constant 0 : i32
    %2 = arith.cmpi ne, %1, %c0_i32_0 : i32
    scf.if %2 {
      %c0_109 = arith.constant 0 : index
      %c0_110 = arith.constant 0 : index
      %c0_111 = arith.constant 0 : index
      %185 = vector.load %arg4[%c0_109, %c0_110, %c0_111] : memref<1x8x32xbf16, #tpu.memory_space<vmem>>, vector<1x8x32xbf16>
      %186 = vector.shape_cast %185 : vector<1x8x32xbf16> to vector<8x32xbf16>
      %c0_112 = arith.constant 0 : index
      %c0_113 = arith.constant 0 : index
      %187 = vector.load %arg6[%c0_112, %c0_113] : memref<32x32xbf16, #tpu.memory_space<vmem>>, vector<32x32xbf16>
      %cst_114 = arith.constant dense<0.000000e+00> : vector<8x32xf32>
      %188 = tpu.matmul %186, %187, %cst_114 {dimension_numbers = #tpu.dot_dimension_numbers<[1], [0], [0], [1], [0, 0, 1, 1], [], []>} : vector<8x32xbf16>, vector<32x32xbf16>, vector<8x32xf32> -> vector<8x32xf32>
      %c0_115 = arith.constant 0 : index
      %c0_116 = arith.constant 0 : index
      %189 = vector.load %arg7[%c0_115, %c0_116] : memref<1x32xf32, #tpu.memory_space<vmem>>, vector<1x32xf32>
      %190 = vector.broadcast %189 : vector<1x32xf32> to vector<8x32xf32>
      %191 = arith.addf %188, %190 : vector<8x32xf32>
      %cst_117 = arith.constant 0.353553385 : f32
      %192 = vector.broadcast %cst_117 : f32 to vector<8x32xf32>
      %193 = arith.mulf %191, %192 : vector<8x32xf32>
      %194 = arith.truncf %193 : vector<8x32xf32> to vector<8x32xbf16>
      %c0_118 = arith.constant 0 : index
      %c0_119 = arith.constant 0 : index
      %195 = vector.load %arg17[%c0_118, %c0_119] : memref<8x32xbf16, #tpu.memory_space<vmem>>, vector<8x32xbf16>
      tpu.vector_store %arg17[%c0_118, %c0_119], %194 {strides = array<i32>} : memref<8x32xbf16, #tpu.memory_space<vmem>>, vector<8x32xbf16>,
      %cst_120 = arith.constant -1.000000e+30 : f32
      %196 = vector.broadcast %cst_120 : f32 to vector<4x8x1xf32>
      %c0_121 = arith.constant 0 : index
      %c0_122 = arith.constant 0 : index
      %c0_123 = arith.constant 0 : index
      %197 = vector.load %arg18[%c0_121, %c0_122, %c0_123] : memref<4x8x1xf32, #tpu.memory_space<vmem>>, vector<4x8x1xf32>
      tpu.vector_store %arg18[%c0_121, %c0_122, %c0_123], %196 {strides = array<i32>} : memref<4x8x1xf32, #tpu.memory_space<vmem>>, vector<4x8x1xf32>,
      %cst_124 = arith.constant 0.000000e+00 : f32
      %198 = vector.broadcast %cst_124 : f32 to vector<4x8x1xf32>
      %c0_125 = arith.constant 0 : index
      %c0_126 = arith.constant 0 : index
      %c0_127 = arith.constant 0 : index
      %199 = vector.load %arg19[%c0_125, %c0_126, %c0_127] : memref<4x8x1xf32, #tpu.memory_space<vmem>>, vector<4x8x1xf32>
      tpu.vector_store %arg19[%c0_125, %c0_126, %c0_127], %198 {strides = array<i32>} : memref<4x8x1xf32, #tpu.memory_space<vmem>>, vector<4x8x1xf32>,
      %cst_128 = arith.constant 0.000000e+00 : f32
      %200 = vector.broadcast %cst_128 : f32 to vector<4x8x8xf32>
      %c0_129 = arith.constant 0 : index
      %c0_130 = arith.constant 0 : index
      %c0_131 = arith.constant 0 : index
      %201 = vector.load %arg20[%c0_129, %c0_130, %c0_131] : memref<4x8x8xf32, #tpu.memory_space<vmem>>, vector<4x8x8xf32>
      tpu.vector_store %arg20[%c0_129, %c0_130, %c0_131], %200 {strides = array<i32>} : memref<4x8x8xf32, #tpu.memory_space<vmem>>, vector<4x8x8xf32>,
    } else {
    }
    %c0 = arith.constant 0 : index
    %c0_1 = arith.constant 0 : index
    %c0_2 = arith.constant 0 : index
    %3 = vector.load %arg5[%c0, %c0_1, %c0_2] : memref<1x8x32xbf16, #tpu.memory_space<vmem>>, vector<1x8x32xbf16>
    %4 = vector.shape_cast %3 : vector<1x8x32xbf16> to vector<8x32xbf16>
    %c0_3 = arith.constant 0 : index
    %c0_4 = arith.constant 0 : index
    %5 = vector.load %arg8[%c0_3, %c0_4] : memref<32x32xbf16, #tpu.memory_space<vmem>>, vector<32x32xbf16>
    %cst = arith.constant dense<0.000000e+00> : vector<8x32xf32>
    %6 = tpu.matmul %4, %5, %cst {dimension_numbers = #tpu.dot_dimension_numbers<[1], [0], [0], [1], [0, 0, 1, 1], [], []>} : vector<8x32xbf16>, vector<32x32xbf16>, vector<8x32xf32> -> vector<8x32xf32>
    %c0_5 = arith.constant 0 : index
    %c0_6 = arith.constant 0 : index
    %7 = vector.load %arg9[%c0_5, %c0_6] : memref<1x32xf32, #tpu.memory_space<vmem>>, vector<1x32xf32>
    %8 = vector.broadcast %7 : vector<1x32xf32> to vector<8x32xf32>
    %9 = arith.addf %6, %8 : vector<8x32xf32>
    %10 = arith.truncf %9 : vector<8x32xf32> to vector<8x32xbf16>
    %c0_7 = arith.constant 0 : index
    %c0_8 = arith.constant 0 : index
    %11 = vector.load %arg10[%c0_7, %c0_8] : memref<32x32xbf16, #tpu.memory_space<vmem>>, vector<32x32xbf16>
    %cst_9 = arith.constant dense<0.000000e+00> : vector<8x32xf32>
    %12 = tpu.matmul %4, %11, %cst_9 {dimension_numbers = #tpu.dot_dimension_numbers<[1], [0], [0], [1], [0, 0, 1, 1], [], []>} : vector<8x32xbf16>, vector<32x32xbf16>, vector<8x32xf32> -> vector<8x32xf32>
    %c0_10 = arith.constant 0 : index
    %c0_11 = arith.constant 0 : index
    %13 = vector.load %arg11[%c0_10, %c0_11] : memref<1x32xf32, #tpu.memory_space<vmem>>, vector<1x32xf32>
    %14 = vector.broadcast %13 : vector<1x32xf32> to vector<8x32xf32>
    %15 = arith.addf %12, %14 : vector<8x32xf32>
    %16 = arith.truncf %15 : vector<8x32xf32> to vector<8x32xbf16>
    %c0_12 = arith.constant 0 : index
    %c0_13 = arith.constant 0 : index
    %17 = vector.load %arg17[%c0_12, %c0_13] : memref<8x32xbf16, #tpu.memory_space<vmem>>, vector<8x32xbf16>
    %c0_14 = arith.constant 0 : index
    %c0_15 = arith.constant 0 : index
    %c0_16 = arith.constant 0 : index
    %18 = vector.load %arg3[%c0_14, %c0_15, %c0_16] : memref<1x1x8xi32, #tpu.memory_space<vmem>>, vector<1x1x8xi32>
    %19 = vector.shape_cast %18 : vector<1x1x8xi32> to vector<1x8xi32>
    %c0_i32_17 = arith.constant 0 : i32
    %20 = vector.broadcast %c0_i32_17 : i32 to vector<1x8xi32>
    %21 = arith.cmpi ne, %19, %20 : vector<1x8xi32>
    %22 = vector.extract_strided_slice %17 {offsets = [0, 0], sizes = [8, 8], strides = [1, 1]} : vector<8x32xbf16> to vector<8x8xbf16>
    %23 = vector.extract_strided_slice %10 {offsets = [0, 0], sizes = [8, 8], strides = [1, 1]} : vector<8x32xbf16> to vector<8x8xbf16>
    %24 = vector.extract_strided_slice %16 {offsets = [0, 0], sizes = [8, 8], strides = [1, 1]} : vector<8x32xbf16> to vector<8x8xbf16>
    %cst_18 = arith.constant dense<0.000000e+00> : vector<8x8xf32>
    %25 = tpu.matmul %22, %23, %cst_18 {dimension_numbers = #tpu.dot_dimension_numbers<[1], [1], [0], [0], [0, 0, 1, 0], [], []>} : vector<8x8xbf16>, vector<8x8xbf16>, vector<8x8xf32> -> vector<8x8xf32>
    %cst_19 = arith.constant -1.000000e+09 : f32
    %26 = vector.shape_cast %21 : vector<1x8xi1> to vector<1x8xi1>
    %27 = vector.broadcast %26 : vector<1x8xi1> to vector<8x8xi1>
    %28 = vector.broadcast %cst_19 : f32 to vector<8x8xf32>
    %29 = arith.select %27, %28, %25 : vector<8x8xi1>, vector<8x8xf32>
    %c0_20 = arith.constant 0 : index
    %c0_21 = arith.constant 0 : index
    %c0_22 = arith.constant 0 : index
    %30 = vector.load %arg18[%c0_20, %c0_21, %c0_22] : memref<4x8x1xf32, #tpu.memory_space<vmem>>, vector<1x8x1xf32>
    %31 = vector.shape_cast %30 : vector<1x8x1xf32> to vector<8x1xf32>
    %cst_23 = arith.constant dense<0xFF800000> : vector<8xf32>
    %32 = vector.multi_reduction <maximumf>, %29, %cst_23 [1] : vector<8x8xf32> to vector<8xf32>
    %33 = vector.shape_cast %32 : vector<8xf32> to vector<8x1xf32>
    %34 = arith.maximumf %31, %33 : vector<8x1xf32>
    %35 = arith.subf %31, %34 : vector<8x1xf32>
    %36 = math.exp %35 : vector<8x1xf32>
    %37 = vector.broadcast %34 : vector<8x1xf32> to vector<8x8xf32>
    %38 = arith.subf %29, %37 : vector<8x8xf32>
    %39 = math.exp %38 : vector<8x8xf32>
    %c0_24 = arith.constant 0 : index
    %c0_25 = arith.constant 0 : index
    %c0_26 = arith.constant 0 : index
    %40 = vector.load %arg19[%c0_24, %c0_25, %c0_26] : memref<4x8x1xf32, #tpu.memory_space<vmem>>, vector<1x8x1xf32>
    %41 = vector.shape_cast %40 : vector<1x8x1xf32> to vector<8x1xf32>
    %42 = arith.mulf %36, %41 : vector<8x1xf32>
    %cst_27 = arith.constant dense<0.000000e+00> : vector<8xf32>
    %43 = vector.multi_reduction <add>, %39, %cst_27 [1] : vector<8x8xf32> to vector<8xf32>
    %44 = vector.shape_cast %43 : vector<8xf32> to vector<8x1xf32>
    %45 = arith.addf %42, %44 : vector<8x1xf32>
    %c0_28 = arith.constant 0 : index
    %c0_29 = arith.constant 0 : index
    %c0_30 = arith.constant 0 : index
    %46 = vector.load %arg19[%c0_28, %c0_29, %c0_30] : memref<4x8x1xf32, #tpu.memory_space<vmem>>, vector<1x8x1xf32>
    %47 = vector.shape_cast %46 : vector<1x8x1xf32> to vector<8x1xf32>
    %48 = vector.shape_cast %45 : vector<8x1xf32> to vector<1x8x1xf32>
    tpu.vector_store %arg19[%c0_28, %c0_29, %c0_30], %48 {strides = array<i32>} : memref<4x8x1xf32, #tpu.memory_space<vmem>>, vector<1x8x1xf32>,
    %c0_31 = arith.constant 0 : index
    %c0_32 = arith.constant 0 : index
    %c0_33 = arith.constant 0 : index
    %49 = vector.load %arg20[%c0_31, %c0_32, %c0_33] : memref<4x8x8xf32, #tpu.memory_space<vmem>>, vector<1x8x8xf32>
    %50 = vector.shape_cast %49 : vector<1x8x8xf32> to vector<8x8xf32>
    %51 = vector.broadcast %36 : vector<8x1xf32> to vector<8x8xf32>
    %52 = arith.mulf %51, %50 : vector<8x8xf32>
    %53 = arith.truncf %39 : vector<8x8xf32> to vector<8x8xbf16>
    %cst_34 = arith.constant dense<0.000000e+00> : vector<8x8xf32>
    %54 = tpu.matmul %53, %24, %cst_34 {dimension_numbers = #tpu.dot_dimension_numbers<[1], [0], [0], [1], [0, 0, 1, 1], [], []>} : vector<8x8xbf16>, vector<8x8xbf16>, vector<8x8xf32> -> vector<8x8xf32>
    %55 = arith.addf %52, %54 : vector<8x8xf32>
    %c0_35 = arith.constant 0 : index
    %c0_36 = arith.constant 0 : index
    %c0_37 = arith.constant 0 : index
    %56 = vector.load %arg20[%c0_35, %c0_36, %c0_37] : memref<4x8x8xf32, #tpu.memory_space<vmem>>, vector<1x8x8xf32>
    %57 = vector.shape_cast %56 : vector<1x8x8xf32> to vector<8x8xf32>
    %58 = vector.shape_cast %55 : vector<8x8xf32> to vector<1x8x8xf32>
    tpu.vector_store %arg20[%c0_35, %c0_36, %c0_37], %58 {strides = array<i32>} : memref<4x8x8xf32, #tpu.memory_space<vmem>>, vector<1x8x8xf32>,
    %c0_38 = arith.constant 0 : index
    %c0_39 = arith.constant 0 : index
    %c0_40 = arith.constant 0 : index
    %59 = vector.load %arg18[%c0_38, %c0_39, %c0_40] : memref<4x8x1xf32, #tpu.memory_space<vmem>>, vector<1x8x1xf32>
    %60 = vector.shape_cast %59 : vector<1x8x1xf32> to vector<8x1xf32>
    %61 = vector.shape_cast %34 : vector<8x1xf32> to vector<1x8x1xf32>
    tpu.vector_store %arg18[%c0_38, %c0_39, %c0_40], %61 {strides = array<i32>} : memref<4x8x1xf32, #tpu.memory_space<vmem>>, vector<1x8x1xf32>,
    %62 = vector.extract_strided_slice %17 {offsets = [0, 8], sizes = [8, 8], strides = [1, 1]} : vector<8x32xbf16> to vector<8x8xbf16>
    %63 = vector.extract_strided_slice %10 {offsets = [0, 8], sizes = [8, 8], strides = [1, 1]} : vector<8x32xbf16> to vector<8x8xbf16>
    %64 = vector.extract_strided_slice %16 {offsets = [0, 8], sizes = [8, 8], strides = [1, 1]} : vector<8x32xbf16> to vector<8x8xbf16>
    %cst_41 = arith.constant dense<0.000000e+00> : vector<8x8xf32>
    %65 = tpu.matmul %62, %63, %cst_41 {dimension_numbers = #tpu.dot_dimension_numbers<[1], [1], [0], [0], [0, 0, 1, 0], [], []>} : vector<8x8xbf16>, vector<8x8xbf16>, vector<8x8xf32> -> vector<8x8xf32>
    %cst_42 = arith.constant -1.000000e+09 : f32
    %66 = vector.shape_cast %21 : vector<1x8xi1> to vector<1x8xi1>
    %67 = vector.broadcast %66 : vector<1x8xi1> to vector<8x8xi1>
    %68 = vector.broadcast %cst_42 : f32 to vector<8x8xf32>
    %69 = arith.select %67, %68, %65 : vector<8x8xi1>, vector<8x8xf32>
    %c1 = arith.constant 1 : index
    %c0_43 = arith.constant 0 : index
    %c0_44 = arith.constant 0 : index
    %70 = vector.load %arg18[%c1, %c0_43, %c0_44] : memref<4x8x1xf32, #tpu.memory_space<vmem>>, vector<1x8x1xf32>
    %71 = vector.shape_cast %70 : vector<1x8x1xf32> to vector<8x1xf32>
    %cst_45 = arith.constant dense<0xFF800000> : vector<8xf32>
    %72 = vector.multi_reduction <maximumf>, %69, %cst_45 [1] : vector<8x8xf32> to vector<8xf32>
    %73 = vector.shape_cast %72 : vector<8xf32> to vector<8x1xf32>
    %74 = arith.maximumf %71, %73 : vector<8x1xf32>
    %75 = arith.subf %71, %74 : vector<8x1xf32>
    %76 = math.exp %75 : vector<8x1xf32>
    %77 = vector.broadcast %74 : vector<8x1xf32> to vector<8x8xf32>
    %78 = arith.subf %69, %77 : vector<8x8xf32>
    %79 = math.exp %78 : vector<8x8xf32>
    %c1_46 = arith.constant 1 : index
    %c0_47 = arith.constant 0 : index
    %c0_48 = arith.constant 0 : index
    %80 = vector.load %arg19[%c1_46, %c0_47, %c0_48] : memref<4x8x1xf32, #tpu.memory_space<vmem>>, vector<1x8x1xf32>
    %81 = vector.shape_cast %80 : vector<1x8x1xf32> to vector<8x1xf32>
    %82 = arith.mulf %76, %81 : vector<8x1xf32>
    %cst_49 = arith.constant dense<0.000000e+00> : vector<8xf32>
    %83 = vector.multi_reduction <add>, %79, %cst_49 [1] : vector<8x8xf32> to vector<8xf32>
    %84 = vector.shape_cast %83 : vector<8xf32> to vector<8x1xf32>
    %85 = arith.addf %82, %84 : vector<8x1xf32>
    %c1_50 = arith.constant 1 : index
    %c0_51 = arith.constant 0 : index
    %c0_52 = arith.constant 0 : index
    %86 = vector.load %arg19[%c1_50, %c0_51, %c0_52] : memref<4x8x1xf32, #tpu.memory_space<vmem>>, vector<1x8x1xf32>
    %87 = vector.shape_cast %86 : vector<1x8x1xf32> to vector<8x1xf32>
    %88 = vector.shape_cast %85 : vector<8x1xf32> to vector<1x8x1xf32>
    tpu.vector_store %arg19[%c1_50, %c0_51, %c0_52], %88 {strides = array<i32>} : memref<4x8x1xf32, #tpu.memory_space<vmem>>, vector<1x8x1xf32>,
    %c1_53 = arith.constant 1 : index
    %c0_54 = arith.constant 0 : index
    %c0_55 = arith.constant 0 : index
    %89 = vector.load %arg20[%c1_53, %c0_54, %c0_55] : memref<4x8x8xf32, #tpu.memory_space<vmem>>, vector<1x8x8xf32>
    %90 = vector.shape_cast %89 : vector<1x8x8xf32> to vector<8x8xf32>
    %91 = vector.broadcast %76 : vector<8x1xf32> to vector<8x8xf32>
    %92 = arith.mulf %91, %90 : vector<8x8xf32>
    %93 = arith.truncf %79 : vector<8x8xf32> to vector<8x8xbf16>
    %cst_56 = arith.constant dense<0.000000e+00> : vector<8x8xf32>
    %94 = tpu.matmul %93, %64, %cst_56 {dimension_numbers = #tpu.dot_dimension_numbers<[1], [0], [0], [1], [0, 0, 1, 1], [], []>} : vector<8x8xbf16>, vector<8x8xbf16>, vector<8x8xf32> -> vector<8x8xf32>
    %95 = arith.addf %92, %94 : vector<8x8xf32>
    %c1_57 = arith.constant 1 : index
    %c0_58 = arith.constant 0 : index
    %c0_59 = arith.constant 0 : index
    %96 = vector.load %arg20[%c1_57, %c0_58, %c0_59] : memref<4x8x8xf32, #tpu.memory_space<vmem>>, vector<1x8x8xf32>
    %97 = vector.shape_cast %96 : vector<1x8x8xf32> to vector<8x8xf32>
    %98 = vector.shape_cast %95 : vector<8x8xf32> to vector<1x8x8xf32>
    tpu.vector_store %arg20[%c1_57, %c0_58, %c0_59], %98 {strides = array<i32>} : memref<4x8x8xf32, #tpu.memory_space<vmem>>, vector<1x8x8xf32>,
    %c1_60 = arith.constant 1 : index
    %c0_61 = arith.constant 0 : index
    %c0_62 = arith.constant 0 : index
    %99 = vector.load %arg18[%c1_60, %c0_61, %c0_62] : memref<4x8x1xf32, #tpu.memory_space<vmem>>, vector<1x8x1xf32>
    %100 = vector.shape_cast %99 : vector<1x8x1xf32> to vector<8x1xf32>
    %101 = vector.shape_cast %74 : vector<8x1xf32> to vector<1x8x1xf32>
    tpu.vector_store %arg18[%c1_60, %c0_61, %c0_62], %101 {strides = array<i32>} : memref<4x8x1xf32, #tpu.memory_space<vmem>>, vector<1x8x1xf32>,
    %102 = vector.extract_strided_slice %17 {offsets = [0, 16], sizes = [8, 8], strides = [1, 1]} : vector<8x32xbf16> to vector<8x8xbf16>
    %103 = vector.extract_strided_slice %10 {offsets = [0, 16], sizes = [8, 8], strides = [1, 1]} : vector<8x32xbf16> to vector<8x8xbf16>
    %104 = vector.extract_strided_slice %16 {offsets = [0, 16], sizes = [8, 8], strides = [1, 1]} : vector<8x32xbf16> to vector<8x8xbf16>
    %cst_63 = arith.constant dense<0.000000e+00> : vector<8x8xf32>
    %105 = tpu.matmul %102, %103, %cst_63 {dimension_numbers = #tpu.dot_dimension_numbers<[1], [1], [0], [0], [0, 0, 1, 0], [], []>} : vector<8x8xbf16>, vector<8x8xbf16>, vector<8x8xf32> -> vector<8x8xf32>
    %cst_64 = arith.constant -1.000000e+09 : f32
    %106 = vector.shape_cast %21 : vector<1x8xi1> to vector<1x8xi1>
    %107 = vector.broadcast %106 : vector<1x8xi1> to vector<8x8xi1>
    %108 = vector.broadcast %cst_64 : f32 to vector<8x8xf32>
    %109 = arith.select %107, %108, %105 : vector<8x8xi1>, vector<8x8xf32>
    %c2 = arith.constant 2 : index
    %c0_65 = arith.constant 0 : index
    %c0_66 = arith.constant 0 : index
    %110 = vector.load %arg18[%c2, %c0_65, %c0_66] : memref<4x8x1xf32, #tpu.memory_space<vmem>>, vector<1x8x1xf32>
    %111 = vector.shape_cast %110 : vector<1x8x1xf32> to vector<8x1xf32>
    %cst_67 = arith.constant dense<0xFF800000> : vector<8xf32>
    %112 = vector.multi_reduction <maximumf>, %109, %cst_67 [1] : vector<8x8xf32> to vector<8xf32>
    %113 = vector.shape_cast %112 : vector<8xf32> to vector<8x1xf32>
    %114 = arith.maximumf %111, %113 : vector<8x1xf32>
    %115 = arith.subf %111, %114 : vector<8x1xf32>
    %116 = math.exp %115 : vector<8x1xf32>
    %117 = vector.broadcast %114 : vector<8x1xf32> to vector<8x8xf32>
    %118 = arith.subf %109, %117 : vector<8x8xf32>
    %119 = math.exp %118 : vector<8x8xf32>
    %c2_68 = arith.constant 2 : index
    %c0_69 = arith.constant 0 : index
    %c0_70 = arith.constant 0 : index
    %120 = vector.load %arg19[%c2_68, %c0_69, %c0_70] : memref<4x8x1xf32, #tpu.memory_space<vmem>>, vector<1x8x1xf32>
    %121 = vector.shape_cast %120 : vector<1x8x1xf32> to vector<8x1xf32>
    %122 = arith.mulf %116, %121 : vector<8x1xf32>
    %cst_71 = arith.constant dense<0.000000e+00> : vector<8xf32>
    %123 = vector.multi_reduction <add>, %119, %cst_71 [1] : vector<8x8xf32> to vector<8xf32>
    %124 = vector.shape_cast %123 : vector<8xf32> to vector<8x1xf32>
    %125 = arith.addf %122, %124 : vector<8x1xf32>
    %c2_72 = arith.constant 2 : index
    %c0_73 = arith.constant 0 : index
    %c0_74 = arith.constant 0 : index
    %126 = vector.load %arg19[%c2_72, %c0_73, %c0_74] : memref<4x8x1xf32, #tpu.memory_space<vmem>>, vector<1x8x1xf32>
    %127 = vector.shape_cast %126 : vector<1x8x1xf32> to vector<8x1xf32>
    %128 = vector.shape_cast %125 : vector<8x1xf32> to vector<1x8x1xf32>
    tpu.vector_store %arg19[%c2_72, %c0_73, %c0_74], %128 {strides = array<i32>} : memref<4x8x1xf32, #tpu.memory_space<vmem>>, vector<1x8x1xf32>,
    %c2_75 = arith.constant 2 : index
    %c0_76 = arith.constant 0 : index
    %c0_77 = arith.constant 0 : index
    %129 = vector.load %arg20[%c2_75, %c0_76, %c0_77] : memref<4x8x8xf32, #tpu.memory_space<vmem>>, vector<1x8x8xf32>
    %130 = vector.shape_cast %129 : vector<1x8x8xf32> to vector<8x8xf32>
    %131 = vector.broadcast %116 : vector<8x1xf32> to vector<8x8xf32>
    %132 = arith.mulf %131, %130 : vector<8x8xf32>
    %133 = arith.truncf %119 : vector<8x8xf32> to vector<8x8xbf16>
    %cst_78 = arith.constant dense<0.000000e+00> : vector<8x8xf32>
    %134 = tpu.matmul %133, %104, %cst_78 {dimension_numbers = #tpu.dot_dimension_numbers<[1], [0], [0], [1], [0, 0, 1, 1], [], []>} : vector<8x8xbf16>, vector<8x8xbf16>, vector<8x8xf32> -> vector<8x8xf32>
    %135 = arith.addf %132, %134 : vector<8x8xf32>
    %c2_79 = arith.constant 2 : index
    %c0_80 = arith.constant 0 : index
    %c0_81 = arith.constant 0 : index
    %136 = vector.load %arg20[%c2_79, %c0_80, %c0_81] : memref<4x8x8xf32, #tpu.memory_space<vmem>>, vector<1x8x8xf32>
    %137 = vector.shape_cast %136 : vector<1x8x8xf32> to vector<8x8xf32>
    %138 = vector.shape_cast %135 : vector<8x8xf32> to vector<1x8x8xf32>
    tpu.vector_store %arg20[%c2_79, %c0_80, %c0_81], %138 {strides = array<i32>} : memref<4x8x8xf32, #tpu.memory_space<vmem>>, vector<1x8x8xf32>,
    %c2_82 = arith.constant 2 : index
    %c0_83 = arith.constant 0 : index
    %c0_84 = arith.constant 0 : index
    %139 = vector.load %arg18[%c2_82, %c0_83, %c0_84] : memref<4x8x1xf32, #tpu.memory_space<vmem>>, vector<1x8x1xf32>
    %140 = vector.shape_cast %139 : vector<1x8x1xf32> to vector<8x1xf32>
    %141 = vector.shape_cast %114 : vector<8x1xf32> to vector<1x8x1xf32>
    tpu.vector_store %arg18[%c2_82, %c0_83, %c0_84], %141 {strides = array<i32>} : memref<4x8x1xf32, #tpu.memory_space<vmem>>, vector<1x8x1xf32>,
    %142 = vector.extract_strided_slice %17 {offsets = [0, 24], sizes = [8, 8], strides = [1, 1]} : vector<8x32xbf16> to vector<8x8xbf16>
    %143 = vector.extract_strided_slice %10 {offsets = [0, 24], sizes = [8, 8], strides = [1, 1]} : vector<8x32xbf16> to vector<8x8xbf16>
    %144 = vector.extract_strided_slice %16 {offsets = [0, 24], sizes = [8, 8], strides = [1, 1]} : vector<8x32xbf16> to vector<8x8xbf16>
    %cst_85 = arith.constant dense<0.000000e+00> : vector<8x8xf32>
    %145 = tpu.matmul %142, %143, %cst_85 {dimension_numbers = #tpu.dot_dimension_numbers<[1], [1], [0], [0], [0, 0, 1, 0], [], []>} : vector<8x8xbf16>, vector<8x8xbf16>, vector<8x8xf32> -> vector<8x8xf32>
    %cst_86 = arith.constant -1.000000e+09 : f32
    %146 = vector.shape_cast %21 : vector<1x8xi1> to vector<1x8xi1>
    %147 = vector.broadcast %146 : vector<1x8xi1> to vector<8x8xi1>
    %148 = vector.broadcast %cst_86 : f32 to vector<8x8xf32>
    %149 = arith.select %147, %148, %145 : vector<8x8xi1>, vector<8x8xf32>
    %c3 = arith.constant 3 : index
    %c0_87 = arith.constant 0 : index
    %c0_88 = arith.constant 0 : index
    %150 = vector.load %arg18[%c3, %c0_87, %c0_88] : memref<4x8x1xf32, #tpu.memory_space<vmem>>, vector<1x8x1xf32>
    %151 = vector.shape_cast %150 : vector<1x8x1xf32> to vector<8x1xf32>
    %cst_89 = arith.constant dense<0xFF800000> : vector<8xf32>
    %152 = vector.multi_reduction <maximumf>, %149, %cst_89 [1] : vector<8x8xf32> to vector<8xf32>
    %153 = vector.shape_cast %152 : vector<8xf32> to vector<8x1xf32>
    %154 = arith.maximumf %151, %153 : vector<8x1xf32>
    %155 = arith.subf %151, %154 : vector<8x1xf32>
    %156 = math.exp %155 : vector<8x1xf32>
    %157 = vector.broadcast %154 : vector<8x1xf32> to vector<8x8xf32>
    %158 = arith.subf %149, %157 : vector<8x8xf32>
    %159 = math.exp %158 : vector<8x8xf32>
    %c3_90 = arith.constant 3 : index
    %c0_91 = arith.constant 0 : index
    %c0_92 = arith.constant 0 : index
    %160 = vector.load %arg19[%c3_90, %c0_91, %c0_92] : memref<4x8x1xf32, #tpu.memory_space<vmem>>, vector<1x8x1xf32>
    %161 = vector.shape_cast %160 : vector<1x8x1xf32> to vector<8x1xf32>
    %162 = arith.mulf %156, %161 : vector<8x1xf32>
    %cst_93 = arith.constant dense<0.000000e+00> : vector<8xf32>
    %163 = vector.multi_reduction <add>, %159, %cst_93 [1] : vector<8x8xf32> to vector<8xf32>
    %164 = vector.shape_cast %163 : vector<8xf32> to vector<8x1xf32>
    %165 = arith.addf %162, %164 : vector<8x1xf32>
    %c3_94 = arith.constant 3 : index
    %c0_95 = arith.constant 0 : index
    %c0_96 = arith.constant 0 : index
    %166 = vector.load %arg19[%c3_94, %c0_95, %c0_96] : memref<4x8x1xf32, #tpu.memory_space<vmem>>, vector<1x8x1xf32>
    %167 = vector.shape_cast %166 : vector<1x8x1xf32> to vector<8x1xf32>
    %168 = vector.shape_cast %165 : vector<8x1xf32> to vector<1x8x1xf32>
    tpu.vector_store %arg19[%c3_94, %c0_95, %c0_96], %168 {strides = array<i32>} : memref<4x8x1xf32, #tpu.memory_space<vmem>>, vector<1x8x1xf32>,
    %c3_97 = arith.constant 3 : index
    %c0_98 = arith.constant 0 : index
    %c0_99 = arith.constant 0 : index
    %169 = vector.load %arg20[%c3_97, %c0_98, %c0_99] : memref<4x8x8xf32, #tpu.memory_space<vmem>>, vector<1x8x8xf32>
    %170 = vector.shape_cast %169 : vector<1x8x8xf32> to vector<8x8xf32>
    %171 = vector.broadcast %156 : vector<8x1xf32> to vector<8x8xf32>
    %172 = arith.mulf %171, %170 : vector<8x8xf32>
    %173 = arith.truncf %159 : vector<8x8xf32> to vector<8x8xbf16>
    %cst_100 = arith.constant dense<0.000000e+00> : vector<8x8xf32>
    %174 = tpu.matmul %173, %144, %cst_100 {dimension_numbers = #tpu.dot_dimension_numbers<[1], [0], [0], [1], [0, 0, 1, 1], [], []>} : vector<8x8xbf16>, vector<8x8xbf16>, vector<8x8xf32> -> vector<8x8xf32>
    %175 = arith.addf %172, %174 : vector<8x8xf32>
    %c3_101 = arith.constant 3 : index
    %c0_102 = arith.constant 0 : index
    %c0_103 = arith.constant 0 : index
    %176 = vector.load %arg20[%c3_101, %c0_102, %c0_103] : memref<4x8x8xf32, #tpu.memory_space<vmem>>, vector<1x8x8xf32>
    %177 = vector.shape_cast %176 : vector<1x8x8xf32> to vector<8x8xf32>
    %178 = vector.shape_cast %175 : vector<8x8xf32> to vector<1x8x8xf32>
    tpu.vector_store %arg20[%c3_101, %c0_102, %c0_103], %178 {strides = array<i32>} : memref<4x8x8xf32, #tpu.memory_space<vmem>>, vector<1x8x8xf32>,
    %c3_104 = arith.constant 3 : index
    %c0_105 = arith.constant 0 : index
    %c0_106 = arith.constant 0 : index
    %179 = vector.load %arg18[%c3_104, %c0_105, %c0_106] : memref<4x8x1xf32, #tpu.memory_space<vmem>>, vector<1x8x1xf32>
    %180 = vector.shape_cast %179 : vector<1x8x1xf32> to vector<8x1xf32>
    %181 = vector.shape_cast %154 : vector<8x1xf32> to vector<1x8x1xf32>
    tpu.vector_store %arg18[%c3_104, %c0_105, %c0_106], %181 {strides = array<i32>} : memref<4x8x1xf32, #tpu.memory_space<vmem>>, vector<1x8x1xf32>,
    %c0_i32_107 = arith.constant 0 : i32
    %182 = arith.cmpi eq, %arg2, %c0_i32_107 : i32
    %183 = arith.extui %182 : i1 to i32
    %c0_i32_108 = arith.constant 0 : i32
    %184 = arith.cmpi ne, %183, %c0_i32_108 : i32
    scf.if %184 {
      %c0_109 = arith.constant 0 : index
      %c0_110 = arith.constant 0 : index
      %c0_111 = arith.constant 0 : index
      %185 = vector.load %arg20[%c0_109, %c0_110, %c0_111] : memref<4x8x8xf32, #tpu.memory_space<vmem>>, vector<1x8x8xf32>
      %186 = vector.shape_cast %185 : vector<1x8x8xf32> to vector<8x8xf32>
      %c0_112 = arith.constant 0 : index
      %c0_113 = arith.constant 0 : index
      %c0_114 = arith.constant 0 : index
      %187 = vector.load %arg19[%c0_112, %c0_113, %c0_114] : memref<4x8x1xf32, #tpu.memory_space<vmem>>, vector<1x8x1xf32>
      %188 = vector.shape_cast %187 : vector<1x8x1xf32> to vector<8x1xf32>
      %189 = tpu.reciprocal %188 {approx = true} : vector<8x1xf32> -> vector<8x1xf32>
      %190 = vector.broadcast %189 : vector<8x1xf32> to vector<8x8xf32>
      %191 = arith.mulf %186, %190 : vector<8x8xf32>
      %c1_115 = arith.constant 1 : index
      %c0_116 = arith.constant 0 : index
      %c0_117 = arith.constant 0 : index
      %192 = vector.load %arg20[%c1_115, %c0_116, %c0_117] : memref<4x8x8xf32, #tpu.memory_space<vmem>>, vector<1x8x8xf32>
      %193 = vector.shape_cast %192 : vector<1x8x8xf32> to vector<8x8xf32>
      %c1_118 = arith.constant 1 : index
      %c0_119 = arith.constant 0 : index
      %c0_120 = arith.constant 0 : index
      %194 = vector.load %arg19[%c1_118, %c0_119, %c0_120] : memref<4x8x1xf32, #tpu.memory_space<vmem>>, vector<1x8x1xf32>
      %195 = vector.shape_cast %194 : vector<1x8x1xf32> to vector<8x1xf32>
      %196 = tpu.reciprocal %195 {approx = true} : vector<8x1xf32> -> vector<8x1xf32>
      %197 = vector.broadcast %196 : vector<8x1xf32> to vector<8x8xf32>
      %198 = arith.mulf %193, %197 : vector<8x8xf32>
      %c2_121 = arith.constant 2 : index
      %c0_122 = arith.constant 0 : index
      %c0_123 = arith.constant 0 : index
      %199 = vector.load %arg20[%c2_121, %c0_122, %c0_123] : memref<4x8x8xf32, #tpu.memory_space<vmem>>, vector<1x8x8xf32>
      %200 = vector.shape_cast %199 : vector<1x8x8xf32> to vector<8x8xf32>
      %c2_124 = arith.constant 2 : index
      %c0_125 = arith.constant 0 : index
      %c0_126 = arith.constant 0 : index
      %201 = vector.load %arg19[%c2_124, %c0_125, %c0_126] : memref<4x8x1xf32, #tpu.memory_space<vmem>>, vector<1x8x1xf32>
      %202 = vector.shape_cast %201 : vector<1x8x1xf32> to vector<8x1xf32>
      %203 = tpu.reciprocal %202 {approx = true} : vector<8x1xf32> -> vector<8x1xf32>
      %204 = vector.broadcast %203 : vector<8x1xf32> to vector<8x8xf32>
      %205 = arith.mulf %200, %204 : vector<8x8xf32>
      %c3_127 = arith.constant 3 : index
      %c0_128 = arith.constant 0 : index
      %c0_129 = arith.constant 0 : index
      %206 = vector.load %arg20[%c3_127, %c0_128, %c0_129] : memref<4x8x8xf32, #tpu.memory_space<vmem>>, vector<1x8x8xf32>
      %207 = vector.shape_cast %206 : vector<1x8x8xf32> to vector<8x8xf32>
      %c3_130 = arith.constant 3 : index
      %c0_131 = arith.constant 0 : index
      %c0_132 = arith.constant 0 : index
      %208 = vector.load %arg19[%c3_130, %c0_131, %c0_132] : memref<4x8x1xf32, #tpu.memory_space<vmem>>, vector<1x8x1xf32>
      %209 = vector.shape_cast %208 : vector<1x8x1xf32> to vector<8x1xf32>
      %210 = tpu.reciprocal %209 {approx = true} : vector<8x1xf32> -> vector<8x1xf32>
      %211 = vector.broadcast %210 : vector<8x1xf32> to vector<8x8xf32>
      %212 = arith.mulf %207, %211 : vector<8x8xf32>
      %213 = tpu.concatenate %191, %198, %205, %212 in 1 : vector<8x8xf32>, vector<8x8xf32>, vector<8x8xf32>, vector<8x8xf32> -> vector<8x32xf32>
      %214 = arith.truncf %213 : vector<8x32xf32> to vector<8x32xbf16>
      %c0_133 = arith.constant 0 : index
      %c0_134 = arith.constant 0 : index
      %215 = vector.load %arg12[%c0_133, %c0_134] : memref<32x32xbf16, #tpu.memory_space<vmem>>, vector<32x32xbf16>
      %cst_135 = arith.constant dense<0.000000e+00> : vector<8x32xf32>
      %216 = tpu.matmul %214, %215, %cst_135 {dimension_numbers = #tpu.dot_dimension_numbers<[1], [0], [0], [1], [0, 0, 1, 1], [], []>} : vector<8x32xbf16>, vector<32x32xbf16>, vector<8x32xf32> -> vector<8x32xf32>
      %c0_136 = arith.constant 0 : index
      %c0_137 = arith.constant 0 : index
      %217 = vector.load %arg13[%c0_136, %c0_137] : memref<1x32xf32, #tpu.memory_space<vmem>>, vector<1x32xf32>
      %218 = vector.broadcast %217 : vector<1x32xf32> to vector<8x32xf32>
      %219 = arith.addf %216, %218 : vector<8x32xf32>
      %c0_138 = arith.constant 0 : index
      %c0_139 = arith.constant 0 : index
      %c0_140 = arith.constant 0 : index
      %220 = vector.load %arg4[%c0_138, %c0_139, %c0_140] : memref<1x8x32xbf16, #tpu.memory_space<vmem>>, vector<1x8x32xbf16>
      %221 = vector.shape_cast %220 : vector<1x8x32xbf16> to vector<8x32xbf16>
      %222 = arith.extf %221 : vector<8x32xbf16> to vector<8x32xf32>
      %223 = arith.addf %222, %219 : vector<8x32xf32>
      %cst_141 = arith.constant dense<0.000000e+00> : vector<8xf32>
      %224 = vector.multi_reduction <add>, %223, %cst_141 [1] : vector<8x32xf32> to vector<8xf32>
      %225 = vector.shape_cast %224 : vector<8xf32> to vector<8x1xf32>
      %cst_142 = arith.constant 3.200000e+01 : f32
      %226 = vector.broadcast %cst_142 : f32 to vector<8x1xf32>
      %227 = arith.divf %225, %226 : vector<8x1xf32>
      %228 = vector.broadcast %227 : vector<8x1xf32> to vector<8x32xf32>
      %229 = arith.subf %223, %228 : vector<8x32xf32>
      %230 = arith.mulf %229, %229 : vector<8x32xf32>
      %cst_143 = arith.constant dense<0.000000e+00> : vector<8xf32>
      %231 = vector.multi_reduction <add>, %230, %cst_143 [1] : vector<8x32xf32> to vector<8xf32>
      %232 = vector.shape_cast %231 : vector<8xf32> to vector<8x1xf32>
      %cst_144 = arith.constant 3.200000e+01 : f32
      %233 = vector.broadcast %cst_144 : f32 to vector<8x1xf32>
      %234 = arith.divf %232, %233 : vector<8x1xf32>
      %235 = vector.broadcast %227 : vector<8x1xf32> to vector<8x32xf32>
      %236 = arith.subf %223, %235 : vector<8x32xf32>
      %cst_145 = arith.constant 9.99999974E-6 : f32
      %237 = vector.broadcast %cst_145 : f32 to vector<8x1xf32>
      %238 = arith.addf %234, %237 : vector<8x1xf32>
      %239 = math.rsqrt %238 : vector<8x1xf32>
      %240 = vector.broadcast %239 : vector<8x1xf32> to vector<8x32xf32>
      %241 = arith.mulf %236, %240 : vector<8x32xf32>
      %c0_146 = arith.constant 0 : index
      %c0_147 = arith.constant 0 : index
      %242 = vector.load %arg14[%c0_146, %c0_147] : memref<1x32xf32, #tpu.memory_space<vmem>>, vector<1x32xf32>
      %243 = vector.broadcast %242 : vector<1x32xf32> to vector<8x32xf32>
      %244 = arith.mulf %241, %243 : vector<8x32xf32>
      %c0_148 = arith.constant 0 : index
      %c0_149 = arith.constant 0 : index
      %245 = vector.load %arg15[%c0_148, %c0_149] : memref<1x32xf32, #tpu.memory_space<vmem>>, vector<1x32xf32>
      %246 = vector.broadcast %245 : vector<1x32xf32> to vector<8x32xf32>
      %247 = arith.addf %244, %246 : vector<8x32xf32>
      %248 = arith.truncf %247 : vector<8x32xf32> to vector<8x32xbf16>
      %c0_150 = arith.constant 0 : index
      %c0_151 = arith.constant 0 : index
      %c0_152 = arith.constant 0 : index
      %249 = vector.load %arg16[%c0_150, %c0_151, %c0_152] : memref<1x8x32xbf16, #tpu.memory_space<vmem>>, vector<1x8x32xbf16>
      %250 = vector.shape_cast %249 : vector<1x8x32xbf16> to vector<8x32xbf16>
      %251 = vector.shape_cast %248 : vector<8x32xbf16> to vector<1x8x32xbf16>
      tpu.vector_store %arg16[%c0_150, %c0_151, %c0_152], %251 {strides = array<i32>} : memref<1x8x32xbf16, #tpu.memory_space<vmem>>, vector<1x8x32xbf16>,
    } else {
    }
    return
  }
  func.func @transform_0(%arg0: i32, %arg1: i32, %arg2: i32) -> (i32, i32, i32) {
    %c0_i32 = arith.constant 0 : i32
    %c0_i32_0 = arith.constant 0 : i32
    return %arg0, %c0_i32, %arg2 : i32, i32, i32
  }
  func.func @transform_1(%arg0: i32, %arg1: i32, %arg2: i32) -> (i32, i32, i32) {
    %c0_i32 = arith.constant 0 : i32
    %c0_i32_0 = arith.constant 0 : i32
    return %arg0, %arg1, %c0_i32 : i32, i32, i32
  }
  func.func @transform_2(%arg0: i32, %arg1: i32, %arg2: i32) -> (i32, i32, i32) {
    %c0_i32 = arith.constant 0 : i32
    %c0_i32_0 = arith.constant 0 : i32
    return %arg0, %arg2, %c0_i32 : i32, i32, i32
  }
  func.func @transform_3(%arg0: i32, %arg1: i32, %arg2: i32) -> (i32, i32) {
    %c0_i32 = arith.constant 0 : i32
    %c0_i32_0 = arith.constant 0 : i32
    %c0_i32_1 = arith.constant 0 : i32
    return %c0_i32, %c0_i32_0 : i32, i32
  }
  func.func @transform_4(%arg0: i32, %arg1: i32, %arg2: i32) -> (i32, i32) {
    %c0_i32 = arith.constant 0 : i32
    %c0_i32_0 = arith.constant 0 : i32
    %c0_i32_1 = arith.constant 0 : i32
    return %c0_i32, %c0_i32_0 : i32, i32
  }
  func.func @transform_5(%arg0: i32, %arg1: i32, %arg2: i32) -> (i32, i32) {
    %c0_i32 = arith.constant 0 : i32
    %c0_i32_0 = arith.constant 0 : i32
    %c0_i32_1 = arith.constant 0 : i32
    return %c0_i32, %c0_i32_0 : i32, i32
  }
  func.func @transform_6(%arg0: i32, %arg1: i32, %arg2: i32) -> (i32, i32) {
    %c0_i32 = arith.constant 0 : i32
    %c0_i32_0 = arith.constant 0 : i32
    %c0_i32_1 = arith.constant 0 : i32
    return %c0_i32, %c0_i32_0 : i32, i32
  }
  func.func @transform_7(%arg0: i32, %arg1: i32, %arg2: i32) -> (i32, i32) {
    %c0_i32 = arith.constant 0 : i32
    %c0_i32_0 = arith.constant 0 : i32
    %c0_i32_1 = arith.constant 0 : i32
    return %c0_i32, %c0_i32_0 : i32, i32
  }
  func.func @transform_8(%arg0: i32, %arg1: i32, %arg2: i32) -> (i32, i32) {
    %c0_i32 = arith.constant 0 : i32
    %c0_i32_0 = arith.constant 0 : i32
    %c0_i32_1 = arith.constant 0 : i32
    return %c0_i32, %c0_i32_0 : i32, i32
  }
  func.func @transform_9(%arg0: i32, %arg1: i32, %arg2: i32) -> (i32, i32) {
    %c0_i32 = arith.constant 0 : i32
    %c0_i32_0 = arith.constant 0 : i32
    %c0_i32_1 = arith.constant 0 : i32
    return %c0_i32, %c0_i32_0 : i32, i32
  }
  func.func @transform_10(%arg0: i32, %arg1: i32, %arg2: i32) -> (i32, i32) {
    %c0_i32 = arith.constant 0 : i32
    %c0_i32_0 = arith.constant 0 : i32
    %c0_i32_1 = arith.constant 0 : i32
    return %c0_i32, %c0_i32_0 : i32, i32
  }
  func.func @transform_11(%arg0: i32, %arg1: i32, %arg2: i32) -> (i32, i32) {
    %c0_i32 = arith.constant 0 : i32
    %c0_i32_0 = arith.constant 0 : i32
    %c0_i32_1 = arith.constant 0 : i32
    return %c0_i32, %c0_i32_0 : i32, i32
  }
  func.func @transform_12(%arg0: i32, %arg1: i32, %arg2: i32) -> (i32, i32) {
    %c0_i32 = arith.constant 0 : i32
    %c0_i32_0 = arith.constant 0 : i32
    %c0_i32_1 = arith.constant 0 : i32
    return %c0_i32, %c0_i32_0 : i32, i32
  }
  func.func @transform_13(%arg0: i32, %arg1: i32, %arg2: i32) -> (i32, i32, i32) {
    %c0_i32 = arith.constant 0 : i32
    %c0_i32_0 = arith.constant 0 : i32
    return %arg0, %arg1, %c0_i32 : i32, i32, i32
  }
}

module attributes {stable_mosaic.version = 11 : i64} {
  func.func @_ffn_block_kernel(%arg0: i32, %arg1: i32, %arg2: memref<16x32xbf16, #tpu.memory_space<vmem>>, %arg3: memref<32x64xbf16, #tpu.memory_space<vmem>>, %arg4: memref<1x64xf32, #tpu.memory_space<vmem>>, %arg5: memref<64x32xbf16, #tpu.memory_space<vmem>>, %arg6: memref<1x32xf32, #tpu.memory_space<vmem>>, %arg7: memref<1x32xf32, #tpu.memory_space<vmem>>, %arg8: memref<1x32xf32, #tpu.memory_space<vmem>>, %arg9: memref<16x32xbf16, #tpu.memory_space<vmem>>, %arg10: memref<16x32xf32, #tpu.memory_space<vmem>>) attributes {dimension_semantics = [#tpu.dimension_semantics<parallel>, #tpu.dimension_semantics<arbitrary>], iteration_bounds = array<i64: 1, 1>, scalar_prefetch = 0 : i64, scratch_operands = 1 : i64, tpu.core_type = #tpu.core_type<tc>, window_params = [{transform_indices = @transform_0, window_bounds = array<i64: 16, 32>}, {transform_indices = @transform_1, window_bounds = array<i64: 32, 64>}, {transform_indices = @transform_2, window_bounds = array<i64: 1, 64>}, {transform_indices = @transform_3, window_bounds = array<i64: 64, 32>}, {pipeline_mode = #tpu.pipeline_mode<synchronous>, transform_indices = @transform_4, window_bounds = array<i64: 1, 32>}, {pipeline_mode = #tpu.pipeline_mode<synchronous>, transform_indices = @transform_5, window_bounds = array<i64: 1, 32>}, {pipeline_mode = #tpu.pipeline_mode<synchronous>, transform_indices = @transform_6, window_bounds = array<i64: 1, 32>}, {transform_indices = @transform_7, window_bounds = array<i64: 16, 32>}]} {
    %c0_i32 = arith.constant 0 : i32
    %0 = arith.cmpi eq, %arg1, %c0_i32 : i32
    %1 = arith.extui %0 : i1 to i32
    %c0_i32_0 = arith.constant 0 : i32
    %2 = arith.cmpi ne, %1, %c0_i32_0 : i32
    scf.if %2 {
      %cst_16 = arith.constant 0.000000e+00 : f32
      %20 = vector.broadcast %cst_16 : f32 to vector<16x32xf32>
      %c0_17 = arith.constant 0 : index
      %c0_18 = arith.constant 0 : index
      %21 = vector.load %arg10[%c0_17, %c0_18] : memref<16x32xf32, #tpu.memory_space<vmem>>, vector<16x32xf32>
      tpu.vector_store %arg10[%c0_17, %c0_18], %20 {strides = array<i32>} : memref<16x32xf32, #tpu.memory_space<vmem>>, vector<16x32xf32>,
    } else {
    }
    %c0 = arith.constant 0 : index
    %c0_1 = arith.constant 0 : index
    %3 = vector.load %arg2[%c0, %c0_1] : memref<16x32xbf16, #tpu.memory_space<vmem>>, vector<16x32xbf16>
    %c0_2 = arith.constant 0 : index
    %c0_3 = arith.constant 0 : index
    %4 = vector.load %arg3[%c0_2, %c0_3] : memref<32x64xbf16, #tpu.memory_space<vmem>>, vector<32x64xbf16>
    %cst = arith.constant dense<0.000000e+00> : vector<16x64xf32>
    %5 = tpu.matmul %3, %4, %cst {dimension_numbers = #tpu.dot_dimension_numbers<[1], [0], [0], [1], [0, 0, 1, 1], [], []>} : vector<16x32xbf16>, vector<32x64xbf16>, vector<16x64xf32> -> vector<16x64xf32>
    %c0_4 = arith.constant 0 : index
    %c0_5 = arith.constant 0 : index
    %6 = vector.load %arg4[%c0_4, %c0_5] : memref<1x64xf32, #tpu.memory_space<vmem>>, vector<1x64xf32>
    %7 = vector.broadcast %6 : vector<1x64xf32> to vector<16x64xf32>
    %8 = arith.addf %5, %7 : vector<16x64xf32>
    %cst_6 = arith.constant 0.000000e+00 : f32
    %9 = vector.broadcast %cst_6 : f32 to vector<16x64xf32>
    %10 = arith.maximumf %8, %9 : vector<16x64xf32>
    %c0_7 = arith.constant 0 : index
    %c0_8 = arith.constant 0 : index
    %11 = vector.load %arg10[%c0_7, %c0_8] : memref<16x32xf32, #tpu.memory_space<vmem>>, vector<16x32xf32>
    %12 = arith.truncf %10 : vector<16x64xf32> to vector<16x64xbf16>
    %c0_9 = arith.constant 0 : index
    %c0_10 = arith.constant 0 : index
    %13 = vector.load %arg5[%c0_9, %c0_10] : memref<64x32xbf16, #tpu.memory_space<vmem>>, vector<64x32xbf16>
    %cst_11 = arith.constant dense<0.000000e+00> : vector<16x32xf32>
    %14 = tpu.matmul %12, %13, %cst_11 {dimension_numbers = #tpu.dot_dimension_numbers<[1], [0], [0], [1], [0, 0, 1, 1], [], []>} : vector<16x64xbf16>, vector<64x32xbf16>, vector<16x32xf32> -> vector<16x32xf32>
    %15 = arith.addf %11, %14 : vector<16x32xf32>
    %c0_12 = arith.constant 0 : index
    %c0_13 = arith.constant 0 : index
    %16 = vector.load %arg10[%c0_12, %c0_13] : memref<16x32xf32, #tpu.memory_space<vmem>>, vector<16x32xf32>
    tpu.vector_store %arg10[%c0_12, %c0_13], %15 {strides = array<i32>} : memref<16x32xf32, #tpu.memory_space<vmem>>, vector<16x32xf32>,
    %c0_i32_14 = arith.constant 0 : i32
    %17 = arith.cmpi eq, %arg1, %c0_i32_14 : i32
    %18 = arith.extui %17 : i1 to i32
    %c0_i32_15 = arith.constant 0 : i32
    %19 = arith.cmpi ne, %18, %c0_i32_15 : i32
    scf.if %19 {
      %20 = arith.extf %3 : vector<16x32xbf16> to vector<16x32xf32>
      %c0_16 = arith.constant 0 : index
      %c0_17 = arith.constant 0 : index
      %21 = vector.load %arg10[%c0_16, %c0_17] : memref<16x32xf32, #tpu.memory_space<vmem>>, vector<16x32xf32>
      %22 = arith.addf %20, %21 : vector<16x32xf32>
      %c0_18 = arith.constant 0 : index
      %c0_19 = arith.constant 0 : index
      %23 = vector.load %arg6[%c0_18, %c0_19] : memref<1x32xf32, #tpu.memory_space<vmem>>, vector<1x32xf32>
      %24 = vector.broadcast %23 : vector<1x32xf32> to vector<16x32xf32>
      %25 = arith.addf %22, %24 : vector<16x32xf32>
      %cst_20 = arith.constant dense<0.000000e+00> : vector<16xf32>
      %26 = vector.multi_reduction <add>, %25, %cst_20 [1] : vector<16x32xf32> to vector<16xf32>
      %27 = vector.shape_cast %26 : vector<16xf32> to vector<16x1xf32>
      %cst_21 = arith.constant 3.200000e+01 : f32
      %28 = vector.broadcast %cst_21 : f32 to vector<16x1xf32>
      %29 = arith.divf %27, %28 : vector<16x1xf32>
      %30 = vector.broadcast %29 : vector<16x1xf32> to vector<16x32xf32>
      %31 = arith.subf %25, %30 : vector<16x32xf32>
      %32 = arith.mulf %31, %31 : vector<16x32xf32>
      %cst_22 = arith.constant dense<0.000000e+00> : vector<16xf32>
      %33 = vector.multi_reduction <add>, %32, %cst_22 [1] : vector<16x32xf32> to vector<16xf32>
      %34 = vector.shape_cast %33 : vector<16xf32> to vector<16x1xf32>
      %cst_23 = arith.constant 3.200000e+01 : f32
      %35 = vector.broadcast %cst_23 : f32 to vector<16x1xf32>
      %36 = arith.divf %34, %35 : vector<16x1xf32>
      %37 = vector.broadcast %29 : vector<16x1xf32> to vector<16x32xf32>
      %38 = arith.subf %25, %37 : vector<16x32xf32>
      %cst_24 = arith.constant 9.99999974E-6 : f32
      %39 = vector.broadcast %cst_24 : f32 to vector<16x1xf32>
      %40 = arith.addf %36, %39 : vector<16x1xf32>
      %41 = math.rsqrt %40 : vector<16x1xf32>
      %42 = vector.broadcast %41 : vector<16x1xf32> to vector<16x32xf32>
      %43 = arith.mulf %38, %42 : vector<16x32xf32>
      %c0_25 = arith.constant 0 : index
      %c0_26 = arith.constant 0 : index
      %44 = vector.load %arg7[%c0_25, %c0_26] : memref<1x32xf32, #tpu.memory_space<vmem>>, vector<1x32xf32>
      %45 = vector.broadcast %44 : vector<1x32xf32> to vector<16x32xf32>
      %46 = arith.mulf %43, %45 : vector<16x32xf32>
      %c0_27 = arith.constant 0 : index
      %c0_28 = arith.constant 0 : index
      %47 = vector.load %arg8[%c0_27, %c0_28] : memref<1x32xf32, #tpu.memory_space<vmem>>, vector<1x32xf32>
      %48 = vector.broadcast %47 : vector<1x32xf32> to vector<16x32xf32>
      %49 = arith.addf %46, %48 : vector<16x32xf32>
      %50 = arith.truncf %49 : vector<16x32xf32> to vector<16x32xbf16>
      %c0_29 = arith.constant 0 : index
      %c0_30 = arith.constant 0 : index
      %51 = vector.load %arg9[%c0_29, %c0_30] : memref<16x32xbf16, #tpu.memory_space<vmem>>, vector<16x32xbf16>
      tpu.vector_store %arg9[%c0_29, %c0_30], %50 {strides = array<i32>} : memref<16x32xbf16, #tpu.memory_space<vmem>>, vector<16x32xbf16>,
    } else {
    }
    return
  }
  func.func @transform_0(%arg0: i32, %arg1: i32) -> (i32, i32) {
    %c0_i32 = arith.constant 0 : i32
    %c0_i32_0 = arith.constant 0 : i32
    return %arg0, %c0_i32 : i32, i32
  }
  func.func @transform_1(%arg0: i32, %arg1: i32) -> (i32, i32) {
    %c0_i32 = arith.constant 0 : i32
    %c0_i32_0 = arith.constant 0 : i32
    return %c0_i32, %arg1 : i32, i32
  }
  func.func @transform_2(%arg0: i32, %arg1: i32) -> (i32, i32) {
    %c0_i32 = arith.constant 0 : i32
    %c0_i32_0 = arith.constant 0 : i32
    return %c0_i32, %arg1 : i32, i32
  }
  func.func @transform_3(%arg0: i32, %arg1: i32) -> (i32, i32) {
    %c0_i32 = arith.constant 0 : i32
    %c0_i32_0 = arith.constant 0 : i32
    return %arg1, %c0_i32 : i32, i32
  }
  func.func @transform_4(%arg0: i32, %arg1: i32) -> (i32, i32) {
    %c0_i32 = arith.constant 0 : i32
    %c0_i32_0 = arith.constant 0 : i32
    %c0_i32_1 = arith.constant 0 : i32
    return %c0_i32, %c0_i32_0 : i32, i32
  }
  func.func @transform_5(%arg0: i32, %arg1: i32) -> (i32, i32) {
    %c0_i32 = arith.constant 0 : i32
    %c0_i32_0 = arith.constant 0 : i32
    %c0_i32_1 = arith.constant 0 : i32
    return %c0_i32, %c0_i32_0 : i32, i32
  }
  func.func @transform_6(%arg0: i32, %arg1: i32) -> (i32, i32) {
    %c0_i32 = arith.constant 0 : i32
    %c0_i32_0 = arith.constant 0 : i32
    %c0_i32_1 = arith.constant 0 : i32
    return %c0_i32, %c0_i32_0 : i32, i32
  }
  func.func @transform_7(%arg0: i32, %arg1: i32) -> (i32, i32) {
    %c0_i32 = arith.constant 0 : i32
    %c0_i32_0 = arith.constant 0 : i32
    return %arg0, %c0_i32 : i32, i32
  }
}

module attributes {stable_mosaic.version = 11 : i64} {
  func.func @_logits_softmax_kernel(%arg0: i32, %arg1: memref<16x32xbf16, #tpu.memory_space<vmem>>, %arg2: memref<32x32xbf16, #tpu.memory_space<vmem>>, %arg3: memref<16x32xf32, #tpu.memory_space<vmem>>) attributes {dimension_semantics = [#tpu.dimension_semantics<parallel>], iteration_bounds = array<i64: 1>, scalar_prefetch = 0 : i64, scratch_operands = 0 : i64, tpu.core_type = #tpu.core_type<tc>, window_params = [{transform_indices = @transform_0, window_bounds = array<i64: 16, 32>}, {pipeline_mode = #tpu.pipeline_mode<synchronous>, transform_indices = @transform_1, window_bounds = array<i64: 32, 32>}, {transform_indices = @transform_2, window_bounds = array<i64: 16, 32>}]} {
    %c0 = arith.constant 0 : index
    %c0_0 = arith.constant 0 : index
    %0 = vector.load %arg1[%c0, %c0_0] : memref<16x32xbf16, #tpu.memory_space<vmem>>, vector<16x32xbf16>
    %c0_1 = arith.constant 0 : index
    %c0_2 = arith.constant 0 : index
    %1 = vector.load %arg2[%c0_1, %c0_2] : memref<32x32xbf16, #tpu.memory_space<vmem>>, vector<32x32xbf16>
    %cst = arith.constant dense<0.000000e+00> : vector<16x32xf32>
    %2 = tpu.matmul %0, %1, %cst {dimension_numbers = #tpu.dot_dimension_numbers<[1], [1], [0], [0], [0, 0, 1, 0], [], []>} : vector<16x32xbf16>, vector<32x32xbf16>, vector<16x32xf32> -> vector<16x32xf32>
    %cst_3 = arith.constant dense<0xFF800000> : vector<16xf32>
    %3 = vector.multi_reduction <maximumf>, %2, %cst_3 [1] : vector<16x32xf32> to vector<16xf32>
    %4 = vector.shape_cast %3 : vector<16xf32> to vector<16x1xf32>
    %5 = vector.broadcast %4 : vector<16x1xf32> to vector<16x32xf32>
    %6 = arith.subf %2, %5 : vector<16x32xf32>
    %7 = math.exp %6 : vector<16x32xf32>
    %cst_4 = arith.constant dense<0.000000e+00> : vector<16xf32>
    %8 = vector.multi_reduction <add>, %7, %cst_4 [1] : vector<16x32xf32> to vector<16xf32>
    %9 = vector.shape_cast %8 : vector<16xf32> to vector<16x1xf32>
    %10 = vector.broadcast %9 : vector<16x1xf32> to vector<16x32xf32>
    %11 = arith.divf %7, %10 : vector<16x32xf32>
    %c0_5 = arith.constant 0 : index
    %c0_6 = arith.constant 0 : index
    %12 = vector.load %arg3[%c0_5, %c0_6] : memref<16x32xf32, #tpu.memory_space<vmem>>, vector<16x32xf32>
    tpu.vector_store %arg3[%c0_5, %c0_6], %11 {strides = array<i32>} : memref<16x32xf32, #tpu.memory_space<vmem>>, vector<16x32xf32>,
    return
  }
  func.func @transform_0(%arg0: i32) -> (i32, i32) {
    %c0_i32 = arith.constant 0 : i32
    %c0_i32_0 = arith.constant 0 : i32
    return %arg0, %c0_i32 : i32, i32
  }
  func.func @transform_1(%arg0: i32) -> (i32, i32) {
    %c0_i32 = arith.constant 0 : i32
    %c0_i32_0 = arith.constant 0 : i32
    %c0_i32_1 = arith.constant 0 : i32
    return %c0_i32, %c0_i32_0 : i32, i32
  }
  func.func @transform_2(%arg0: i32) -> (i32, i32) {
    %c0_i32 = arith.constant 0 : i32
    %c0_i32_0 = arith.constant 0 : i32
    return %arg0, %c0_i32 : i32, i32
  }
}

module attributes {stable_mosaic.version = 11 : i64} {
  func.func @_mha_flash_kernel(%arg0: i32, %arg1: i32, %arg2: i32, %arg3: memref<1x1x8xi32, #tpu.memory_space<vmem>>, %arg4: memref<1x8x32xbf16, #tpu.memory_space<vmem>>, %arg5: memref<1x8x32xbf16, #tpu.memory_space<vmem>>, %arg6: memref<32x32xbf16, #tpu.memory_space<vmem>>, %arg7: memref<1x32xf32, #tpu.memory_space<vmem>>, %arg8: memref<32x32xbf16, #tpu.memory_space<vmem>>, %arg9: memref<1x32xf32, #tpu.memory_space<vmem>>, %arg10: memref<32x32xbf16, #tpu.memory_space<vmem>>, %arg11: memref<1x32xf32, #tpu.memory_space<vmem>>, %arg12: memref<32x32xbf16, #tpu.memory_space<vmem>>, %arg13: memref<1x32xf32, #tpu.memory_space<vmem>>, %arg14: memref<1x32xf32, #tpu.memory_space<vmem>>, %arg15: memref<1x32xf32, #tpu.memory_space<vmem>>, %arg16: memref<1x8x32xbf16, #tpu.memory_space<vmem>>, %arg17: memref<8x32xbf16, #tpu.memory_space<vmem>>, %arg18: memref<4x8x1xf32, #tpu.memory_space<vmem>>, %arg19: memref<4x8x1xf32, #tpu.memory_space<vmem>>, %arg20: memref<4x8x8xf32, #tpu.memory_space<vmem>>) attributes {dimension_semantics = [#tpu.dimension_semantics<parallel>, #tpu.dimension_semantics<parallel>, #tpu.dimension_semantics<arbitrary>], iteration_bounds = array<i64: 2, 1, 1>, scalar_prefetch = 0 : i64, scratch_operands = 4 : i64, tpu.core_type = #tpu.core_type<tc>, window_params = [{transform_indices = @transform_0, window_bounds = array<i64: 1, 1, 8>}, {transform_indices = @transform_1, window_bounds = array<i64: 1, 8, 32>}, {transform_indices = @transform_2, window_bounds = array<i64: 1, 8, 32>}, {pipeline_mode = #tpu.pipeline_mode<synchronous>, transform_indices = @transform_3, window_bounds = array<i64: 32, 32>}, {pipeline_mode = #tpu.pipeline_mode<synchronous>, transform_indices = @transform_4, window_bounds = array<i64: 1, 32>}, {pipeline_mode = #tpu.pipeline_mode<synchronous>, transform_indices = @transform_5, window_bounds = array<i64: 32, 32>}, {pipeline_mode = #tpu.pipeline_mode<synchronous>, transform_indices = @transform_6, window_bounds = array<i64: 1, 32>}, {pipeline_mode = #tpu.pipeline_mode<synchronous>, transform_indices = @transform_7, window_bounds = array<i64: 32, 32>}, {pipeline_mode = #tpu.pipeline_mode<synchronous>, transform_indices = @transform_8, window_bounds = array<i64: 1, 32>}, {pipeline_mode = #tpu.pipeline_mode<synchronous>, transform_indices = @transform_9, window_bounds = array<i64: 32, 32>}, {pipeline_mode = #tpu.pipeline_mode<synchronous>, transform_indices = @transform_10, window_bounds = array<i64: 1, 32>}, {pipeline_mode = #tpu.pipeline_mode<synchronous>, transform_indices = @transform_11, window_bounds = array<i64: 1, 32>}, {pipeline_mode = #tpu.pipeline_mode<synchronous>, transform_indices = @transform_12, window_bounds = array<i64: 1, 32>}, {transform_indices = @transform_13, window_bounds = array<i64: 1, 8, 32>}]} {
    %c0_i32 = arith.constant 0 : i32
    %0 = arith.cmpi eq, %arg2, %c0_i32 : i32
    %1 = arith.extui %0 : i1 to i32
    %c0_i32_0 = arith.constant 0 : i32
    %2 = arith.cmpi ne, %1, %c0_i32_0 : i32
    scf.if %2 {
      %c0_115 = arith.constant 0 : index
      %c0_116 = arith.constant 0 : index
      %c0_117 = arith.constant 0 : index
      %205 = vector.load %arg4[%c0_115, %c0_116, %c0_117] : memref<1x8x32xbf16, #tpu.memory_space<vmem>>, vector<1x8x32xbf16>
      %206 = vector.shape_cast %205 : vector<1x8x32xbf16> to vector<8x32xbf16>
      %c0_118 = arith.constant 0 : index
      %c0_119 = arith.constant 0 : index
      %207 = vector.load %arg6[%c0_118, %c0_119] : memref<32x32xbf16, #tpu.memory_space<vmem>>, vector<32x32xbf16>
      %cst_120 = arith.constant dense<0.000000e+00> : vector<8x32xf32>
      %208 = tpu.matmul %206, %207, %cst_120 {dimension_numbers = #tpu.dot_dimension_numbers<[1], [0], [0], [1], [0, 0, 1, 1], [], []>} : vector<8x32xbf16>, vector<32x32xbf16>, vector<8x32xf32> -> vector<8x32xf32>
      %c0_121 = arith.constant 0 : index
      %c0_122 = arith.constant 0 : index
      %209 = vector.load %arg7[%c0_121, %c0_122] : memref<1x32xf32, #tpu.memory_space<vmem>>, vector<1x32xf32>
      %210 = vector.broadcast %209 : vector<1x32xf32> to vector<8x32xf32>
      %211 = arith.addf %208, %210 : vector<8x32xf32>
      %cst_123 = arith.constant 0.353553385 : f32
      %212 = vector.broadcast %cst_123 : f32 to vector<8x32xf32>
      %213 = arith.mulf %211, %212 : vector<8x32xf32>
      %214 = arith.truncf %213 : vector<8x32xf32> to vector<8x32xbf16>
      %c0_124 = arith.constant 0 : index
      %c0_125 = arith.constant 0 : index
      %215 = vector.load %arg17[%c0_124, %c0_125] : memref<8x32xbf16, #tpu.memory_space<vmem>>, vector<8x32xbf16>
      tpu.vector_store %arg17[%c0_124, %c0_125], %214 {strides = array<i32>} : memref<8x32xbf16, #tpu.memory_space<vmem>>, vector<8x32xbf16>,
      %cst_126 = arith.constant -1.000000e+30 : f32
      %216 = vector.broadcast %cst_126 : f32 to vector<4x8x1xf32>
      %c0_127 = arith.constant 0 : index
      %c0_128 = arith.constant 0 : index
      %c0_129 = arith.constant 0 : index
      %217 = vector.load %arg18[%c0_127, %c0_128, %c0_129] : memref<4x8x1xf32, #tpu.memory_space<vmem>>, vector<4x8x1xf32>
      tpu.vector_store %arg18[%c0_127, %c0_128, %c0_129], %216 {strides = array<i32>} : memref<4x8x1xf32, #tpu.memory_space<vmem>>, vector<4x8x1xf32>,
      %cst_130 = arith.constant 0.000000e+00 : f32
      %218 = vector.broadcast %cst_130 : f32 to vector<4x8x1xf32>
      %c0_131 = arith.constant 0 : index
      %c0_132 = arith.constant 0 : index
      %c0_133 = arith.constant 0 : index
      %219 = vector.load %arg19[%c0_131, %c0_132, %c0_133] : memref<4x8x1xf32, #tpu.memory_space<vmem>>, vector<4x8x1xf32>
      tpu.vector_store %arg19[%c0_131, %c0_132, %c0_133], %218 {strides = array<i32>} : memref<4x8x1xf32, #tpu.memory_space<vmem>>, vector<4x8x1xf32>,
      %cst_134 = arith.constant 0.000000e+00 : f32
      %220 = vector.broadcast %cst_134 : f32 to vector<4x8x8xf32>
      %c0_135 = arith.constant 0 : index
      %c0_136 = arith.constant 0 : index
      %c0_137 = arith.constant 0 : index
      %221 = vector.load %arg20[%c0_135, %c0_136, %c0_137] : memref<4x8x8xf32, #tpu.memory_space<vmem>>, vector<4x8x8xf32>
      tpu.vector_store %arg20[%c0_135, %c0_136, %c0_137], %220 {strides = array<i32>} : memref<4x8x8xf32, #tpu.memory_space<vmem>>, vector<4x8x8xf32>,
    } else {
    }
    %c0 = arith.constant 0 : index
    %c0_1 = arith.constant 0 : index
    %c0_2 = arith.constant 0 : index
    %3 = vector.load %arg5[%c0, %c0_1, %c0_2] : memref<1x8x32xbf16, #tpu.memory_space<vmem>>, vector<1x8x32xbf16>
    %4 = vector.shape_cast %3 : vector<1x8x32xbf16> to vector<8x32xbf16>
    %c0_3 = arith.constant 0 : index
    %c0_4 = arith.constant 0 : index
    %5 = vector.load %arg8[%c0_3, %c0_4] : memref<32x32xbf16, #tpu.memory_space<vmem>>, vector<32x32xbf16>
    %cst = arith.constant dense<0.000000e+00> : vector<8x32xf32>
    %6 = tpu.matmul %4, %5, %cst {dimension_numbers = #tpu.dot_dimension_numbers<[1], [0], [0], [1], [0, 0, 1, 1], [], []>} : vector<8x32xbf16>, vector<32x32xbf16>, vector<8x32xf32> -> vector<8x32xf32>
    %c0_5 = arith.constant 0 : index
    %c0_6 = arith.constant 0 : index
    %7 = vector.load %arg9[%c0_5, %c0_6] : memref<1x32xf32, #tpu.memory_space<vmem>>, vector<1x32xf32>
    %8 = vector.broadcast %7 : vector<1x32xf32> to vector<8x32xf32>
    %9 = arith.addf %6, %8 : vector<8x32xf32>
    %10 = arith.truncf %9 : vector<8x32xf32> to vector<8x32xbf16>
    %c0_7 = arith.constant 0 : index
    %c0_8 = arith.constant 0 : index
    %11 = vector.load %arg10[%c0_7, %c0_8] : memref<32x32xbf16, #tpu.memory_space<vmem>>, vector<32x32xbf16>
    %cst_9 = arith.constant dense<0.000000e+00> : vector<8x32xf32>
    %12 = tpu.matmul %4, %11, %cst_9 {dimension_numbers = #tpu.dot_dimension_numbers<[1], [0], [0], [1], [0, 0, 1, 1], [], []>} : vector<8x32xbf16>, vector<32x32xbf16>, vector<8x32xf32> -> vector<8x32xf32>
    %c0_10 = arith.constant 0 : index
    %c0_11 = arith.constant 0 : index
    %13 = vector.load %arg11[%c0_10, %c0_11] : memref<1x32xf32, #tpu.memory_space<vmem>>, vector<1x32xf32>
    %14 = vector.broadcast %13 : vector<1x32xf32> to vector<8x32xf32>
    %15 = arith.addf %12, %14 : vector<8x32xf32>
    %16 = arith.truncf %15 : vector<8x32xf32> to vector<8x32xbf16>
    %c0_12 = arith.constant 0 : index
    %c0_13 = arith.constant 0 : index
    %17 = vector.load %arg17[%c0_12, %c0_13] : memref<8x32xbf16, #tpu.memory_space<vmem>>, vector<8x32xbf16>
    %c0_14 = arith.constant 0 : index
    %c0_15 = arith.constant 0 : index
    %c0_16 = arith.constant 0 : index
    %18 = vector.load %arg3[%c0_14, %c0_15, %c0_16] : memref<1x1x8xi32, #tpu.memory_space<vmem>>, vector<1x1x8xi32>
    %19 = vector.shape_cast %18 : vector<1x1x8xi32> to vector<1x8xi32>
    %c0_i32_17 = arith.constant 0 : i32
    %20 = vector.broadcast %c0_i32_17 : i32 to vector<1x8xi32>
    %21 = arith.cmpi ne, %19, %20 : vector<1x8xi32>
    %22 = tpu.iota {dimensions = array<i32: 0>} : vector<8x8xi32>
    %c8_i32 = arith.constant 8 : i32
    %23 = arith.muli %arg1, %c8_i32 : i32
    %24 = vector.broadcast %23 : i32 to vector<8x8xi32>
    %25 = arith.addi %22, %24 : vector<8x8xi32>
    %26 = tpu.iota {dimensions = array<i32: 1>} : vector<8x8xi32>
    %c8_i32_18 = arith.constant 8 : i32
    %27 = arith.muli %arg2, %c8_i32_18 : i32
    %28 = vector.broadcast %27 : i32 to vector<8x8xi32>
    %29 = arith.addi %26, %28 : vector<8x8xi32>
    %30 = arith.cmpi sgt, %29, %25 : vector<8x8xi32>
    %c8_i32_19 = arith.constant 8 : i32
    %31 = vector.broadcast %c8_i32_19 : i32 to vector<8x8xi32>
    %32 = arith.cmpi slt, %29, %31 : vector<8x8xi32>
    %33 = arith.andi %30, %32 : vector<8x8xi1>
    %34 = vector.extract_strided_slice %17 {offsets = [0, 0], sizes = [8, 8], strides = [1, 1]} : vector<8x32xbf16> to vector<8x8xbf16>
    %35 = vector.extract_strided_slice %10 {offsets = [0, 0], sizes = [8, 8], strides = [1, 1]} : vector<8x32xbf16> to vector<8x8xbf16>
    %36 = vector.extract_strided_slice %16 {offsets = [0, 0], sizes = [8, 8], strides = [1, 1]} : vector<8x32xbf16> to vector<8x8xbf16>
    %cst_20 = arith.constant dense<0.000000e+00> : vector<8x8xf32>
    %37 = tpu.matmul %34, %35, %cst_20 {dimension_numbers = #tpu.dot_dimension_numbers<[1], [1], [0], [0], [0, 0, 1, 0], [], []>} : vector<8x8xbf16>, vector<8x8xbf16>, vector<8x8xf32> -> vector<8x8xf32>
    %cst_21 = arith.constant 0xFF800000 : f32
    %38 = vector.broadcast %cst_21 : f32 to vector<8x8xf32>
    %39 = arith.select %33, %38, %37 : vector<8x8xi1>, vector<8x8xf32>
    %cst_22 = arith.constant -1.000000e+09 : f32
    %40 = vector.shape_cast %21 : vector<1x8xi1> to vector<1x8xi1>
    %41 = vector.broadcast %40 : vector<1x8xi1> to vector<8x8xi1>
    %42 = vector.broadcast %cst_22 : f32 to vector<8x8xf32>
    %43 = arith.select %41, %42, %39 : vector<8x8xi1>, vector<8x8xf32>
    %c0_23 = arith.constant 0 : index
    %c0_24 = arith.constant 0 : index
    %c0_25 = arith.constant 0 : index
    %44 = vector.load %arg18[%c0_23, %c0_24, %c0_25] : memref<4x8x1xf32, #tpu.memory_space<vmem>>, vector<1x8x1xf32>
    %45 = vector.shape_cast %44 : vector<1x8x1xf32> to vector<8x1xf32>
    %cst_26 = arith.constant dense<0xFF800000> : vector<8xf32>
    %46 = vector.multi_reduction <maximumf>, %43, %cst_26 [1] : vector<8x8xf32> to vector<8xf32>
    %47 = vector.shape_cast %46 : vector<8xf32> to vector<8x1xf32>
    %48 = arith.maximumf %45, %47 : vector<8x1xf32>
    %49 = arith.subf %45, %48 : vector<8x1xf32>
    %50 = math.exp %49 : vector<8x1xf32>
    %51 = vector.broadcast %48 : vector<8x1xf32> to vector<8x8xf32>
    %52 = arith.subf %43, %51 : vector<8x8xf32>
    %53 = math.exp %52 : vector<8x8xf32>
    %c0_27 = arith.constant 0 : index
    %c0_28 = arith.constant 0 : index
    %c0_29 = arith.constant 0 : index
    %54 = vector.load %arg19[%c0_27, %c0_28, %c0_29] : memref<4x8x1xf32, #tpu.memory_space<vmem>>, vector<1x8x1xf32>
    %55 = vector.shape_cast %54 : vector<1x8x1xf32> to vector<8x1xf32>
    %56 = arith.mulf %50, %55 : vector<8x1xf32>
    %cst_30 = arith.constant dense<0.000000e+00> : vector<8xf32>
    %57 = vector.multi_reduction <add>, %53, %cst_30 [1] : vector<8x8xf32> to vector<8xf32>
    %58 = vector.shape_cast %57 : vector<8xf32> to vector<8x1xf32>
    %59 = arith.addf %56, %58 : vector<8x1xf32>
    %c0_31 = arith.constant 0 : index
    %c0_32 = arith.constant 0 : index
    %c0_33 = arith.constant 0 : index
    %60 = vector.load %arg19[%c0_31, %c0_32, %c0_33] : memref<4x8x1xf32, #tpu.memory_space<vmem>>, vector<1x8x1xf32>
    %61 = vector.shape_cast %60 : vector<1x8x1xf32> to vector<8x1xf32>
    %62 = vector.shape_cast %59 : vector<8x1xf32> to vector<1x8x1xf32>
    tpu.vector_store %arg19[%c0_31, %c0_32, %c0_33], %62 {strides = array<i32>} : memref<4x8x1xf32, #tpu.memory_space<vmem>>, vector<1x8x1xf32>,
    %c0_34 = arith.constant 0 : index
    %c0_35 = arith.constant 0 : index
    %c0_36 = arith.constant 0 : index
    %63 = vector.load %arg20[%c0_34, %c0_35, %c0_36] : memref<4x8x8xf32, #tpu.memory_space<vmem>>, vector<1x8x8xf32>
    %64 = vector.shape_cast %63 : vector<1x8x8xf32> to vector<8x8xf32>
    %65 = vector.broadcast %50 : vector<8x1xf32> to vector<8x8xf32>
    %66 = arith.mulf %65, %64 : vector<8x8xf32>
    %67 = arith.truncf %53 : vector<8x8xf32> to vector<8x8xbf16>
    %cst_37 = arith.constant dense<0.000000e+00> : vector<8x8xf32>
    %68 = tpu.matmul %67, %36, %cst_37 {dimension_numbers = #tpu.dot_dimension_numbers<[1], [0], [0], [1], [0, 0, 1, 1], [], []>} : vector<8x8xbf16>, vector<8x8xbf16>, vector<8x8xf32> -> vector<8x8xf32>
    %69 = arith.addf %66, %68 : vector<8x8xf32>
    %c0_38 = arith.constant 0 : index
    %c0_39 = arith.constant 0 : index
    %c0_40 = arith.constant 0 : index
    %70 = vector.load %arg20[%c0_38, %c0_39, %c0_40] : memref<4x8x8xf32, #tpu.memory_space<vmem>>, vector<1x8x8xf32>
    %71 = vector.shape_cast %70 : vector<1x8x8xf32> to vector<8x8xf32>
    %72 = vector.shape_cast %69 : vector<8x8xf32> to vector<1x8x8xf32>
    tpu.vector_store %arg20[%c0_38, %c0_39, %c0_40], %72 {strides = array<i32>} : memref<4x8x8xf32, #tpu.memory_space<vmem>>, vector<1x8x8xf32>,
    %c0_41 = arith.constant 0 : index
    %c0_42 = arith.constant 0 : index
    %c0_43 = arith.constant 0 : index
    %73 = vector.load %arg18[%c0_41, %c0_42, %c0_43] : memref<4x8x1xf32, #tpu.memory_space<vmem>>, vector<1x8x1xf32>
    %74 = vector.shape_cast %73 : vector<1x8x1xf32> to vector<8x1xf32>
    %75 = vector.shape_cast %48 : vector<8x1xf32> to vector<1x8x1xf32>
    tpu.vector_store %arg18[%c0_41, %c0_42, %c0_43], %75 {strides = array<i32>} : memref<4x8x1xf32, #tpu.memory_space<vmem>>, vector<1x8x1xf32>,
    %76 = vector.extract_strided_slice %17 {offsets = [0, 8], sizes = [8, 8], strides = [1, 1]} : vector<8x32xbf16> to vector<8x8xbf16>
    %77 = vector.extract_strided_slice %10 {offsets = [0, 8], sizes = [8, 8], strides = [1, 1]} : vector<8x32xbf16> to vector<8x8xbf16>
    %78 = vector.extract_strided_slice %16 {offsets = [0, 8], sizes = [8, 8], strides = [1, 1]} : vector<8x32xbf16> to vector<8x8xbf16>
    %cst_44 = arith.constant dense<0.000000e+00> : vector<8x8xf32>
    %79 = tpu.matmul %76, %77, %cst_44 {dimension_numbers = #tpu.dot_dimension_numbers<[1], [1], [0], [0], [0, 0, 1, 0], [], []>} : vector<8x8xbf16>, vector<8x8xbf16>, vector<8x8xf32> -> vector<8x8xf32>
    %cst_45 = arith.constant 0xFF800000 : f32
    %80 = vector.broadcast %cst_45 : f32 to vector<8x8xf32>
    %81 = arith.select %33, %80, %79 : vector<8x8xi1>, vector<8x8xf32>
    %cst_46 = arith.constant -1.000000e+09 : f32
    %82 = vector.shape_cast %21 : vector<1x8xi1> to vector<1x8xi1>
    %83 = vector.broadcast %82 : vector<1x8xi1> to vector<8x8xi1>
    %84 = vector.broadcast %cst_46 : f32 to vector<8x8xf32>
    %85 = arith.select %83, %84, %81 : vector<8x8xi1>, vector<8x8xf32>
    %c1 = arith.constant 1 : index
    %c0_47 = arith.constant 0 : index
    %c0_48 = arith.constant 0 : index
    %86 = vector.load %arg18[%c1, %c0_47, %c0_48] : memref<4x8x1xf32, #tpu.memory_space<vmem>>, vector<1x8x1xf32>
    %87 = vector.shape_cast %86 : vector<1x8x1xf32> to vector<8x1xf32>
    %cst_49 = arith.constant dense<0xFF800000> : vector<8xf32>
    %88 = vector.multi_reduction <maximumf>, %85, %cst_49 [1] : vector<8x8xf32> to vector<8xf32>
    %89 = vector.shape_cast %88 : vector<8xf32> to vector<8x1xf32>
    %90 = arith.maximumf %87, %89 : vector<8x1xf32>
    %91 = arith.subf %87, %90 : vector<8x1xf32>
    %92 = math.exp %91 : vector<8x1xf32>
    %93 = vector.broadcast %90 : vector<8x1xf32> to vector<8x8xf32>
    %94 = arith.subf %85, %93 : vector<8x8xf32>
    %95 = math.exp %94 : vector<8x8xf32>
    %c1_50 = arith.constant 1 : index
    %c0_51 = arith.constant 0 : index
    %c0_52 = arith.constant 0 : index
    %96 = vector.load %arg19[%c1_50, %c0_51, %c0_52] : memref<4x8x1xf32, #tpu.memory_space<vmem>>, vector<1x8x1xf32>
    %97 = vector.shape_cast %96 : vector<1x8x1xf32> to vector<8x1xf32>
    %98 = arith.mulf %92, %97 : vector<8x1xf32>
    %cst_53 = arith.constant dense<0.000000e+00> : vector<8xf32>
    %99 = vector.multi_reduction <add>, %95, %cst_53 [1] : vector<8x8xf32> to vector<8xf32>
    %100 = vector.shape_cast %99 : vector<8xf32> to vector<8x1xf32>
    %101 = arith.addf %98, %100 : vector<8x1xf32>
    %c1_54 = arith.constant 1 : index
    %c0_55 = arith.constant 0 : index
    %c0_56 = arith.constant 0 : index
    %102 = vector.load %arg19[%c1_54, %c0_55, %c0_56] : memref<4x8x1xf32, #tpu.memory_space<vmem>>, vector<1x8x1xf32>
    %103 = vector.shape_cast %102 : vector<1x8x1xf32> to vector<8x1xf32>
    %104 = vector.shape_cast %101 : vector<8x1xf32> to vector<1x8x1xf32>
    tpu.vector_store %arg19[%c1_54, %c0_55, %c0_56], %104 {strides = array<i32>} : memref<4x8x1xf32, #tpu.memory_space<vmem>>, vector<1x8x1xf32>,
    %c1_57 = arith.constant 1 : index
    %c0_58 = arith.constant 0 : index
    %c0_59 = arith.constant 0 : index
    %105 = vector.load %arg20[%c1_57, %c0_58, %c0_59] : memref<4x8x8xf32, #tpu.memory_space<vmem>>, vector<1x8x8xf32>
    %106 = vector.shape_cast %105 : vector<1x8x8xf32> to vector<8x8xf32>
    %107 = vector.broadcast %92 : vector<8x1xf32> to vector<8x8xf32>
    %108 = arith.mulf %107, %106 : vector<8x8xf32>
    %109 = arith.truncf %95 : vector<8x8xf32> to vector<8x8xbf16>
    %cst_60 = arith.constant dense<0.000000e+00> : vector<8x8xf32>
    %110 = tpu.matmul %109, %78, %cst_60 {dimension_numbers = #tpu.dot_dimension_numbers<[1], [0], [0], [1], [0, 0, 1, 1], [], []>} : vector<8x8xbf16>, vector<8x8xbf16>, vector<8x8xf32> -> vector<8x8xf32>
    %111 = arith.addf %108, %110 : vector<8x8xf32>
    %c1_61 = arith.constant 1 : index
    %c0_62 = arith.constant 0 : index
    %c0_63 = arith.constant 0 : index
    %112 = vector.load %arg20[%c1_61, %c0_62, %c0_63] : memref<4x8x8xf32, #tpu.memory_space<vmem>>, vector<1x8x8xf32>
    %113 = vector.shape_cast %112 : vector<1x8x8xf32> to vector<8x8xf32>
    %114 = vector.shape_cast %111 : vector<8x8xf32> to vector<1x8x8xf32>
    tpu.vector_store %arg20[%c1_61, %c0_62, %c0_63], %114 {strides = array<i32>} : memref<4x8x8xf32, #tpu.memory_space<vmem>>, vector<1x8x8xf32>,
    %c1_64 = arith.constant 1 : index
    %c0_65 = arith.constant 0 : index
    %c0_66 = arith.constant 0 : index
    %115 = vector.load %arg18[%c1_64, %c0_65, %c0_66] : memref<4x8x1xf32, #tpu.memory_space<vmem>>, vector<1x8x1xf32>
    %116 = vector.shape_cast %115 : vector<1x8x1xf32> to vector<8x1xf32>
    %117 = vector.shape_cast %90 : vector<8x1xf32> to vector<1x8x1xf32>
    tpu.vector_store %arg18[%c1_64, %c0_65, %c0_66], %117 {strides = array<i32>} : memref<4x8x1xf32, #tpu.memory_space<vmem>>, vector<1x8x1xf32>,
    %118 = vector.extract_strided_slice %17 {offsets = [0, 16], sizes = [8, 8], strides = [1, 1]} : vector<8x32xbf16> to vector<8x8xbf16>
    %119 = vector.extract_strided_slice %10 {offsets = [0, 16], sizes = [8, 8], strides = [1, 1]} : vector<8x32xbf16> to vector<8x8xbf16>
    %120 = vector.extract_strided_slice %16 {offsets = [0, 16], sizes = [8, 8], strides = [1, 1]} : vector<8x32xbf16> to vector<8x8xbf16>
    %cst_67 = arith.constant dense<0.000000e+00> : vector<8x8xf32>
    %121 = tpu.matmul %118, %119, %cst_67 {dimension_numbers = #tpu.dot_dimension_numbers<[1], [1], [0], [0], [0, 0, 1, 0], [], []>} : vector<8x8xbf16>, vector<8x8xbf16>, vector<8x8xf32> -> vector<8x8xf32>
    %cst_68 = arith.constant 0xFF800000 : f32
    %122 = vector.broadcast %cst_68 : f32 to vector<8x8xf32>
    %123 = arith.select %33, %122, %121 : vector<8x8xi1>, vector<8x8xf32>
    %cst_69 = arith.constant -1.000000e+09 : f32
    %124 = vector.shape_cast %21 : vector<1x8xi1> to vector<1x8xi1>
    %125 = vector.broadcast %124 : vector<1x8xi1> to vector<8x8xi1>
    %126 = vector.broadcast %cst_69 : f32 to vector<8x8xf32>
    %127 = arith.select %125, %126, %123 : vector<8x8xi1>, vector<8x8xf32>
    %c2 = arith.constant 2 : index
    %c0_70 = arith.constant 0 : index
    %c0_71 = arith.constant 0 : index
    %128 = vector.load %arg18[%c2, %c0_70, %c0_71] : memref<4x8x1xf32, #tpu.memory_space<vmem>>, vector<1x8x1xf32>
    %129 = vector.shape_cast %128 : vector<1x8x1xf32> to vector<8x1xf32>
    %cst_72 = arith.constant dense<0xFF800000> : vector<8xf32>
    %130 = vector.multi_reduction <maximumf>, %127, %cst_72 [1] : vector<8x8xf32> to vector<8xf32>
    %131 = vector.shape_cast %130 : vector<8xf32> to vector<8x1xf32>
    %132 = arith.maximumf %129, %131 : vector<8x1xf32>
    %133 = arith.subf %129, %132 : vector<8x1xf32>
    %134 = math.exp %133 : vector<8x1xf32>
    %135 = vector.broadcast %132 : vector<8x1xf32> to vector<8x8xf32>
    %136 = arith.subf %127, %135 : vector<8x8xf32>
    %137 = math.exp %136 : vector<8x8xf32>
    %c2_73 = arith.constant 2 : index
    %c0_74 = arith.constant 0 : index
    %c0_75 = arith.constant 0 : index
    %138 = vector.load %arg19[%c2_73, %c0_74, %c0_75] : memref<4x8x1xf32, #tpu.memory_space<vmem>>, vector<1x8x1xf32>
    %139 = vector.shape_cast %138 : vector<1x8x1xf32> to vector<8x1xf32>
    %140 = arith.mulf %134, %139 : vector<8x1xf32>
    %cst_76 = arith.constant dense<0.000000e+00> : vector<8xf32>
    %141 = vector.multi_reduction <add>, %137, %cst_76 [1] : vector<8x8xf32> to vector<8xf32>
    %142 = vector.shape_cast %141 : vector<8xf32> to vector<8x1xf32>
    %143 = arith.addf %140, %142 : vector<8x1xf32>
    %c2_77 = arith.constant 2 : index
    %c0_78 = arith.constant 0 : index
    %c0_79 = arith.constant 0 : index
    %144 = vector.load %arg19[%c2_77, %c0_78, %c0_79] : memref<4x8x1xf32, #tpu.memory_space<vmem>>, vector<1x8x1xf32>
    %145 = vector.shape_cast %144 : vector<1x8x1xf32> to vector<8x1xf32>
    %146 = vector.shape_cast %143 : vector<8x1xf32> to vector<1x8x1xf32>
    tpu.vector_store %arg19[%c2_77, %c0_78, %c0_79], %146 {strides = array<i32>} : memref<4x8x1xf32, #tpu.memory_space<vmem>>, vector<1x8x1xf32>,
    %c2_80 = arith.constant 2 : index
    %c0_81 = arith.constant 0 : index
    %c0_82 = arith.constant 0 : index
    %147 = vector.load %arg20[%c2_80, %c0_81, %c0_82] : memref<4x8x8xf32, #tpu.memory_space<vmem>>, vector<1x8x8xf32>
    %148 = vector.shape_cast %147 : vector<1x8x8xf32> to vector<8x8xf32>
    %149 = vector.broadcast %134 : vector<8x1xf32> to vector<8x8xf32>
    %150 = arith.mulf %149, %148 : vector<8x8xf32>
    %151 = arith.truncf %137 : vector<8x8xf32> to vector<8x8xbf16>
    %cst_83 = arith.constant dense<0.000000e+00> : vector<8x8xf32>
    %152 = tpu.matmul %151, %120, %cst_83 {dimension_numbers = #tpu.dot_dimension_numbers<[1], [0], [0], [1], [0, 0, 1, 1], [], []>} : vector<8x8xbf16>, vector<8x8xbf16>, vector<8x8xf32> -> vector<8x8xf32>
    %153 = arith.addf %150, %152 : vector<8x8xf32>
    %c2_84 = arith.constant 2 : index
    %c0_85 = arith.constant 0 : index
    %c0_86 = arith.constant 0 : index
    %154 = vector.load %arg20[%c2_84, %c0_85, %c0_86] : memref<4x8x8xf32, #tpu.memory_space<vmem>>, vector<1x8x8xf32>
    %155 = vector.shape_cast %154 : vector<1x8x8xf32> to vector<8x8xf32>
    %156 = vector.shape_cast %153 : vector<8x8xf32> to vector<1x8x8xf32>
    tpu.vector_store %arg20[%c2_84, %c0_85, %c0_86], %156 {strides = array<i32>} : memref<4x8x8xf32, #tpu.memory_space<vmem>>, vector<1x8x8xf32>,
    %c2_87 = arith.constant 2 : index
    %c0_88 = arith.constant 0 : index
    %c0_89 = arith.constant 0 : index
    %157 = vector.load %arg18[%c2_87, %c0_88, %c0_89] : memref<4x8x1xf32, #tpu.memory_space<vmem>>, vector<1x8x1xf32>
    %158 = vector.shape_cast %157 : vector<1x8x1xf32> to vector<8x1xf32>
    %159 = vector.shape_cast %132 : vector<8x1xf32> to vector<1x8x1xf32>
    tpu.vector_store %arg18[%c2_87, %c0_88, %c0_89], %159 {strides = array<i32>} : memref<4x8x1xf32, #tpu.memory_space<vmem>>, vector<1x8x1xf32>,
    %160 = vector.extract_strided_slice %17 {offsets = [0, 24], sizes = [8, 8], strides = [1, 1]} : vector<8x32xbf16> to vector<8x8xbf16>
    %161 = vector.extract_strided_slice %10 {offsets = [0, 24], sizes = [8, 8], strides = [1, 1]} : vector<8x32xbf16> to vector<8x8xbf16>
    %162 = vector.extract_strided_slice %16 {offsets = [0, 24], sizes = [8, 8], strides = [1, 1]} : vector<8x32xbf16> to vector<8x8xbf16>
    %cst_90 = arith.constant dense<0.000000e+00> : vector<8x8xf32>
    %163 = tpu.matmul %160, %161, %cst_90 {dimension_numbers = #tpu.dot_dimension_numbers<[1], [1], [0], [0], [0, 0, 1, 0], [], []>} : vector<8x8xbf16>, vector<8x8xbf16>, vector<8x8xf32> -> vector<8x8xf32>
    %cst_91 = arith.constant 0xFF800000 : f32
    %164 = vector.broadcast %cst_91 : f32 to vector<8x8xf32>
    %165 = arith.select %33, %164, %163 : vector<8x8xi1>, vector<8x8xf32>
    %cst_92 = arith.constant -1.000000e+09 : f32
    %166 = vector.shape_cast %21 : vector<1x8xi1> to vector<1x8xi1>
    %167 = vector.broadcast %166 : vector<1x8xi1> to vector<8x8xi1>
    %168 = vector.broadcast %cst_92 : f32 to vector<8x8xf32>
    %169 = arith.select %167, %168, %165 : vector<8x8xi1>, vector<8x8xf32>
    %c3 = arith.constant 3 : index
    %c0_93 = arith.constant 0 : index
    %c0_94 = arith.constant 0 : index
    %170 = vector.load %arg18[%c3, %c0_93, %c0_94] : memref<4x8x1xf32, #tpu.memory_space<vmem>>, vector<1x8x1xf32>
    %171 = vector.shape_cast %170 : vector<1x8x1xf32> to vector<8x1xf32>
    %cst_95 = arith.constant dense<0xFF800000> : vector<8xf32>
    %172 = vector.multi_reduction <maximumf>, %169, %cst_95 [1] : vector<8x8xf32> to vector<8xf32>
    %173 = vector.shape_cast %172 : vector<8xf32> to vector<8x1xf32>
    %174 = arith.maximumf %171, %173 : vector<8x1xf32>
    %175 = arith.subf %171, %174 : vector<8x1xf32>
    %176 = math.exp %175 : vector<8x1xf32>
    %177 = vector.broadcast %174 : vector<8x1xf32> to vector<8x8xf32>
    %178 = arith.subf %169, %177 : vector<8x8xf32>
    %179 = math.exp %178 : vector<8x8xf32>
    %c3_96 = arith.constant 3 : index
    %c0_97 = arith.constant 0 : index
    %c0_98 = arith.constant 0 : index
    %180 = vector.load %arg19[%c3_96, %c0_97, %c0_98] : memref<4x8x1xf32, #tpu.memory_space<vmem>>, vector<1x8x1xf32>
    %181 = vector.shape_cast %180 : vector<1x8x1xf32> to vector<8x1xf32>
    %182 = arith.mulf %176, %181 : vector<8x1xf32>
    %cst_99 = arith.constant dense<0.000000e+00> : vector<8xf32>
    %183 = vector.multi_reduction <add>, %179, %cst_99 [1] : vector<8x8xf32> to vector<8xf32>
    %184 = vector.shape_cast %183 : vector<8xf32> to vector<8x1xf32>
    %185 = arith.addf %182, %184 : vector<8x1xf32>
    %c3_100 = arith.constant 3 : index
    %c0_101 = arith.constant 0 : index
    %c0_102 = arith.constant 0 : index
    %186 = vector.load %arg19[%c3_100, %c0_101, %c0_102] : memref<4x8x1xf32, #tpu.memory_space<vmem>>, vector<1x8x1xf32>
    %187 = vector.shape_cast %186 : vector<1x8x1xf32> to vector<8x1xf32>
    %188 = vector.shape_cast %185 : vector<8x1xf32> to vector<1x8x1xf32>
    tpu.vector_store %arg19[%c3_100, %c0_101, %c0_102], %188 {strides = array<i32>} : memref<4x8x1xf32, #tpu.memory_space<vmem>>, vector<1x8x1xf32>,
    %c3_103 = arith.constant 3 : index
    %c0_104 = arith.constant 0 : index
    %c0_105 = arith.constant 0 : index
    %189 = vector.load %arg20[%c3_103, %c0_104, %c0_105] : memref<4x8x8xf32, #tpu.memory_space<vmem>>, vector<1x8x8xf32>
    %190 = vector.shape_cast %189 : vector<1x8x8xf32> to vector<8x8xf32>
    %191 = vector.broadcast %176 : vector<8x1xf32> to vector<8x8xf32>
    %192 = arith.mulf %191, %190 : vector<8x8xf32>
    %193 = arith.truncf %179 : vector<8x8xf32> to vector<8x8xbf16>
    %cst_106 = arith.constant dense<0.000000e+00> : vector<8x8xf32>
    %194 = tpu.matmul %193, %162, %cst_106 {dimension_numbers = #tpu.dot_dimension_numbers<[1], [0], [0], [1], [0, 0, 1, 1], [], []>} : vector<8x8xbf16>, vector<8x8xbf16>, vector<8x8xf32> -> vector<8x8xf32>
    %195 = arith.addf %192, %194 : vector<8x8xf32>
    %c3_107 = arith.constant 3 : index
    %c0_108 = arith.constant 0 : index
    %c0_109 = arith.constant 0 : index
    %196 = vector.load %arg20[%c3_107, %c0_108, %c0_109] : memref<4x8x8xf32, #tpu.memory_space<vmem>>, vector<1x8x8xf32>
    %197 = vector.shape_cast %196 : vector<1x8x8xf32> to vector<8x8xf32>
    %198 = vector.shape_cast %195 : vector<8x8xf32> to vector<1x8x8xf32>
    tpu.vector_store %arg20[%c3_107, %c0_108, %c0_109], %198 {strides = array<i32>} : memref<4x8x8xf32, #tpu.memory_space<vmem>>, vector<1x8x8xf32>,
    %c3_110 = arith.constant 3 : index
    %c0_111 = arith.constant 0 : index
    %c0_112 = arith.constant 0 : index
    %199 = vector.load %arg18[%c3_110, %c0_111, %c0_112] : memref<4x8x1xf32, #tpu.memory_space<vmem>>, vector<1x8x1xf32>
    %200 = vector.shape_cast %199 : vector<1x8x1xf32> to vector<8x1xf32>
    %201 = vector.shape_cast %174 : vector<8x1xf32> to vector<1x8x1xf32>
    tpu.vector_store %arg18[%c3_110, %c0_111, %c0_112], %201 {strides = array<i32>} : memref<4x8x1xf32, #tpu.memory_space<vmem>>, vector<1x8x1xf32>,
    %c0_i32_113 = arith.constant 0 : i32
    %202 = arith.cmpi eq, %arg2, %c0_i32_113 : i32
    %203 = arith.extui %202 : i1 to i32
    %c0_i32_114 = arith.constant 0 : i32
    %204 = arith.cmpi ne, %203, %c0_i32_114 : i32
    scf.if %204 {
      %c0_115 = arith.constant 0 : index
      %c0_116 = arith.constant 0 : index
      %c0_117 = arith.constant 0 : index
      %205 = vector.load %arg20[%c0_115, %c0_116, %c0_117] : memref<4x8x8xf32, #tpu.memory_space<vmem>>, vector<1x8x8xf32>
      %206 = vector.shape_cast %205 : vector<1x8x8xf32> to vector<8x8xf32>
      %c0_118 = arith.constant 0 : index
      %c0_119 = arith.constant 0 : index
      %c0_120 = arith.constant 0 : index
      %207 = vector.load %arg19[%c0_118, %c0_119, %c0_120] : memref<4x8x1xf32, #tpu.memory_space<vmem>>, vector<1x8x1xf32>
      %208 = vector.shape_cast %207 : vector<1x8x1xf32> to vector<8x1xf32>
      %209 = tpu.reciprocal %208 {approx = true} : vector<8x1xf32> -> vector<8x1xf32>
      %210 = vector.broadcast %209 : vector<8x1xf32> to vector<8x8xf32>
      %211 = arith.mulf %206, %210 : vector<8x8xf32>
      %c1_121 = arith.constant 1 : index
      %c0_122 = arith.constant 0 : index
      %c0_123 = arith.constant 0 : index
      %212 = vector.load %arg20[%c1_121, %c0_122, %c0_123] : memref<4x8x8xf32, #tpu.memory_space<vmem>>, vector<1x8x8xf32>
      %213 = vector.shape_cast %212 : vector<1x8x8xf32> to vector<8x8xf32>
      %c1_124 = arith.constant 1 : index
      %c0_125 = arith.constant 0 : index
      %c0_126 = arith.constant 0 : index
      %214 = vector.load %arg19[%c1_124, %c0_125, %c0_126] : memref<4x8x1xf32, #tpu.memory_space<vmem>>, vector<1x8x1xf32>
      %215 = vector.shape_cast %214 : vector<1x8x1xf32> to vector<8x1xf32>
      %216 = tpu.reciprocal %215 {approx = true} : vector<8x1xf32> -> vector<8x1xf32>
      %217 = vector.broadcast %216 : vector<8x1xf32> to vector<8x8xf32>
      %218 = arith.mulf %213, %217 : vector<8x8xf32>
      %c2_127 = arith.constant 2 : index
      %c0_128 = arith.constant 0 : index
      %c0_129 = arith.constant 0 : index
      %219 = vector.load %arg20[%c2_127, %c0_128, %c0_129] : memref<4x8x8xf32, #tpu.memory_space<vmem>>, vector<1x8x8xf32>
      %220 = vector.shape_cast %219 : vector<1x8x8xf32> to vector<8x8xf32>
      %c2_130 = arith.constant 2 : index
      %c0_131 = arith.constant 0 : index
      %c0_132 = arith.constant 0 : index
      %221 = vector.load %arg19[%c2_130, %c0_131, %c0_132] : memref<4x8x1xf32, #tpu.memory_space<vmem>>, vector<1x8x1xf32>
      %222 = vector.shape_cast %221 : vector<1x8x1xf32> to vector<8x1xf32>
      %223 = tpu.reciprocal %222 {approx = true} : vector<8x1xf32> -> vector<8x1xf32>
      %224 = vector.broadcast %223 : vector<8x1xf32> to vector<8x8xf32>
      %225 = arith.mulf %220, %224 : vector<8x8xf32>
      %c3_133 = arith.constant 3 : index
      %c0_134 = arith.constant 0 : index
      %c0_135 = arith.constant 0 : index
      %226 = vector.load %arg20[%c3_133, %c0_134, %c0_135] : memref<4x8x8xf32, #tpu.memory_space<vmem>>, vector<1x8x8xf32>
      %227 = vector.shape_cast %226 : vector<1x8x8xf32> to vector<8x8xf32>
      %c3_136 = arith.constant 3 : index
      %c0_137 = arith.constant 0 : index
      %c0_138 = arith.constant 0 : index
      %228 = vector.load %arg19[%c3_136, %c0_137, %c0_138] : memref<4x8x1xf32, #tpu.memory_space<vmem>>, vector<1x8x1xf32>
      %229 = vector.shape_cast %228 : vector<1x8x1xf32> to vector<8x1xf32>
      %230 = tpu.reciprocal %229 {approx = true} : vector<8x1xf32> -> vector<8x1xf32>
      %231 = vector.broadcast %230 : vector<8x1xf32> to vector<8x8xf32>
      %232 = arith.mulf %227, %231 : vector<8x8xf32>
      %233 = tpu.concatenate %211, %218, %225, %232 in 1 : vector<8x8xf32>, vector<8x8xf32>, vector<8x8xf32>, vector<8x8xf32> -> vector<8x32xf32>
      %234 = arith.truncf %233 : vector<8x32xf32> to vector<8x32xbf16>
      %c0_139 = arith.constant 0 : index
      %c0_140 = arith.constant 0 : index
      %235 = vector.load %arg12[%c0_139, %c0_140] : memref<32x32xbf16, #tpu.memory_space<vmem>>, vector<32x32xbf16>
      %cst_141 = arith.constant dense<0.000000e+00> : vector<8x32xf32>
      %236 = tpu.matmul %234, %235, %cst_141 {dimension_numbers = #tpu.dot_dimension_numbers<[1], [0], [0], [1], [0, 0, 1, 1], [], []>} : vector<8x32xbf16>, vector<32x32xbf16>, vector<8x32xf32> -> vector<8x32xf32>
      %c0_142 = arith.constant 0 : index
      %c0_143 = arith.constant 0 : index
      %237 = vector.load %arg13[%c0_142, %c0_143] : memref<1x32xf32, #tpu.memory_space<vmem>>, vector<1x32xf32>
      %238 = vector.broadcast %237 : vector<1x32xf32> to vector<8x32xf32>
      %239 = arith.addf %236, %238 : vector<8x32xf32>
      %c0_144 = arith.constant 0 : index
      %c0_145 = arith.constant 0 : index
      %c0_146 = arith.constant 0 : index
      %240 = vector.load %arg4[%c0_144, %c0_145, %c0_146] : memref<1x8x32xbf16, #tpu.memory_space<vmem>>, vector<1x8x32xbf16>
      %241 = vector.shape_cast %240 : vector<1x8x32xbf16> to vector<8x32xbf16>
      %242 = arith.extf %241 : vector<8x32xbf16> to vector<8x32xf32>
      %243 = arith.addf %242, %239 : vector<8x32xf32>
      %cst_147 = arith.constant dense<0.000000e+00> : vector<8xf32>
      %244 = vector.multi_reduction <add>, %243, %cst_147 [1] : vector<8x32xf32> to vector<8xf32>
      %245 = vector.shape_cast %244 : vector<8xf32> to vector<8x1xf32>
      %cst_148 = arith.constant 3.200000e+01 : f32
      %246 = vector.broadcast %cst_148 : f32 to vector<8x1xf32>
      %247 = arith.divf %245, %246 : vector<8x1xf32>
      %248 = vector.broadcast %247 : vector<8x1xf32> to vector<8x32xf32>
      %249 = arith.subf %243, %248 : vector<8x32xf32>
      %250 = arith.mulf %249, %249 : vector<8x32xf32>
      %cst_149 = arith.constant dense<0.000000e+00> : vector<8xf32>
      %251 = vector.multi_reduction <add>, %250, %cst_149 [1] : vector<8x32xf32> to vector<8xf32>
      %252 = vector.shape_cast %251 : vector<8xf32> to vector<8x1xf32>
      %cst_150 = arith.constant 3.200000e+01 : f32
      %253 = vector.broadcast %cst_150 : f32 to vector<8x1xf32>
      %254 = arith.divf %252, %253 : vector<8x1xf32>
      %255 = vector.broadcast %247 : vector<8x1xf32> to vector<8x32xf32>
      %256 = arith.subf %243, %255 : vector<8x32xf32>
      %cst_151 = arith.constant 9.99999974E-6 : f32
      %257 = vector.broadcast %cst_151 : f32 to vector<8x1xf32>
      %258 = arith.addf %254, %257 : vector<8x1xf32>
      %259 = math.rsqrt %258 : vector<8x1xf32>
      %260 = vector.broadcast %259 : vector<8x1xf32> to vector<8x32xf32>
      %261 = arith.mulf %256, %260 : vector<8x32xf32>
      %c0_152 = arith.constant 0 : index
      %c0_153 = arith.constant 0 : index
      %262 = vector.load %arg14[%c0_152, %c0_153] : memref<1x32xf32, #tpu.memory_space<vmem>>, vector<1x32xf32>
      %263 = vector.broadcast %262 : vector<1x32xf32> to vector<8x32xf32>
      %264 = arith.mulf %261, %263 : vector<8x32xf32>
      %c0_154 = arith.constant 0 : index
      %c0_155 = arith.constant 0 : index
      %265 = vector.load %arg15[%c0_154, %c0_155] : memref<1x32xf32, #tpu.memory_space<vmem>>, vector<1x32xf32>
      %266 = vector.broadcast %265 : vector<1x32xf32> to vector<8x32xf32>
      %267 = arith.addf %264, %266 : vector<8x32xf32>
      %268 = arith.truncf %267 : vector<8x32xf32> to vector<8x32xbf16>
      %c0_156 = arith.constant 0 : index
      %c0_157 = arith.constant 0 : index
      %c0_158 = arith.constant 0 : index
      %269 = vector.load %arg16[%c0_156, %c0_157, %c0_158] : memref<1x8x32xbf16, #tpu.memory_space<vmem>>, vector<1x8x32xbf16>
      %270 = vector.shape_cast %269 : vector<1x8x32xbf16> to vector<8x32xbf16>
      %271 = vector.shape_cast %268 : vector<8x32xbf16> to vector<1x8x32xbf16>
      tpu.vector_store %arg16[%c0_156, %c0_157, %c0_158], %271 {strides = array<i32>} : memref<1x8x32xbf16, #tpu.memory_space<vmem>>, vector<1x8x32xbf16>,
    } else {
    }
    return
  }
  func.func @transform_0(%arg0: i32, %arg1: i32, %arg2: i32) -> (i32, i32, i32) {
    %c0_i32 = arith.constant 0 : i32
    %c0_i32_0 = arith.constant 0 : i32
    return %arg0, %c0_i32, %arg2 : i32, i32, i32
  }
  func.func @transform_1(%arg0: i32, %arg1: i32, %arg2: i32) -> (i32, i32, i32) {
    %c0_i32 = arith.constant 0 : i32
    %c0_i32_0 = arith.constant 0 : i32
    return %arg0, %arg1, %c0_i32 : i32, i32, i32
  }
  func.func @transform_2(%arg0: i32, %arg1: i32, %arg2: i32) -> (i32, i32, i32) {
    %c0_i32 = arith.constant 0 : i32
    %c0_i32_0 = arith.constant 0 : i32
    return %arg0, %arg2, %c0_i32 : i32, i32, i32
  }
  func.func @transform_3(%arg0: i32, %arg1: i32, %arg2: i32) -> (i32, i32) {
    %c0_i32 = arith.constant 0 : i32
    %c0_i32_0 = arith.constant 0 : i32
    %c0_i32_1 = arith.constant 0 : i32
    return %c0_i32, %c0_i32_0 : i32, i32
  }
  func.func @transform_4(%arg0: i32, %arg1: i32, %arg2: i32) -> (i32, i32) {
    %c0_i32 = arith.constant 0 : i32
    %c0_i32_0 = arith.constant 0 : i32
    %c0_i32_1 = arith.constant 0 : i32
    return %c0_i32, %c0_i32_0 : i32, i32
  }
  func.func @transform_5(%arg0: i32, %arg1: i32, %arg2: i32) -> (i32, i32) {
    %c0_i32 = arith.constant 0 : i32
    %c0_i32_0 = arith.constant 0 : i32
    %c0_i32_1 = arith.constant 0 : i32
    return %c0_i32, %c0_i32_0 : i32, i32
  }
  func.func @transform_6(%arg0: i32, %arg1: i32, %arg2: i32) -> (i32, i32) {
    %c0_i32 = arith.constant 0 : i32
    %c0_i32_0 = arith.constant 0 : i32
    %c0_i32_1 = arith.constant 0 : i32
    return %c0_i32, %c0_i32_0 : i32, i32
  }
  func.func @transform_7(%arg0: i32, %arg1: i32, %arg2: i32) -> (i32, i32) {
    %c0_i32 = arith.constant 0 : i32
    %c0_i32_0 = arith.constant 0 : i32
    %c0_i32_1 = arith.constant 0 : i32
    return %c0_i32, %c0_i32_0 : i32, i32
  }
  func.func @transform_8(%arg0: i32, %arg1: i32, %arg2: i32) -> (i32, i32) {
    %c0_i32 = arith.constant 0 : i32
    %c0_i32_0 = arith.constant 0 : i32
    %c0_i32_1 = arith.constant 0 : i32
    return %c0_i32, %c0_i32_0 : i32, i32
  }
  func.func @transform_9(%arg0: i32, %arg1: i32, %arg2: i32) -> (i32, i32) {
    %c0_i32 = arith.constant 0 : i32
    %c0_i32_0 = arith.constant 0 : i32
    %c0_i32_1 = arith.constant 0 : i32
    return %c0_i32, %c0_i32_0 : i32, i32
  }
  func.func @transform_10(%arg0: i32, %arg1: i32, %arg2: i32) -> (i32, i32) {
    %c0_i32 = arith.constant 0 : i32
    %c0_i32_0 = arith.constant 0 : i32
    %c0_i32_1 = arith.constant 0 : i32
    return %c0_i32, %c0_i32_0 : i32, i32
  }
  func.func @transform_11(%arg0: i32, %arg1: i32, %arg2: i32) -> (i32, i32) {
    %c0_i32 = arith.constant 0 : i32
    %c0_i32_0 = arith.constant 0 : i32
    %c0_i32_1 = arith.constant 0 : i32
    return %c0_i32, %c0_i32_0 : i32, i32
  }
  func.func @transform_12(%arg0: i32, %arg1: i32, %arg2: i32) -> (i32, i32) {
    %c0_i32 = arith.constant 0 : i32
    %c0_i32_0 = arith.constant 0 : i32
    %c0_i32_1 = arith.constant 0 : i32
    return %c0_i32, %c0_i32_0 : i32, i32
  }
  func.func @transform_13(%arg0: i32, %arg1: i32, %arg2: i32) -> (i32, i32, i32) {
    %c0_i32 = arith.constant 0 : i32
    %c0_i32_0 = arith.constant 0 : i32
    return %arg0, %arg1, %c0_i32 : i32, i32, i32
  }
}

</mosaic_0001>

<llo_original>
// kernel: transformer_forward.21
$region0: #{transformer_forward.21}
  #allocation0 [shape = 'u32[]', space=smem, size = 0x4, offset = 0x4, fixed_abs, tag = 'smem constant byte address 0x4 - core index']
  #allocation1 [shape = 'u32[144,128]{1,0:T(1,128)}', space=vmem, size = 0x12000, scoped, tag = 'internal scratch']
  %s0 = inlined_call_operand.vmem [shape: bf16[16,32], index: 0, kind: input, shape index: {}]
  %s1 = inlined_call_operand.vmem [shape: bf16[32,32], index: 1, kind: input, shape index: {}]
  %s2 = inlined_call_operand.hbm [shape: f32[16,32], index: 2, kind: output, shape index: {}]
  %s3 = sld [smem:[#allocation0]]
  $region18: #{transformer_forward.21} parent=0
    _
  %s5 = ssub.s32 1, %s3
  %s6 = scalar_select 0, %s5, %s3
  $region1: #{transformer_forward.21} parent=0
    #allocation2 [shape = 'u8[8192]{0}', space=vmem, size = 0x2000, scoped, tag = 'output window, operand 0, single buffered']
    #allocation3 [shape = 's32[1]{0}', space=sflag, size = 0x4, scoped, tag = 'scoped memory for transformer_forward.21']
    %7 = vsyncpa [#allocation3], 0
    // Predicated region
    $region2: #{transformer_forward.21} parent=1 // pred_check
      _
    $region3: #{transformer_forward.21} parent=1 // pred_check_branch
      %9 = sbr.rel (0) target = $region5
    $region4: #{transformer_forward.21} parent=1 // pred_region
      _
    $region5: #{transformer_forward.21} parent=1 // pred_fallthru
      _
    // Predicated region
    $region6: #{transformer_forward.21} parent=1 // pred_check
      _
    $region7: #{transformer_forward.21} parent=1 // pred_check_branch
      %11 = sbr.rel (0) target = $region9
    $region8: #{transformer_forward.21} parent=1 // pred_region
      _
    $region9: #{transformer_forward.21} parent=1 // pred_fallthru
      _
    %v13 = vld [vmem:[%s0] sm:$0xf]
    %v14 = vld [vmem:[%s0 + $0x4] sm:$0xf]
    %v15 = vld [vmem:[%s1] sm:$0xf]
    %v16 = vld [vmem:[%s1 + $0x4] sm:$0xf]
    %v17 = vld [vmem:[%s1 + $0x8] sm:$0xf]
    %v18 = vld [vmem:[%s1 + $0xc] sm:$0xf]
    %v21 = vunpack.c.l.b16 %v13
    %v22 = vunpack.c.l.b16 %v14
    %v23 = vpack.c.b16 %v22, %v21
    %v28 = vunpack.c.l.b16 %v15
    %v29 = vunpack.c.l.b16 %v16
    %v30 = vunpack.c.l.b16 %v17
    %v31 = vunpack.c.l.b16 %v18
    %v32 = vpack.c.b16 %v29, %v28
    %v33 = vpack.c.b16 %v31, %v30
    %vm34 = vcmask 261120
    %v36 = vsel %vm34, %v23, 0
    %v39 = vsel %vm34, %v32, 0
    %v42 = vsel %vm34, %v33, 0
    %44 = vmatprep.subr.bf16.mxu0 0
    %45 = vmatpush1.bf16.xpose.msra.mxu0 0
    %46 = vmatprep.subr.bf16.mxu0 0
    %47 = vmatpush1.bf16.xpose.msra.mxu0 0
    %48 = vmatprep.subr.bf16.mxu0 0
    %49 = vmatpush1.bf16.xpose.msra.mxu0 0
    %50 = vmatprep.subr.bf16.mxu0 0
    %51 = vmatpush1.bf16.xpose.msra.mxu0 0
    %52 = vmatprep.subr.bf16.mxu0 0
    %53 = vmatpush1.bf16.xpose.msra.mxu0 0
    %54 = vmatprep.subr.bf16.mxu0 0
    %55 = vmatpush1.bf16.xpose.msra.mxu0 0
    %56 = vmatprep.subr.bf16.mxu0 0
    %57 = vmatpush1.bf16.xpose.msra.mxu0 %v42
    %58 = vmatprep.subr.bf16.mxu0 0
    %59 = vmatpush1.bf16.xpose.msra.mxu0 %v39
    %60 = vmatprep.subr.bf16.mxu0 0
    %61 = vmatpush2.bf16.xpose.msra.mxu0 0
    %62 = vmatprep.subr.bf16.mxu0 0
    %63 = vmatpush2.bf16.xpose.msra.mxu0 0
    %64 = vmatprep.subr.bf16.mxu0 0
    %65 = vmatpush2.bf16.xpose.msra.mxu0 0
    %66 = vmatprep.subr.bf16.mxu0 0
    %67 = vmatpush2.bf16.xpose.msra.mxu0 0
    %68 = vmatprep.subr.bf16.mxu0 0
    %69 = vmatpush2.bf16.xpose.msra.mxu0 0
    %70 = vmatprep.subr.bf16.mxu0 0
    %71 = vmatpush2.bf16.xpose.msra.mxu0 0
    %72 = vmatprep.subr.bf16.mxu0 0
    %73 = vmatpush2.bf16.xpose.msra.mxu0 0
    %74 = vmatprep.subr.bf16.mxu0 0
    %75 = vmatpush2.bf16.xpose.msra.mxu0 0
    %76 = vmatprep.mubr.bf16.mxu0 0
    %77 = vmatmul.mubr.bf16.gmra.mxu0 %v36
    %v78 = vpop.f32.mrf.mxu0
    %v79 = vadd.f32 0.0, %v78
    %v80 = vpop.f32.mrf.mxu0
    %v81 = vpop.f32.mrf.mxu0
    %v82 = vadd.f32 0.0, %v81
    %v83 = vpop.f32.mrf.mxu0
    %84 = vdwg.mxu0
    %v85 = vsel %vm34, %v79, -inf
    %86 = vmax.xlane.f32.xlu0 %v85
    %v87 = vpop.xlane.xlu0 %86
    %v88 = vsel %vm34, %v82, -inf
    %89 = vmax.xlane.f32.xlu0 %v88
    %v90 = vpop.xlane.xlu0 %89
    %v91 = vsub.f32 %v79, %v87
    %v92 = vsub.f32 %v82, %v90
    %v93 = vmul.f32 %v91, 1.442695
    %v94 = vpow.pop %v93
    %v95 = vmul.f32 %v92, 1.442695
    %v96 = vpow.pop %v95
    %v97 = vsel %vm34, %v94, 0.0
    %98 = vadd.xlane.f32.xlu0 %v97
    %v99 = vpop.xlane.xlu0 %98
    %v100 = vsel %vm34, %v96, 0.0
    %101 = vadd.xlane.f32.xlu0 %v100
    %v102 = vpop.xlane.xlu0 %101
    %v103 = vrcp.pop %v99
    %v104 = vmul.f32 %v94, %v103
    %v105 = vrcp.pop %v102
    %v106 = vmul.f32 %v96, %v105
    %107 = vst.msk [vmem:[#allocation2] sm:$0xff] %vm34, %v104
    %108 = vst.msk [vmem:[#allocation2 + $0x8] sm:$0xff] %vm34, %v106
    // Predicated region
    $region10: #{transformer_forward.21} parent=1 // pred_check
      _
    $region11: #{transformer_forward.21} parent=1 // pred_check_branch
      %110 = sbr.rel (0) target = $region13
    $region12: #{transformer_forward.21} parent=1 // pred_region
      %s112 = ssub.s32 256, 256
      %113 = vsyncadd [#allocation3], %s112
      %s114 = sshll.u32 [#allocation2], 4
      %s115 = int_to_ptr.vmem [resolvable:$true] %s114
      %120 = dma.vmem_to_hbm [thread:$0]  %s115, 256, %s2, [#allocation3], 128, 128, 8
    $region13: #{transformer_forward.21} parent=1 // pred_fallthru
      _
    // Predicated region
    $region14: #{transformer_forward.21} parent=1 // pred_check
      _
    $region15: #{transformer_forward.21} parent=1 // pred_check_branch
      %122 = sbr.rel (0) target = $region17
    $region16: #{transformer_forward.21} parent=1 // pred_region
      %123 = dma.done [#allocation3], 256
    $region17: #{transformer_forward.21} parent=1 // pred_fallthru
      _
    %124 = vsyncpa [#allocation3], 1

// kernel: transformer_forward.12
$region0: #{transformer_forward.12}
  #allocation0 [shape = 'u32[]', space=smem, size = 0x4, offset = 0x4, fixed_abs, tag = 'smem constant byte address 0x4 - core index']
  #allocation1 [shape = 'u32[144,128]{1,0:T(1,128)}', space=vmem, size = 0x12000, scoped, tag = 'internal scratch']
  #allocation2 [shape = 'f32[16,32]{1,0:T(8,128)}', space=vmem, size = 0x2000, scoped, tag = 'scratch operand']
  %s0 = inlined_call_operand.vmem [shape: bf16[16,32], index: 0, kind: input, shape index: {}]
  %s1 = inlined_call_operand.vmem [shape: bf16[32,64], index: 1, kind: input, shape index: {}]
  %s2 = inlined_call_operand.vmem [shape: f32[1,64], index: 2, kind: input, shape index: {}]
  %s3 = inlined_call_operand.vmem [shape: bf16[64,32], index: 3, kind: input, shape index: {}]
  %s4 = inlined_call_operand.vmem [shape: f32[1,32], index: 4, kind: input, shape index: {}]
  %s5 = inlined_call_operand.vmem [shape: f32[1,32], index: 5, kind: input, shape index: {}]
  %s6 = inlined_call_operand.vmem [shape: f32[1,32], index: 6, kind: input, shape index: {}]
  %s7 = inlined_call_operand.vmem [shape: bf16[16,32], index: 7, kind: output, shape index: {}]
  %s8 = sld [smem:[#allocation0]]
  $region46: #{transformer_forward.12} parent=0
    _
  %s10 = ssub.s32 1, %s8
  %s11 = scalar_select 0, %s10, %s8
  // Predicated region
  $region2: #{transformer_forward.12} parent=0 // pred_check
    _
  $region3: #{transformer_forward.12} parent=0 // pred_check_branch
    %13 = sbr.rel (0) target = $region5
  $region4: #{transformer_forward.12} parent=0 // pred_region
    _
  $region5: #{transformer_forward.12} parent=0 // pred_fallthru
    _
  // Predicated region
  $region6: #{transformer_forward.12} parent=0 // pred_check
    _
  $region7: #{transformer_forward.12} parent=0 // pred_check_branch
    %15 = sbr.rel (0) target = $region9
  $region8: #{transformer_forward.12} parent=0 // pred_region
    _
  $region9: #{transformer_forward.12} parent=0 // pred_fallthru
    _
  // Predicated region
  $region10: #{transformer_forward.12} parent=0 // pred_check
    _
  $region11: #{transformer_forward.12} parent=0 // pred_check_branch
    %17 = sbr.rel (0) target = $region13
  $region12: #{transformer_forward.12} parent=0 // pred_region
    _
  $region13: #{transformer_forward.12} parent=0 // pred_fallthru
    _
  // Predicated region
  $region14: #{transformer_forward.12} parent=0 // pred_check
    _
  $region15: #{transformer_forward.12} parent=0 // pred_check_branch
    %19 = sbr.rel (0) target = $region17
  $region16: #{transformer_forward.12} parent=0 // pred_region
    _
  $region17: #{transformer_forward.12} parent=0 // pred_fallthru
    _
  // Predicated region
  $region18: #{transformer_forward.12} parent=0 // pred_check
    _
  $region19: #{transformer_forward.12} parent=0 // pred_check_branch
    %21 = sbr.rel (0) target = $region21
  $region20: #{transformer_forward.12} parent=0 // pred_region
    _
  $region21: #{transformer_forward.12} parent=0 // pred_fallthru
    _
  // Predicated region
  $region22: #{transformer_forward.12} parent=0 // pred_check
    _
  $region23: #{transformer_forward.12} parent=0 // pred_check_branch
    %23 = sbr.rel (0) target = $region25
  $region24: #{transformer_forward.12} parent=0 // pred_region
    _
  $region25: #{transformer_forward.12} parent=0 // pred_fallthru
    _
  // Predicated region
  $region26: #{transformer_forward.12} parent=0 // pred_check
    _
  $region27: #{transformer_forward.12} parent=0 // pred_check_branch
    %25 = sbr.rel (0) target = $region29
  $region28: #{transformer_forward.12} parent=0 // pred_region
    _
  $region29: #{transformer_forward.12} parent=0 // pred_fallthru
    _
  %p27 = scmp.eq.s32.totalorder 0, 0
  // Predicated region
  $region30: #{transformer_forward.12} parent=0 // pred_check
    %p28 = pneg %p27
  $region31: #{transformer_forward.12} parent=0 // pred_check_branch
    %30 = sbr.rel (%p28) target = $region33
  $region32: #{transformer_forward.12} parent=0 // pred_region
    %vm31 = vcmask 261120
    %32 = vst.msk [vmem:[#allocation2] sm:$0xff] %vm31, 0.0
    %33 = vst.msk [vmem:[#allocation2 + $0x8] sm:$0xff] %vm31, 0.0
  $region33: #{transformer_forward.12} parent=0 // pred_fallthru
    _
  %v34 = vld [vmem:[%s0] sm:$0xf]
  %v35 = vld [vmem:[%s0 + $0x4] sm:$0xf]
  %v36 = vld [vmem:[%s1] sm:$0xf]
  %v37 = vld [vmem:[%s1 + $0x4] sm:$0xf]
  %v38 = vld [vmem:[%s1 + $0x8] sm:$0xf]
  %v39 = vld [vmem:[%s1 + $0xc] sm:$0xf]
  %v40 = vld [vmem:[%s2] sm:$0x1]
  %v42 = vlaneseq
  %v43 = vshrl.u32 %v42, 7
  %v44 = vsub.s32 0, %v43
  %v45 = vrot.slane %v40, %v44
  %v49 = vunpack.c.l.b16 %v34
  %v50 = vunpack.c.l.b16 %v35
  %v51 = vpack.c.b16 %v50, %v49
  %v56 = vunpack.c.l.b16 %v36
  %v57 = vunpack.c.l.b16 %v37
  %v58 = vunpack.c.l.b16 %v38
  %v59 = vunpack.c.l.b16 %v39
  %v60 = vpack.c.b16 %v57, %v56
  %v61 = vpack.c.b16 %v59, %v58
  %vm64 = vcmask 261120
  %v66 = vsel %vm64, %v51, 0
  %68 = vmatprep.subr.bf16.mxu0 0
  %69 = vmatpush1.bf16.msra.mxu0 0
  %70 = vmatprep.subr.bf16.mxu0 0
  %71 = vmatpush1.bf16.msra.mxu0 0
  %72 = vmatprep.subr.bf16.mxu0 0
  %73 = vmatpush1.bf16.msra.mxu0 0
  %74 = vmatprep.subr.bf16.mxu0 0
  %75 = vmatpush1.bf16.msra.mxu0 0
  %76 = vmatprep.subr.bf16.mxu0 0
  %77 = vmatpush1.bf16.msra.mxu0 0
  %78 = vmatprep.subr.bf16.mxu0 0
  %79 = vmatpush1.bf16.msra.mxu0 0
  %80 = vmatprep.subr.bf16.mxu0 0
  %81 = vmatpush1.bf16.msra.mxu0 %v61
  %82 = vmatprep.subr.bf16.mxu0 0
  %83 = vmatpush1.bf16.msra.mxu0 %v60
  %84 = vmatprep.subr.bf16.mxu0 0
  %85 = vmatpush2.bf16.msra.mxu0 0
  %86 = vmatprep.subr.bf16.mxu0 0
  %87 = vmatpush2.bf16.msra.mxu0 0
  %88 = vmatprep.subr.bf16.mxu0 0
  %89 = vmatpush2.bf16.msra.mxu0 0
  %90 = vmatprep.subr.bf16.mxu0 0
  %91 = vmatpush2.bf16.msra.mxu0 0
  %92 = vmatprep.subr.bf16.mxu0 0
  %93 = vmatpush2.bf16.msra.mxu0 0
  %94 = vmatprep.subr.bf16.mxu0 0
  %95 = vmatpush2.bf16.msra.mxu0 0
  %96 = vmatprep.subr.bf16.mxu0 0
  %97 = vmatpush2.bf16.msra.mxu0 0
  %98 = vmatprep.subr.bf16.mxu0 0
  %99 = vmatpush2.bf16.msra.mxu0 0
  %100 = vmatprep.mubr.bf16.mxu0 0
  %101 = vmatmul.mubr.bf16.gmra.mxu0 %v66
  %v102 = vpop.f32.mrf.mxu0
  %v103 = vadd.f32 %v45, %v102
  %v104 = vpop.f32.mrf.mxu0
  %v105 = vpop.f32.mrf.mxu0
  %v106 = vadd.f32 %v45, %v105
  %v107 = vpop.f32.mrf.mxu0
  %108 = vdwg.mxu0
  %v109 = vmax.f32 %v103, 0.0
  %v110 = vmax.f32 %v106, 0.0
  %v111 = vld [vmem:[#allocation2] sm:$0xff]
  %v112 = vld [vmem:[#allocation2 + $0x8] sm:$0xff]
  %v113 = vpack.c.bf16 %v110, %v109
  %v114 = vld [vmem:[%s3] sm:$0xf]
  %v115 = vld [vmem:[%s3 + $0x4] sm:$0xf]
  %v116 = vld [vmem:[%s3 + $0x8] sm:$0xf]
  %v117 = vld [vmem:[%s3 + $0xc] sm:$0xf]
  %v118 = vld [vmem:[%s3 + $0x10] sm:$0xf]
  %v119 = vld [vmem:[%s3 + $0x14] sm:$0xf]
  %v120 = vld [vmem:[%s3 + $0x18] sm:$0xf]
  %v121 = vld [vmem:[%s3 + $0x1c] sm:$0xf]
  %v130 = vunpack.c.l.b16 %v114
  %v131 = vunpack.c.l.b16 %v115
  %v132 = vunpack.c.l.b16 %v116
  %v133 = vunpack.c.l.b16 %v117
  %v134 = vunpack.c.l.b16 %v118
  %v135 = vunpack.c.l.b16 %v119
  %v136 = vunpack.c.l.b16 %v120
  %v137 = vunpack.c.l.b16 %v121
  %v138 = vpack.c.b16 %v131, %v130
  %v139 = vpack.c.b16 %v133, %v132
  %v140 = vpack.c.b16 %v135, %v134
  %v141 = vpack.c.b16 %v137, %v136
  %vm146 = vcmask 523264
  %v148 = vsel %vm146, %v113, 0
  %150 = vmatprep.subr.bf16.mxu0 0
  %151 = vmatpush1.bf16.msra.mxu0 0
  %152 = vmatprep.subr.bf16.mxu0 0
  %153 = vmatpush1.bf16.msra.mxu0 0
  %154 = vmatprep.subr.bf16.mxu0 0
  %155 = vmatpush1.bf16.msra.mxu0 0
  %156 = vmatprep.subr.bf16.mxu0 0
  %157 = vmatpush1.bf16.msra.mxu0 0
  %158 = vmatprep.subr.bf16.mxu0 0
  %159 = vmatpush1.bf16.msra.mxu0 %v141
  %160 = vmatprep.subr.bf16.mxu0 0
  %161 = vmatpush1.bf16.msra.mxu0 %v140
  %162 = vmatprep.subr.bf16.mxu0 0
  %163 = vmatpush1.bf16.msra.mxu0 %v139
  %164 = vmatprep.subr.bf16.mxu0 0
  %165 = vmatpush1.bf16.msra.mxu0 %v138
  %166 = vmatprep.subr.bf16.mxu0 0
  %167 = vmatpush2.bf16.msra.mxu0 0
  %168 = vmatprep.subr.bf16.mxu0 0
  %169 = vmatpush2.bf16.msra.mxu0 0
  %170 = vmatprep.subr.bf16.mxu0 0
  %171 = vmatpush2.bf16.msra.mxu0 0
  %172 = vmatprep.subr.bf16.mxu0 0
  %173 = vmatpush2.bf16.msra.mxu0 0
  %174 = vmatprep.subr.bf16.mxu0 0
  %175 = vmatpush2.bf16.msra.mxu0 0
  %176 = vmatprep.subr.bf16.mxu0 0
  %177 = vmatpush2.bf16.msra.mxu0 0
  %178 = vmatprep.subr.bf16.mxu0 0
  %179 = vmatpush2.bf16.msra.mxu0 0
  %180 = vmatprep.subr.bf16.mxu0 0
  %181 = vmatpush2.bf16.msra.mxu0 0
  %182 = vmatprep.mubr.bf16.mxu0 0
  %183 = vmatmul.mubr.bf16.gmra.mxu0 %v148
  %v184 = vpop.f32.mrf.mxu0
  %v185 = vadd.f32 0.0, %v184
  %v186 = vpop.f32.mrf.mxu0
  %v187 = vpop.f32.mrf.mxu0
  %v188 = vadd.f32 0.0, %v187
  %v189 = vpop.f32.mrf.mxu0
  %190 = vdwg.mxu0
  %v191 = vadd.f32 %v111, %v185
  %v192 = vadd.f32 %v112, %v188
  %193 = vst.msk [vmem:[#allocation2] sm:$0xff] %vm64, %v191
  %194 = vst.msk [vmem:[#allocation2 + $0x8] sm:$0xff] %vm64, %v192
  // Predicated region
  $region34: #{transformer_forward.12} parent=0 // pred_check
    %p195 = pneg %p27
  $region35: #{transformer_forward.12} parent=0 // pred_check_branch
    %197 = sbr.rel (%p195) target = $region37
  $region36: #{transformer_forward.12} parent=0 // pred_region
    %v198 = vunpack.c.l.bf16 %v34
    %v199 = vunpack.c.l.bf16 %v35
    %v200 = vld [vmem:[#allocation2] sm:$0xff]
    %v201 = vld [vmem:[#allocation2 + $0x8] sm:$0xff]
    %v202 = vadd.f32 %v198, %v200
    %v203 = vadd.f32 %v199, %v201
    %v204 = vld [vmem:[%s4] sm:$0x1]
    %v206 = vlaneseq
    %v207 = vshrl.u32 %v206, 7
    %v208 = vsub.s32 0, %v207
    %v209 = vrot.slane %v204, %v208
    %v211 = vadd.f32 %v202, %v209
    %v212 = vadd.f32 %v203, %v209
    %v213 = vsel %vm64, %v211, 0.0
    %214 = vadd.xlane.f32.xlu0 %v213
    %v215 = vpop.xlane.xlu0 %214
    %v216 = vsel %vm64, %v212, 0.0
    %217 = vadd.xlane.f32.xlu0 %v216
    %v218 = vpop.xlane.xlu0 %217
    %v219 = vrcp.pop 32.0
    %v220 = vmul.f32 %v215, %v219
    %v221 = vmul.f32 %v218, %v219
    %v222 = vsub.f32 %v211, %v220
    %v223 = vsub.f32 %v212, %v221
    %v224 = vmul.f32 %v222, %v222
    %v225 = vmul.f32 %v223, %v223
    %v226 = vsel %vm64, %v224, 0.0
    %227 = vadd.xlane.f32.xlu0 %v226
    %v228 = vpop.xlane.xlu0 %227
    %v229 = vsel %vm64, %v225, 0.0
    %230 = vadd.xlane.f32.xlu0 %v229
    %v231 = vpop.xlane.xlu0 %230
    %v232 = vmul.f32 %v228, %v219
    %v233 = vmul.f32 %v231, %v219
    %v234 = vadd.f32 %v232, 1e-05
    %v235 = vadd.f32 %v233, 1e-05
    %v236 = vrsqrt.pop %v234
    %v237 = vrsqrt.pop %v235
    %v238 = vmul.f32 %v222, %v236
    %v239 = vmul.f32 %v223, %v237
    %v240 = vld [vmem:[%s5] sm:$0x1]
    %v242 = vlaneseq
    %v243 = vshrl.u32 %v242, 7
    %v244 = vsub.s32 0, %v243
    %v245 = vrot.slane %v240, %v244
    %v247 = vmul.f32 %v238, %v245
    %v248 = vmul.f32 %v239, %v245
    %v249 = vld [vmem:[%s6] sm:$0x1]
    %v251 = vlaneseq
    %v252 = vshrl.u32 %v251, 7
    %v253 = vsub.s32 0, %v252
    %v254 = vrot.slane %v249, %v253
    %v256 = vadd.f32 %v247, %v254
    %v257 = vadd.f32 %v248, %v254
    %v258 = vpack.c.bf16 %v257, %v256
    %v260 = vunpack.c.l.b16 %v258
    %v261 = vunpack.c.h.b16 %v258
    %v262 = vpack.c.b16 %v260, %v260
    %v263 = vpack.c.b16 %v261, %v261
    %vm266 = vcmask 257024
    %267 = vst.msk [vmem:[%s7] sm:$0xf] %vm266, %v262
    %268 = vst.msk [vmem:[%s7 + $0x4] sm:$0xf] %vm266, %v263
  $region37: #{transformer_forward.12} parent=0 // pred_fallthru
    _
  // Predicated region
  $region38: #{transformer_forward.12} parent=0 // pred_check
    _
  $region39: #{transformer_forward.12} parent=0 // pred_check_branch
    %270 = sbr.rel (0) target = $region41
  $region40: #{transformer_forward.12} parent=0 // pred_region
    _
  $region41: #{transformer_forward.12} parent=0 // pred_fallthru
    _
  // Predicated region
  $region42: #{transformer_forward.12} parent=0 // pred_check
    _
  $region43: #{transformer_forward.12} parent=0 // pred_check_branch
    %272 = sbr.rel (0) target = $region45
  $region44: #{transformer_forward.12} parent=0 // pred_region
    _
  $region45: #{transformer_forward.12} parent=0 // pred_fallthru
    _

// kernel: transformer_forward.11
$region0: #{transformer_forward.11}
  #allocation0 [shape = 'u32[]', space=smem, size = 0x4, offset = 0x4, fixed_abs, tag = 'smem constant byte address 0x4 - core index']
  #allocation1 [shape = 'u32[144,128]{1,0:T(1,128)}', space=vmem, size = 0x12000, scoped, tag = 'internal scratch']
  #allocation2 [shape = 'bf16[8,32]{1,0:T(8,128)(2,1)}', space=vmem, size = 0x800, scoped, tag = 'scratch operand']
  #allocation3 [shape = 'f32[4,8,1]{2,1,0:T(8,128)}', space=vmem, size = 0x4000, scoped, tag = 'scratch operand']
  #allocation4 [shape = 'f32[4,8,1]{2,1,0:T(8,128)}', space=vmem, size = 0x4000, scoped, tag = 'scratch operand']
  #allocation5 [shape = 'f32[4,8,8]{2,1,0:T(8,128)}', space=vmem, size = 0x4000, scoped, tag = 'scratch operand']
  %s0 = inlined_call_operand.vmem [shape: s32[2,1,8], index: 0, kind: input, shape index: {}]
  %s1 = inlined_call_operand.vmem [shape: bf16[2,8,32], index: 1, kind: input, shape index: {}, may-alias: {1,2}]
  %s2 = inlined_call_operand.vmem [shape: bf16[2,8,32], index: 2, kind: input, shape index: {}, may-alias: {1,2}]
  %s3 = inlined_call_operand.vmem [shape: bf16[32,32], index: 3, kind: input, shape index: {}]
  %s4 = inlined_call_operand.vmem [shape: f32[1,32], index: 4, kind: input, shape index: {}]
  %s5 = inlined_call_operand.vmem [shape: bf16[32,32], index: 5, kind: input, shape index: {}]
  %s6 = inlined_call_operand.vmem [shape: f32[1,32], index: 6, kind: input, shape index: {}]
  %s7 = inlined_call_operand.vmem [shape: bf16[32,32], index: 7, kind: input, shape index: {}]
  %s8 = inlined_call_operand.vmem [shape: f32[1,32], index: 8, kind: input, shape index: {}]
  %s9 = inlined_call_operand.vmem [shape: bf16[32,32], index: 9, kind: input, shape index: {}]
  %s10 = inlined_call_operand.vmem [shape: f32[1,32], index: 10, kind: input, shape index: {}]
  %s11 = inlined_call_operand.vmem [shape: f32[1,32], index: 11, kind: input, shape index: {}]
  %s12 = inlined_call_operand.vmem [shape: f32[1,32], index: 12, kind: input, shape index: {}]
  %s13 = inlined_call_operand.vmem [shape: bf16[2,8,32], index: 13, kind: output, shape index: {}]
  %s14 = sld [smem:[#allocation0]]
  $region93: #{transformer_forward.11} parent=0
    _
  %s16 = ssub.s32 1, %s14
  %s17 = scalar_select 0, %s16, %s14
  loop: start=0, step=1, limit=4
  $region2: #{transformer_forward.11} parent=0 // loop_pre_header
    _
  $region3: #{transformer_forward.11} parent=0 // loop_header
    %s19 = sphi 0, %s23
    %p20 = scmp.ge.s32.totalorder %s19, 4
    %s26 = sphi 0, %s45
    %s27 = sphi 0, %s41
    %s28 = sphi 0, %s37
    %s29 = sphi 0, %s26
    %s30 = sphi 0, %s27
    %s31 = sphi 0, %s28
    %s32 = sphi 0, %s29
    %s33 = sphi 0, %s30
    %s34 = sphi 0, %s31
    %s50 = sphi 0, %s52
    %s53 = sphi 0, %s50
    %s54 = sphi 0, %s53
    %s70 = sphi 0, %s54
    %s78 = sphi 0, %s80
    %s81 = sphi 0, %s78
    %s82 = sphi 0, %s81
    %s98 = sphi 0, %s82
    %s106 = sphi 0, %s108
    %s109 = sphi 0, %s106
    %s110 = sphi 0, %s109
    %s126 = sphi 0, %s110
    %s130 = sphi 0, %s130
    %s132 = sphi 0, %s130
    %s133 = sphi 0, %s132
    %s147 = sphi 0, %s133
    %s151 = sphi 0, %s151
    %s153 = sphi 0, %s151
    %s154 = sphi 0, %s153
    %s168 = sphi 0, %s154
    %s172 = sphi 0, %s172
    %s174 = sphi 0, %s172
    %s175 = sphi 0, %s174
    %s189 = sphi 0, %s175
    %s193 = sphi 0, %s193
    %s195 = sphi 0, %s193
    %s196 = sphi 0, %s195
    %s210 = sphi 0, %s196
    %s214 = sphi 0, %s214
    %s216 = sphi 0, %s214
    %s217 = sphi 0, %s216
    %s231 = sphi 0, %s217
    %s235 = sphi 0, %s235
    %s237 = sphi 0, %s235
    %s238 = sphi 0, %s237
    %s252 = sphi 0, %s238
    %s256 = sphi 0, %s256
    %s258 = sphi 0, %s256
    %s259 = sphi 0, %s258
    %s273 = sphi 0, %s259
    %s277 = sphi 0, %s277
    %s279 = sphi 0, %s277
    %s280 = sphi 0, %s279
    %s294 = sphi 0, %s280
    %s298 = sphi 0, %s298
    %s300 = sphi 0, %s298
    %s301 = sphi 0, %s300
    %s315 = sphi 0, %s301
    %s319 = sphi 0, %s319
    %s321 = sphi 0, %s319
    %s322 = sphi 0, %s321
    %s336 = sphi 0, %s322
    %s344 = sphi 0, %s346
    %s347 = sphi 0, %s344
    %s348 = sphi 0, %s347
    %s364 = sphi 0, %s348
  $region4: #{transformer_forward.11} parent=0 // loop_header_branch
    %22 = sbr.rel (%p20) target = $region8
  $region5: #{transformer_forward.11} parent=0 // loop_body
    %s24 = ssub.s32 %s19, 1
    %s25 = ssub.s32 %s19, 2
    %s35 = sadd.s32 1, %s28
    %p36 = scmp.ge.s32.totalorder %s35, 1
    %s37 = scalar_select %p36, 0, %s35
    %s38 = sadd.s32 1, %s27
    %s39 = scalar_select %p36, %s38, %s27
    %p40 = scmp.ge.s32.totalorder %s39, 1
    %s41 = scalar_select %p40, 0, %s39
    %s42 = sadd.s32 1, %s26
    %s43 = scalar_select %p40, %s42, %s26
    %p44 = scmp.ge.s32.totalorder %s43, 2
    %s45 = scalar_select %p44, 0, %s43
    %s46 = ssub.s32 %s26, %s45
    %s47 = ssub.s32 %s28, %s37
    %s48 = sor.u32 %s46, %s47
    %p49 = scmp.eq.s32.totalorder %s48, 0
    %s51 = sadd.s32 %s50, 1
    %s52 = scalar_select %p49, %s50, %s51
    %p55 = pneg %p49
    %p56 = scmp.eq.s32.totalorder %s19, 1
    %p57 = por %p55, %p56
    %p58 = scmp.ne.s32.totalorder %s50, %s53
    %p59 = scmp.eq.s32.totalorder %s19, 0
    %p60 = por %p58, %p59
    %p61 = scmp.ne.s32.totalorder %s50, %s53
    %p62 = scmp.eq.s32.totalorder %s24, 1
    %p63 = por %p61, %p62
    %p64 = scmp.ne.s32.totalorder %s53, %s54
    %p65 = scmp.eq.s32.totalorder %s24, 0
    %p66 = por %p64, %p65
    %p67 = scmp.ne.s32.totalorder %s53, %s54
    %p68 = scmp.eq.s32.totalorder %s25, 1
    %p69 = por %p67, %p68
    %p71 = scmp.ne.s32.totalorder %s54, %s70
    %p72 = scmp.eq.s32.totalorder %s25, 0
    %p73 = por %p71, %p72
    %s74 = ssub.s32 %s26, %s45
    %s75 = ssub.s32 %s27, %s41
    %s76 = sor.u32 %s74, %s75
    %p77 = scmp.eq.s32.totalorder %s76, 0
    %s79 = sadd.s32 %s78, 1
    %s80 = scalar_select %p77, %s78, %s79
    %p83 = pneg %p77
    %p84 = scmp.eq.s32.totalorder %s19, 1
    %p85 = por %p83, %p84
    %p86 = scmp.ne.s32.totalorder %s78, %s81
    %p87 = scmp.eq.s32.totalorder %s19, 0
    %p88 = por %p86, %p87
    %p89 = scmp.ne.s32.totalorder %s78, %s81
    %p90 = scmp.eq.s32.totalorder %s24, 1
    %p91 = por %p89, %p90
    %p92 = scmp.ne.s32.totalorder %s81, %s82
    %p93 = scmp.eq.s32.totalorder %s24, 0
    %p94 = por %p92, %p93
    %p95 = scmp.ne.s32.totalorder %s81, %s82
    %p96 = scmp.eq.s32.totalorder %s25, 1
    %p97 = por %p95, %p96
    %p99 = scmp.ne.s32.totalorder %s82, %s98
    %p100 = scmp.eq.s32.totalorder %s25, 0
    %p101 = por %p99, %p100
    %s102 = ssub.s32 %s26, %s45
    %s103 = ssub.s32 %s28, %s37
    %s104 = sor.u32 %s102, %s103
    %p105 = scmp.eq.s32.totalorder %s104, 0
    %s107 = sadd.s32 %s106, 1
    %s108 = scalar_select %p105, %s106, %s107
    %p111 = pneg %p105
    %p112 = scmp.eq.s32.totalorder %s19, 1
    %p113 = por %p111, %p112
    %p114 = scmp.ne.s32.totalorder %s106, %s109
    %p115 = scmp.eq.s32.totalorder %s19, 0
    %p116 = por %p114, %p115
    %p117 = scmp.ne.s32.totalorder %s106, %s109
    %p118 = scmp.eq.s32.totalorder %s24, 1
    %p119 = por %p117, %p118
    %p120 = scmp.ne.s32.totalorder %s109, %s110
    %p121 = scmp.eq.s32.totalorder %s24, 0
    %p122 = por %p120, %p121
    %p123 = scmp.ne.s32.totalorder %s109, %s110
    %p124 = scmp.eq.s32.totalorder %s25, 1
    %p125 = por %p123, %p124
    %p127 = scmp.ne.s32.totalorder %s110, %s126
    %p128 = scmp.eq.s32.totalorder %s25, 0
    %p129 = por %p127, %p128
    %s131 = sadd.s32 %s130, 1
    %p134 = scmp.eq.s32.totalorder %s19, 1
    %p135 = scmp.ne.s32.totalorder %s130, %s132
    %p136 = scmp.eq.s32.totalorder %s19, 0
    %p137 = por %p135, %p136
    %p138 = scmp.ne.s32.totalorder %s130, %s132
    %p139 = scmp.eq.s32.totalorder %s24, 1
    %p140 = por %p138, %p139
    %p141 = scmp.ne.s32.totalorder %s132, %s133
    %p142 = scmp.eq.s32.totalorder %s24, 0
    %p143 = por %p141, %p142
    %p144 = scmp.ne.s32.totalorder %s132, %s133
    %p145 = scmp.eq.s32.totalorder %s25, 1
    %p146 = por %p144, %p145
    %p148 = scmp.ne.s32.totalorder %s133, %s147
    %p149 = scmp.eq.s32.totalorder %s25, 0
    %p150 = por %p148, %p149
    %s152 = sadd.s32 %s151, 1
    %p155 = scmp.eq.s32.totalorder %s19, 1
    %p156 = scmp.ne.s32.totalorder %s151, %s153
    %p157 = scmp.eq.s32.totalorder %s19, 0
    %p158 = por %p156, %p157
    %p159 = scmp.ne.s32.totalorder %s151, %s153
    %p160 = scmp.eq.s32.totalorder %s24, 1
    %p161 = por %p159, %p160
    %p162 = scmp.ne.s32.totalorder %s153, %s154
    %p163 = scmp.eq.s32.totalorder %s24, 0
    %p164 = por %p162, %p163
    %p165 = scmp.ne.s32.totalorder %s153, %s154
    %p166 = scmp.eq.s32.totalorder %s25, 1
    %p167 = por %p165, %p166
    %p169 = scmp.ne.s32.totalorder %s154, %s168
    %p170 = scmp.eq.s32.totalorder %s25, 0
    %p171 = por %p169, %p170
    %s173 = sadd.s32 %s172, 1
    %p176 = scmp.eq.s32.totalorder %s19, 1
    %p177 = scmp.ne.s32.totalorder %s172, %s174
    %p178 = scmp.eq.s32.totalorder %s19, 0
    %p179 = por %p177, %p178
    %p180 = scmp.ne.s32.totalorder %s172, %s174
    %p181 = scmp.eq.s32.totalorder %s24, 1
    %p182 = por %p180, %p181
    %p183 = scmp.ne.s32.totalorder %s174, %s175
    %p184 = scmp.eq.s32.totalorder %s24, 0
    %p185 = por %p183, %p184
    %p186 = scmp.ne.s32.totalorder %s174, %s175
    %p187 = scmp.eq.s32.totalorder %s25, 1
    %p188 = por %p186, %p187
    %p190 = scmp.ne.s32.totalorder %s175, %s189
    %p191 = scmp.eq.s32.totalorder %s25, 0
    %p192 = por %p190, %p191
    %s194 = sadd.s32 %s193, 1
    %p197 = scmp.eq.s32.totalorder %s19, 1
    %p198 = scmp.ne.s32.totalorder %s193, %s195
    %p199 = scmp.eq.s32.totalorder %s19, 0
    %p200 = por %p198, %p199
    %p201 = scmp.ne.s32.totalorder %s193, %s195
    %p202 = scmp.eq.s32.totalorder %s24, 1
    %p203 = por %p201, %p202
    %p204 = scmp.ne.s32.totalorder %s195, %s196
    %p205 = scmp.eq.s32.totalorder %s24, 0
    %p206 = por %p204, %p205
    %p207 = scmp.ne.s32.totalorder %s195, %s196
    %p208 = scmp.eq.s32.totalorder %s25, 1
    %p209 = por %p207, %p208
    %p211 = scmp.ne.s32.totalorder %s196, %s210
    %p212 = scmp.eq.s32.totalorder %s25, 0
    %p213 = por %p211, %p212
    %s215 = sadd.s32 %s214, 1
    %p218 = scmp.eq.s32.totalorder %s19, 1
    %p219 = scmp.ne.s32.totalorder %s214, %s216
    %p220 = scmp.eq.s32.totalorder %s19, 0
    %p221 = por %p219, %p220
    %p222 = scmp.ne.s32.totalorder %s214, %s216
    %p223 = scmp.eq.s32.totalorder %s24, 1
    %p224 = por %p222, %p223
    %p225 = scmp.ne.s32.totalorder %s216, %s217
    %p226 = scmp.eq.s32.totalorder %s24, 0
    %p227 = por %p225, %p226
    %p228 = scmp.ne.s32.totalorder %s216, %s217
    %p229 = scmp.eq.s32.totalorder %s25, 1
    %p230 = por %p228, %p229
    %p232 = scmp.ne.s32.totalorder %s217, %s231
    %p233 = scmp.eq.s32.totalorder %s25, 0
    %p234 = por %p232, %p233
    %s236 = sadd.s32 %s235, 1
    %p239 = scmp.eq.s32.totalorder %s19, 1
    %p240 = scmp.ne.s32.totalorder %s235, %s237
    %p241 = scmp.eq.s32.totalorder %s19, 0
    %p242 = por %p240, %p241
    %p243 = scmp.ne.s32.totalorder %s235, %s237
    %p244 = scmp.eq.s32.totalorder %s24, 1
    %p245 = por %p243, %p244
    %p246 = scmp.ne.s32.totalorder %s237, %s238
    %p247 = scmp.eq.s32.totalorder %s24, 0
    %p248 = por %p246, %p247
    %p249 = scmp.ne.s32.totalorder %s237, %s238
    %p250 = scmp.eq.s32.totalorder %s25, 1
    %p251 = por %p249, %p250
    %p253 = scmp.ne.s32.totalorder %s238, %s252
    %p254 = scmp.eq.s32.totalorder %s25, 0
    %p255 = por %p253, %p254
    %s257 = sadd.s32 %s256, 1
    %p260 = scmp.eq.s32.totalorder %s19, 1
    %p261 = scmp.ne.s32.totalorder %s256, %s258
    %p262 = scmp.eq.s32.totalorder %s19, 0
    %p263 = por %p261, %p262
    %p264 = scmp.ne.s32.totalorder %s256, %s258
    %p265 = scmp.eq.s32.totalorder %s24, 1
    %p266 = por %p264, %p265
    %p267 = scmp.ne.s32.totalorder %s258, %s259
    %p268 = scmp.eq.s32.totalorder %s24, 0
    %p269 = por %p267, %p268
    %p270 = scmp.ne.s32.totalorder %s258, %s259
    %p271 = scmp.eq.s32.totalorder %s25, 1
    %p272 = por %p270, %p271
    %p274 = scmp.ne.s32.totalorder %s259, %s273
    %p275 = scmp.eq.s32.totalorder %s25, 0
    %p276 = por %p274, %p275
    %s278 = sadd.s32 %s277, 1
    %p281 = scmp.eq.s32.totalorder %s19, 1
    %p282 = scmp.ne.s32.totalorder %s277, %s279
    %p283 = scmp.eq.s32.totalorder %s19, 0
    %p284 = por %p282, %p283
    %p285 = scmp.ne.s32.totalorder %s277, %s279
    %p286 = scmp.eq.s32.totalorder %s24, 1
    %p287 = por %p285, %p286
    %p288 = scmp.ne.s32.totalorder %s279, %s280
    %p289 = scmp.eq.s32.totalorder %s24, 0
    %p290 = por %p288, %p289
    %p291 = scmp.ne.s32.totalorder %s279, %s280
    %p292 = scmp.eq.s32.totalorder %s25, 1
    %p293 = por %p291, %p292
    %p295 = scmp.ne.s32.totalorder %s280, %s294
    %p296 = scmp.eq.s32.totalorder %s25, 0
    %p297 = por %p295, %p296
    %s299 = sadd.s32 %s298, 1
    %p302 = scmp.eq.s32.totalorder %s19, 1
    %p303 = scmp.ne.s32.totalorder %s298, %s300
    %p304 = scmp.eq.s32.totalorder %s19, 0
    %p305 = por %p303, %p304
    %p306 = scmp.ne.s32.totalorder %s298, %s300
    %p307 = scmp.eq.s32.totalorder %s24, 1
    %p308 = por %p306, %p307
    %p309 = scmp.ne.s32.totalorder %s300, %s301
    %p310 = scmp.eq.s32.totalorder %s24, 0
    %p311 = por %p309, %p310
    %p312 = scmp.ne.s32.totalorder %s300, %s301
    %p313 = scmp.eq.s32.totalorder %s25, 1
    %p314 = por %p312, %p313
    %p316 = scmp.ne.s32.totalorder %s301, %s315
    %p317 = scmp.eq.s32.totalorder %s25, 0
    %p318 = por %p316, %p317
    %s320 = sadd.s32 %s319, 1
    %p323 = scmp.eq.s32.totalorder %s19, 1
    %p324 = scmp.ne.s32.totalorder %s319, %s321
    %p325 = scmp.eq.s32.totalorder %s19, 0
    %p326 = por %p324, %p325
    %p327 = scmp.ne.s32.totalorder %s319, %s321
    %p328 = scmp.eq.s32.totalorder %s24, 1
    %p329 = por %p327, %p328
    %p330 = scmp.ne.s32.totalorder %s321, %s322
    %p331 = scmp.eq.s32.totalorder %s24, 0
    %p332 = por %p330, %p331
    %p333 = scmp.ne.s32.totalorder %s321, %s322
    %p334 = scmp.eq.s32.totalorder %s25, 1
    %p335 = por %p333, %p334
    %p337 = scmp.ne.s32.totalorder %s322, %s336
    %p338 = scmp.eq.s32.totalorder %s25, 0
    %p339 = por %p337, %p338
    %s340 = ssub.s32 %s26, %s45
    %s341 = ssub.s32 %s27, %s41
    %s342 = sor.u32 %s340, %s341
    %p343 = scmp.eq.s32.totalorder %s342, 0
    %s345 = sadd.s32 %s344, 1
    %s346 = scalar_select %p343, %s344, %s345
    %p349 = pneg %p343
    %p350 = scmp.eq.s32.totalorder %s19, 1
    %p351 = por %p349, %p350
    %p352 = scmp.ne.s32.totalorder %s344, %s347
    %p353 = scmp.eq.s32.totalorder %s19, 0
    %p354 = por %p352, %p353
    %p355 = scmp.ne.s32.totalorder %s344, %s347
    %p356 = scmp.eq.s32.totalorder %s24, 1
    %p357 = por %p355, %p356
    %p358 = scmp.ne.s32.totalorder %s347, %s348
    %p359 = scmp.eq.s32.totalorder %s24, 0
    %p360 = por %p358, %p359
    %p361 = scmp.ne.s32.totalorder %s347, %s348
    %p362 = scmp.eq.s32.totalorder %s25, 1
    %p363 = por %p361, %p362
    %p365 = scmp.ne.s32.totalorder %s348, %s364
    %p366 = scmp.eq.s32.totalorder %s25, 0
    %p367 = por %p365, %p366
    %p368 = scmp.le.s32.totalorder 1, %s19
    %p369 = scmp.lt.s32.totalorder %s19, 3
    %p370 = pnand %p368, %p369
    %p371 = pneg %p370
    // Predicated region
    $region9: #{transformer_forward.11} parent=5 // pred_check
      _
    $region10: #{transformer_forward.11} parent=5 // pred_check_branch
      %373 = sbr.rel (%p370) target = $region12
    $region11: #{transformer_forward.11} parent=5 // pred_region
      %s374 = ssub.s32 %s19, 1
      // Predicated region
      $region13: #{transformer_forward.11} parent=11 // pred_check
        %p375 = pneg %p143
      $region14: #{transformer_forward.11} parent=11 // pred_check_branch
        %377 = sbr.rel (%p375) target = $region16
      $region15: #{transformer_forward.11} parent=11 // pred_region
        _
      $region16: #{transformer_forward.11} parent=11 // pred_fallthru
        _
      // Predicated region
      $region17: #{transformer_forward.11} parent=11 // pred_check
        %p378 = pneg %p164
      $region18: #{transformer_forward.11} parent=11 // pred_check_branch
        %380 = sbr.rel (%p378) target = $region20
      $region19: #{transformer_forward.11} parent=11 // pred_region
        _
      $region20: #{transformer_forward.11} parent=11 // pred_fallthru
        _
      // Predicated region
      $region21: #{transformer_forward.11} parent=11 // pred_check
        %p381 = pneg %p185
      $region22: #{transformer_forward.11} parent=11 // pred_check_branch
        %383 = sbr.rel (%p381) target = $region24
      $region23: #{transformer_forward.11} parent=11 // pred_region
        _
      $region24: #{transformer_forward.11} parent=11 // pred_fallthru
        _
      // Predicated region
      $region25: #{transformer_forward.11} parent=11 // pred_check
        %p384 = pneg %p206
      $region26: #{transformer_forward.11} parent=11 // pred_check_branch
        %386 = sbr.rel (%p384) target = $region28
      $region27: #{transformer_forward.11} parent=11 // pred_region
        _
      $region28: #{transformer_forward.11} parent=11 // pred_fallthru
        _
      // Predicated region
      $region29: #{transformer_forward.11} parent=11 // pred_check
        %p387 = pneg %p227
      $region30: #{transformer_forward.11} parent=11 // pred_check_branch
        %389 = sbr.rel (%p387) target = $region32
      $region31: #{transformer_forward.11} parent=11 // pred_region
        _
      $region32: #{transformer_forward.11} parent=11 // pred_fallthru
        _
      // Predicated region
      $region33: #{transformer_forward.11} parent=11 // pred_check
        %p390 = pneg %p248
      $region34: #{transformer_forward.11} parent=11 // pred_check_branch
        %392 = sbr.rel (%p390) target = $region36
      $region35: #{transformer_forward.11} parent=11 // pred_region
        _
      $region36: #{transformer_forward.11} parent=11 // pred_fallthru
        _
      // Predicated region
      $region37: #{transformer_forward.11} parent=11 // pred_check
        %p393 = pneg %p269
      $region38: #{transformer_forward.11} parent=11 // pred_check_branch
        %395 = sbr.rel (%p393) target = $region40
      $region39: #{transformer_forward.11} parent=11 // pred_region
        _
      $region40: #{transformer_forward.11} parent=11 // pred_fallthru
        _
      // Predicated region
      $region41: #{transformer_forward.11} parent=11 // pred_check
        %p396 = pneg %p290
      $region42: #{transformer_forward.11} parent=11 // pred_check_branch
        %398 = sbr.rel (%p396) target = $region44
      $region43: #{transformer_forward.11} parent=11 // pred_region
        _
      $region44: #{transformer_forward.11} parent=11 // pred_fallthru
        _
      // Predicated region
      $region45: #{transformer_forward.11} parent=11 // pred_check
        %p399 = pneg %p311
      $region46: #{transformer_forward.11} parent=11 // pred_check_branch
        %401 = sbr.rel (%p399) target = $region48
      $region47: #{transformer_forward.11} parent=11 // pred_region
        _
      $region48: #{transformer_forward.11} parent=11 // pred_fallthru
        _
      // Predicated region
      $region49: #{transformer_forward.11} parent=11 // pred_check
        %p402 = pneg %p332
      $region50: #{transformer_forward.11} parent=11 // pred_check_branch
        %404 = sbr.rel (%p402) target = $region52
      $region51: #{transformer_forward.11} parent=11 // pred_region
        _
      $region52: #{transformer_forward.11} parent=11 // pred_fallthru
        _
    $region12: #{transformer_forward.11} parent=5 // pred_fallthru
      _
    %p405 = scmp.lt.s32.totalorder %s19, 2
    // Predicated region
    $region53: #{transformer_forward.11} parent=5 // pred_check
      %p406 = pneg %p405
    $region54: #{transformer_forward.11} parent=5 // pred_check_branch
      %408 = sbr.rel (%p406) target = $region56
    $region55: #{transformer_forward.11} parent=5 // pred_region
      // Predicated region
      $region57: #{transformer_forward.11} parent=55 // pred_check
        %p409 = pneg %p60
      $region58: #{transformer_forward.11} parent=55 // pred_check_branch
        %411 = sbr.rel (%p409) target = $region60
      $region59: #{transformer_forward.11} parent=55 // pred_region
        %p412 = scmp.lt.s32.totalorder %s26, 1
        %s413 = scalar_select %p412, %s26, 1
        %p414 = scmp.lt.s32.totalorder %s28, 0
        %s415 = scalar_select %p414, %s28, 0
        %s416 = sadd.s32 %s415, %s413
        %s417 = scalar_lea.vmem %s0, %s416
      $region60: #{transformer_forward.11} parent=55 // pred_fallthru
        _
      // Predicated region
      $region61: #{transformer_forward.11} parent=55 // pred_check
        %p418 = pneg %p88
      $region62: #{transformer_forward.11} parent=55 // pred_check_branch
        %420 = sbr.rel (%p418) target = $region64
      $region63: #{transformer_forward.11} parent=55 // pred_region
        %p421 = scmp.lt.s32.totalorder %s26, 1
        %s422 = scalar_select %p421, %s26, 1
        %p423 = scmp.lt.s32.totalorder %s27, 0
        %s424 = scalar_select %p423, %s27, 0
        %s425 = sadd.s32 %s424, %s422
        %s426 = smul.addr %s425, 4
        %s427 = scalar_lea.vmem %s1, %s426
      $region64: #{transformer_forward.11} parent=55 // pred_fallthru
        _
      // Predicated region
      $region65: #{transformer_forward.11} parent=55 // pred_check
        %p428 = pneg %p116
      $region66: #{transformer_forward.11} parent=55 // pred_check_branch
        %430 = sbr.rel (%p428) target = $region68
      $region67: #{transformer_forward.11} parent=55 // pred_region
        %p431 = scmp.lt.s32.totalorder %s26, 1
        %s432 = scalar_select %p431, %s26, 1
        %p433 = scmp.lt.s32.totalorder %s28, 0
        %s434 = scalar_select %p433, %s28, 0
        %s435 = sadd.s32 %s434, %s432
        %s436 = smul.addr %s435, 4
        %s437 = scalar_lea.vmem %s2, %s436
      $region68: #{transformer_forward.11} parent=55 // pred_fallthru
        _
    $region56: #{transformer_forward.11} parent=5 // pred_fallthru
      _
    %p438 = scmp.le.s32.totalorder 1, %s19
    %p439 = scmp.lt.s32.totalorder %s19, 3
    %p440 = pnand %p438, %p439
    %p441 = pneg %p440
    // Predicated region
    $region69: #{transformer_forward.11} parent=5 // pred_check
      _
    $region70: #{transformer_forward.11} parent=5 // pred_check_branch
      %443 = sbr.rel (%p440) target = $region72
    $region71: #{transformer_forward.11} parent=5 // pred_region
      %s444 = ssub.s32 %s19, 1
      %p445 = scmp.lt.s32.totalorder %s29, 1
      %s446 = scalar_select %p445, %s29, 1
      %p447 = scmp.lt.s32.totalorder %s31, 0
      %s448 = scalar_select %p447, %s31, 0
      %s449 = sadd.s32 %s448, %s446
      %s450 = scalar_lea.vmem %s0, %s449
      %p451 = pneg %p66
      %p452 = pneg %p63
      %p453 = scmp.lt.s32.totalorder %s29, 1
      %s454 = scalar_select %p453, %s29, 1
      %p455 = scmp.lt.s32.totalorder %s30, 0
      %s456 = scalar_select %p455, %s30, 0
      %s457 = sadd.s32 %s456, %s454
      %s458 = smul.addr %s457, 4
      %s459 = scalar_lea.vmem %s1, %s458
      %p460 = pneg %p94
      %p461 = pneg %p91
      %p462 = scmp.lt.s32.totalorder %s29, 1
      %s463 = scalar_select %p462, %s29, 1
      %p464 = scmp.lt.s32.totalorder %s31, 0
      %s465 = scalar_select %p464, %s31, 0
      %s466 = sadd.s32 %s465, %s463
      %s467 = smul.addr %s466, 4
      %s468 = scalar_lea.vmem %s2, %s467
      %p469 = pneg %p122
      %p470 = pneg %p119
      %p471 = pneg %p143
      %p472 = pneg %p140
      %p473 = pneg %p164
      %p474 = pneg %p161
      %p475 = pneg %p185
      %p476 = pneg %p182
      %p477 = pneg %p206
      %p478 = pneg %p203
      %p479 = pneg %p227
      %p480 = pneg %p224
      %p481 = pneg %p248
      %p482 = pneg %p245
      %p483 = pneg %p269
      %p484 = pneg %p266
      %p485 = pneg %p290
      %p486 = pneg %p287
      %p487 = pneg %p311
      %p488 = pneg %p308
      %p489 = pneg %p332
      %p490 = pneg %p329
      %p491 = pneg %p360
      %p492 = pneg %p357
      %p493 = scmp.lt.s32.totalorder %s29, 1
      %s494 = scalar_select %p493, %s29, 1
      %p495 = scmp.lt.s32.totalorder %s30, 0
      %s496 = scalar_select %p495, %s30, 0
      %s497 = sadd.s32 %s496, %s494
      %s498 = smul.addr %s497, 4
      %s499 = scalar_lea.vmem %s13, %s498
      %p500 = scmp.lt.s32.totalorder %s29, 1
      %s501 = scalar_select %p500, %s29, 1
      %p502 = scmp.lt.s32.totalorder %s31, 0
      %s503 = scalar_select %p502, %s31, 0
      %s504 = sadd.s32 %s503, %s501
      %s505 = scalar_lea.vmem %s0, %s504
      %p506 = scmp.lt.s32.totalorder %s29, 1
      %s507 = scalar_select %p506, %s29, 1
      %p508 = scmp.lt.s32.totalorder %s30, 0
      %s509 = scalar_select %p508, %s30, 0
      %s510 = sadd.s32 %s509, %s507
      %s511 = smul.addr %s510, 4
      %s512 = scalar_lea.vmem %s1, %s511
      %p513 = scmp.lt.s32.totalorder %s29, 1
      %s514 = scalar_select %p513, %s29, 1
      %p515 = scmp.lt.s32.totalorder %s31, 0
      %s516 = scalar_select %p515, %s31, 0
      %s517 = sadd.s32 %s516, %s514
      %s518 = smul.addr %s517, 4
      %s519 = scalar_lea.vmem %s2, %s518
      %p520 = scmp.lt.s32.totalorder %s29, 1
      %s521 = scalar_select %p520, %s29, 1
      %p522 = scmp.lt.s32.totalorder %s30, 0
      %s523 = scalar_select %p522, %s30, 0
      %s524 = sadd.s32 %s523, %s521
      %s525 = smul.addr %s524, 4
      %s526 = scalar_lea.vmem %s13, %s525
      %p528 = scmp.eq.s32.totalorder %s31, 0
      // Predicated region
      $region73: #{transformer_forward.11} parent=71 // pred_check
        %p529 = pneg %p528
      $region74: #{transformer_forward.11} parent=71 // pred_check_branch
        %531 = sbr.rel (%p529) target = $region76
      $region75: #{transformer_forward.11} parent=71 // pred_region
        %v532 = vld [vmem:[%s512] sm:$0xf]
        %v533 = vld [vmem:[%s3] sm:$0xf]
        %v534 = vld [vmem:[%s3 + $0x4] sm:$0xf]
        %v535 = vld [vmem:[%s3 + $0x8] sm:$0xf]
        %v536 = vld [vmem:[%s3 + $0xc] sm:$0xf]
        %v537 = vld [vmem:[%s4] sm:$0x1]
        %v539 = vlaneseq
        %v540 = vshrl.u32 %v539, 7
        %v541 = vsub.s32 0, %v540
        %v542 = vrot.slane %v537, %v541
        %v548 = vunpack.c.l.b16 %v533
        %v549 = vunpack.c.l.b16 %v534
        %v550 = vunpack.c.l.b16 %v535
        %v551 = vunpack.c.l.b16 %v536
        %v552 = vpack.c.b16 %v549, %v548
        %v553 = vpack.c.b16 %v551, %v550
        %vm556 = vcmask 261120
        %v558 = vsel %vm556, %v532, 0
        %560 = vmatprep.subr.bf16.mxu0 0
        %561 = vmatpush1.bf16.msra.mxu0 0
        %562 = vmatprep.subr.bf16.mxu0 0
        %563 = vmatpush1.bf16.msra.mxu0 0
        %564 = vmatprep.subr.bf16.mxu0 0
        %565 = vmatpush1.bf16.msra.mxu0 0
        %566 = vmatprep.subr.bf16.mxu0 0
        %567 = vmatpush1.bf16.msra.mxu0 0
        %568 = vmatprep.subr.bf16.mxu0 0
        %569 = vmatpush1.bf16.msra.mxu0 0
        %570 = vmatprep.subr.bf16.mxu0 0
        %571 = vmatpush1.bf16.msra.mxu0 0
        %572 = vmatprep.subr.bf16.mxu0 0
        %573 = vmatpush1.bf16.msra.mxu0 %v553
        %574 = vmatprep.subr.bf16.mxu0 0
        %575 = vmatpush1.bf16.msra.mxu0 %v552
        %576 = vmatprep.subr.bf16.mxu0 0
        %577 = vmatpush2.bf16.msra.mxu0 0
        %578 = vmatprep.subr.bf16.mxu0 0
        %579 = vmatpush2.bf16.msra.mxu0 0
        %580 = vmatprep.subr.bf16.mxu0 0
        %581 = vmatpush2.bf16.msra.mxu0 0
        %582 = vmatprep.subr.bf16.mxu0 0
        %583 = vmatpush2.bf16.msra.mxu0 0
        %584 = vmatprep.subr.bf16.mxu0 0
        %585 = vmatpush2.bf16.msra.mxu0 0
        %586 = vmatprep.subr.bf16.mxu0 0
        %587 = vmatpush2.bf16.msra.mxu0 0
        %588 = vmatprep.subr.bf16.mxu0 0
        %589 = vmatpush2.bf16.msra.mxu0 0
        %590 = vmatprep.subr.bf16.mxu0 0
        %591 = vmatpush2.bf16.msra.mxu0 0
        %592 = vmatprep.mubr.bf16.mxu0 0
        %593 = vmatmul.mubr.bf16.gmra.mxu0 %v558
        %v594 = vpop.f32.mrf.mxu0
        %v595 = vadd.f32 %v542, %v594
        %v596 = vpop.f32.mrf.mxu0
        %v597 = vpop.f32.mrf.mxu0
        %v598 = vpop.f32.mrf.mxu0
        %599 = vdwg.mxu0
        %v600 = vmul.f32 %v595, 0.35355338
        %v601 = vpack.c.bf16 %v600, %v600
        %vm602 = vcmask 257024
        %603 = vst.msk [vmem:[#allocation2] sm:$0xf] %vm602, %v601
        %vm604 = vcmask 7168
        %605 = vst.msk [vmem:[#allocation3] sm:$0xff] %vm604, -1e+30
        %606 = vst.msk [vmem:[#allocation3 + $0x8] sm:$0xff] %vm604, -1e+30
        %607 = vst.msk [vmem:[#allocation3 + $0x10] sm:$0xff] %vm604, -1e+30
        %608 = vst.msk [vmem:[#allocation3 + $0x18] sm:$0xff] %vm604, -1e+30
        %609 = vst.msk [vmem:[#allocation4] sm:$0xff] %vm604, 0.0
        %610 = vst.msk [vmem:[#allocation4 + $0x8] sm:$0xff] %vm604, 0.0
        %611 = vst.msk [vmem:[#allocation4 + $0x10] sm:$0xff] %vm604, 0.0
        %612 = vst.msk [vmem:[#allocation4 + $0x18] sm:$0xff] %vm604, 0.0
        %vm613 = vcmask 64512
        %614 = vst.msk [vmem:[#allocation5] sm:$0xff] %vm613, 0.0
        %615 = vst.msk [vmem:[#allocation5 + $0x8] sm:$0xff] %vm613, 0.0
        %616 = vst.msk [vmem:[#allocation5 + $0x10] sm:$0xff] %vm613, 0.0
        %617 = vst.msk [vmem:[#allocation5 + $0x18] sm:$0xff] %vm613, 0.0
      $region76: #{transformer_forward.11} parent=71 // pred_fallthru
        _
      %v618 = vld [vmem:[%s519] sm:$0xf]
      %v619 = vld [vmem:[%s5] sm:$0xf]
      %v620 = vld [vmem:[%s5 + $0x4] sm:$0xf]
      %v621 = vld [vmem:[%s5 + $0x8] sm:$0xf]
      %v622 = vld [vmem:[%s5 + $0xc] sm:$0xf]
      %v623 = vld [vmem:[%s6] sm:$0x1]
      %v625 = vlaneseq
      %v626 = vshrl.u32 %v625, 7
      %v627 = vsub.s32 0, %v626
      %v628 = vrot.slane %v623, %v627
      %v634 = vunpack.c.l.b16 %v619
      %v635 = vunpack.c.l.b16 %v620
      %v636 = vunpack.c.l.b16 %v621
      %v637 = vunpack.c.l.b16 %v622
      %v638 = vpack.c.b16 %v635, %v634
      %v639 = vpack.c.b16 %v637, %v636
      %vm642 = vcmask 261120
      %v644 = vsel %vm642, %v618, 0
      %646 = vmatprep.subr.bf16.mxu0 0
      %647 = vmatpush1.bf16.msra.mxu0 0
      %648 = vmatprep.subr.bf16.mxu0 0
      %649 = vmatpush1.bf16.msra.mxu0 0
      %650 = vmatprep.subr.bf16.mxu0 0
      %651 = vmatpush1.bf16.msra.mxu0 0
      %652 = vmatprep.subr.bf16.mxu0 0
      %653 = vmatpush1.bf16.msra.mxu0 0
      %654 = vmatprep.subr.bf16.mxu0 0
      %655 = vmatpush1.bf16.msra.mxu0 0
      %656 = vmatprep.subr.bf16.mxu0 0
      %657 = vmatpush1.bf16.msra.mxu0 0
      %658 = vmatprep.subr.bf16.mxu0 0
      %659 = vmatpush1.bf16.msra.mxu0 %v639
      %660 = vmatprep.subr.bf16.mxu0 0
      %661 = vmatpush1.bf16.msra.mxu0 %v638
      %662 = vmatprep.subr.bf16.mxu0 0
      %663 = vmatpush2.bf16.msra.mxu0 0
      %664 = vmatprep.subr.bf16.mxu0 0
      %665 = vmatpush2.bf16.msra.mxu0 0
      %666 = vmatprep.subr.bf16.mxu0 0
      %667 = vmatpush2.bf16.msra.mxu0 0
      %668 = vmatprep.subr.bf16.mxu0 0
      %669 = vmatpush2.bf16.msra.mxu0 0
      %670 = vmatprep.subr.bf16.mxu0 0
      %671 = vmatpush2.bf16.msra.mxu0 0
      %672 = vmatprep.subr.bf16.mxu0 0
      %673 = vmatpush2.bf16.msra.mxu0 0
      %674 = vmatprep.subr.bf16.mxu0 0
      %675 = vmatpush2.bf16.msra.mxu0 0
      %676 = vmatprep.subr.bf16.mxu0 0
      %677 = vmatpush2.bf16.msra.mxu0 0
      %678 = vmatprep.mubr.bf16.mxu0 0
      %679 = vmatmul.mubr.bf16.gmra.mxu0 %v644
      %v680 = vpop.f32.mrf.mxu0
      %v681 = vadd.f32 %v628, %v680
      %v682 = vpop.f32.mrf.mxu0
      %v683 = vpop.f32.mrf.mxu0
      %v684 = vpop.f32.mrf.mxu0
      %685 = vdwg.mxu0
      %v686 = vpack.c.bf16 %v681, %v681
      %v687 = vld [vmem:[%s7] sm:$0xf]
      %v688 = vld [vmem:[%s7 + $0x4] sm:$0xf]
      %v689 = vld [vmem:[%s7 + $0x8] sm:$0xf]
      %v690 = vld [vmem:[%s7 + $0xc] sm:$0xf]
      %v691 = vld [vmem:[%s8] sm:$0x1]
      %v693 = vlaneseq
      %v694 = vshrl.u32 %v693, 7
      %v695 = vsub.s32 0, %v694
      %v696 = vrot.slane %v691, %v695
      %v702 = vunpack.c.l.b16 %v687
      %v703 = vunpack.c.l.b16 %v688
      %v704 = vunpack.c.l.b16 %v689
      %v705 = vunpack.c.l.b16 %v690
      %v706 = vpack.c.b16 %v703, %v702
      %v707 = vpack.c.b16 %v705, %v704
      %710 = vmatprep.subr.bf16.mxu0 0
      %711 = vmatpush1.bf16.msra.mxu0 0
      %712 = vmatprep.subr.bf16.mxu0 0
      %713 = vmatpush1.bf16.msra.mxu0 0
      %714 = vmatprep.subr.bf16.mxu0 0
      %715 = vmatpush1.bf16.msra.mxu0 0
      %716 = vmatprep.subr.bf16.mxu0 0
      %717 = vmatpush1.bf16.msra.mxu0 0
      %718 = vmatprep.subr.bf16.mxu0 0
      %719 = vmatpush1.bf16.msra.mxu0 0
      %720 = vmatprep.subr.bf16.mxu0 0
      %721 = vmatpush1.bf16.msra.mxu0 0
      %722 = vmatprep.subr.bf16.mxu0 0
      %723 = vmatpush1.bf16.msra.mxu0 %v707
      %724 = vmatprep.subr.bf16.mxu0 0
      %725 = vmatpush1.bf16.msra.mxu0 %v706
      %726 = vmatprep.subr.bf16.mxu0 0
      %727 = vmatpush2.bf16.msra.mxu0 0
      %728 = vmatprep.subr.bf16.mxu0 0
      %729 = vmatpush2.bf16.msra.mxu0 0
      %730 = vmatprep.subr.bf16.mxu0 0
      %731 = vmatpush2.bf16.msra.mxu0 0
      %732 = vmatprep.subr.bf16.mxu0 0
      %733 = vmatpush2.bf16.msra.mxu0 0
      %734 = vmatprep.subr.bf16.mxu0 0
      %735 = vmatpush2.bf16.msra.mxu0 0
      %736 = vmatprep.subr.bf16.mxu0 0
      %737 = vmatpush2.bf16.msra.mxu0 0
      %738 = vmatprep.subr.bf16.mxu0 0
      %739 = vmatpush2.bf16.msra.mxu0 0
      %740 = vmatprep.subr.bf16.mxu0 0
      %741 = vmatpush2.bf16.msra.mxu0 0
      %742 = vmatprep.mubr.bf16.mxu0 0
      %743 = vmatmul.mubr.bf16.gmra.mxu0 %v644
      %v744 = vpop.f32.mrf.mxu0
      %v745 = vadd.f32 %v696, %v744
      %v746 = vpop.f32.mrf.mxu0
      %v747 = vpop.f32.mrf.mxu0
      %v748 = vpop.f32.mrf.mxu0
      %749 = vdwg.mxu0
      %v750 = vpack.c.bf16 %v745, %v745
      %v751 = vld [vmem:[#allocation2] sm:$0xf]
      %v752 = vld [vmem:[%s505] sm:$0x1]
      %vm753 = vcmp.ne.s32.totalorder %v752, 0
      %vm754 = vcmask 64512
      %v756 = vsel %vm754, %v751, 0
      %v759 = vsel %vm754, %v686, 0
      %761 = vmatprep.subr.bf16.mxu0 0
      %762 = vmatpush1.bf16.xpose.msra.mxu0 0
      %763 = vmatprep.subr.bf16.mxu0 0
      %764 = vmatpush1.bf16.xpose.msra.mxu0 0
      %765 = vmatprep.subr.bf16.mxu0 0
      %766 = vmatpush1.bf16.xpose.msra.mxu0 0
      %767 = vmatprep.subr.bf16.mxu0 0
      %768 = vmatpush1.bf16.xpose.msra.mxu0 0
      %769 = vmatprep.subr.bf16.mxu0 0
      %770 = vmatpush1.bf16.xpose.msra.mxu0 0
      %771 = vmatprep.subr.bf16.mxu0 0
      %772 = vmatpush1.bf16.xpose.msra.mxu0 0
      %773 = vmatprep.subr.bf16.mxu0 0
      %774 = vmatpush1.bf16.xpose.msra.mxu0 0
      %775 = vmatprep.subr.bf16.mxu0 0
      %776 = vmatpush1.bf16.xpose.msra.mxu0 %v759
      %777 = vmatprep.subr.bf16.mxu0 0
      %778 = vmatpush2.bf16.xpose.msra.mxu0 0
      %779 = vmatprep.subr.bf16.mxu0 0
      %780 = vmatpush2.bf16.xpose.msra.mxu0 0
      %781 = vmatprep.subr.bf16.mxu0 0
      %782 = vmatpush2.bf16.xpose.msra.mxu0 0
      %783 = vmatprep.subr.bf16.mxu0 0
      %784 = vmatpush2.bf16.xpose.msra.mxu0 0
      %785 = vmatprep.subr.bf16.mxu0 0
      %786 = vmatpush2.bf16.xpose.msra.mxu0 0
      %787 = vmatprep.subr.bf16.mxu0 0
      %788 = vmatpush2.bf16.xpose.msra.mxu0 0
      %789 = vmatprep.subr.bf16.mxu0 0
      %790 = vmatpush2.bf16.xpose.msra.mxu0 0
      %791 = vmatprep.subr.bf16.mxu0 0
      %792 = vmatpush2.bf16.xpose.msra.mxu0 0
      %793 = vmatprep.mubr.bf16.mxu0 0
      %794 = vmatmul.mubr.bf16.gmra.mxu0 %v756
      %v795 = vpop.f32.mrf.mxu0
      %v796 = vadd.f32 0.0, %v795
      %v797 = vpop.f32.mrf.mxu0
      %v798 = vpop.f32.mrf.mxu0
      %v799 = vpop.f32.mrf.mxu0
      %800 = vdwg.mxu0
      %v801 = vsel %vm753, 1, 0
      %v802 = vlaneseq
      %v803 = vshrl.u32 %v802, 7
      %v804 = vsub.s32 0, %v803
      %v805 = vrot.slane %v801, %v804
      %vm806 = vcmp.eq.s32.totalorder %v805, 1
      %v807 = vsel %vm806, -1e+09, %v796
      %v808 = vld [vmem:[#allocation3] sm:$0xff]
      %v809 = vsel %vm754, %v807, -inf
      %810 = vmax.xlane.f32.xlu0 %v809
      %v811 = vpop.xlane.xlu0 %810
      %v812 = vmax.f32 %v808, %v811
      %v813 = vsub.f32 %v808, %v812
      %v814 = vmul.f32 %v813, 1.442695
      %v815 = vpow.pop %v814
      %817 = vset.pattern.permute.xlu0 0
      %818 = vperm.xlu0 %817, %v812
      %v819 = vpop.permute.xlu0 %818
      %v821 = vsub.f32 %v807, %v819
      %v822 = vmul.f32 %v821, 1.442695
      %v823 = vpow.pop %v822
      %v824 = vld [vmem:[#allocation4] sm:$0xff]
      %v825 = vmul.f32 %v815, %v824
      %v826 = vsel %vm754, %v823, 0.0
      %827 = vadd.xlane.f32.xlu0 %v826
      %v828 = vpop.xlane.xlu0 %827
      %v829 = vadd.f32 %v825, %v828
      %vm830 = vcmask 7168
      %831 = vst.msk [vmem:[#allocation4] sm:$0xff] %vm830, %v829
      %v832 = vld [vmem:[#allocation5] sm:$0xff]
      %834 = vset.pattern.permute.xlu0 0
      %835 = vperm.xlu0 %834, %v815
      %v836 = vpop.permute.xlu0 %835
      %v838 = vmul.f32 %v836, %v832
      %v839 = vpack.c.bf16 %v823, %v823
      %v841 = vsel %vm754, %v839, 0
      %vm843 = vcmask 1043456
      %v845 = vsel %vm843, %v750, 0
      %847 = vmatprep.subr.bf16.mxu0 0
      %848 = vmatpush1.bf16.msra.mxu0 0
      %849 = vmatprep.subr.bf16.mxu0 0
      %850 = vmatpush1.bf16.msra.mxu0 0
      %851 = vmatprep.subr.bf16.mxu0 0
      %852 = vmatpush1.bf16.msra.mxu0 0
      %853 = vmatprep.subr.bf16.mxu0 0
      %854 = vmatpush1.bf16.msra.mxu0 0
      %855 = vmatprep.subr.bf16.mxu0 0
      %856 = vmatpush1.bf16.msra.mxu0 0
      %857 = vmatprep.subr.bf16.mxu0 0
      %858 = vmatpush1.bf16.msra.mxu0 0
      %859 = vmatprep.subr.bf16.mxu0 0
      %860 = vmatpush1.bf16.msra.mxu0 0
      %861 = vmatprep.subr.bf16.mxu0 0
      %862 = vmatpush1.bf16.msra.mxu0 %v845
      %863 = vmatprep.subr.bf16.mxu0 0
      %864 = vmatpush2.bf16.msra.mxu0 0
      %865 = vmatprep.subr.bf16.mxu0 0
      %866 = vmatpush2.bf16.msra.mxu0 0
      %867 = vmatprep.subr.bf16.mxu0 0
      %868 = vmatpush2.bf16.msra.mxu0 0
      %869 = vmatprep.subr.bf16.mxu0 0
      %870 = vmatpush2.bf16.msra.mxu0 0
      %871 = vmatprep.subr.bf16.mxu0 0
      %872 = vmatpush2.bf16.msra.mxu0 0
      %873 = vmatprep.subr.bf16.mxu0 0
      %874 = vmatpush2.bf16.msra.mxu0 0
      %875 = vmatprep.subr.bf16.mxu0 0
      %876 = vmatpush2.bf16.msra.mxu0 0
      %877 = vmatprep.subr.bf16.mxu0 0
      %878 = vmatpush2.bf16.msra.mxu0 0
      %879 = vmatprep.mubr.bf16.mxu0 0
      %880 = vmatmul.mubr.bf16.gmra.mxu0 %v841
      %v881 = vpop.f32.mrf.mxu0
      %v882 = vadd.f32 0.0, %v881
      %v883 = vpop.f32.mrf.mxu0
      %v884 = vpop.f32.mrf.mxu0
      %v885 = vpop.f32.mrf.mxu0
      %886 = vdwg.mxu0
      %v887 = vadd.f32 %v838, %v882
      %888 = vst.msk [vmem:[#allocation5] sm:$0xff] %vm754, %v887
      %889 = vst.msk [vmem:[#allocation3] sm:$0xff] %vm830, %v812
      %v891 = vunpack.c.l.b16 %v751
      %v892 = vpack.c.b16 %v891, %v891
      %893 = vrot.lane.b32.xlu0 %v892, 120
      %v894 = vpop.permute.xlu0 %893
      %896 = vrot.lane.b32.xlu0 %v686, 120
      %v897 = vpop.permute.xlu0 %896
      %v899 = vsel %vm754, %v894, 0
      %v902 = vsel %vm754, %v897, 0
      %904 = vmatprep.subr.bf16.mxu0 0
      %905 = vmatpush1.bf16.xpose.msra.mxu0 0
      %906 = vmatprep.subr.bf16.mxu0 0
      %907 = vmatpush1.bf16.xpose.msra.mxu0 0
      %908 = vmatprep.subr.bf16.mxu0 0
      %909 = vmatpush1.bf16.xpose.msra.mxu0 0
      %910 = vmatprep.subr.bf16.mxu0 0
      %911 = vmatpush1.bf16.xpose.msra.mxu0 0
      %912 = vmatprep.subr.bf16.mxu0 0
      %913 = vmatpush1.bf16.xpose.msra.mxu0 0
      %914 = vmatprep.subr.bf16.mxu0 0
      %915 = vmatpush1.bf16.xpose.msra.mxu0 0
      %916 = vmatprep.subr.bf16.mxu0 0
      %917 = vmatpush1.bf16.xpose.msra.mxu0 0
      %918 = vmatprep.subr.bf16.mxu0 0
      %919 = vmatpush1.bf16.xpose.msra.mxu0 %v902
      %920 = vmatprep.subr.bf16.mxu0 0
      %921 = vmatpush2.bf16.xpose.msra.mxu0 0
      %922 = vmatprep.subr.bf16.mxu0 0
      %923 = vmatpush2.bf16.xpose.msra.mxu0 0
      %924 = vmatprep.subr.bf16.mxu0 0
      %925 = vmatpush2.bf16.xpose.msra.mxu0 0
      %926 = vmatprep.subr.bf16.mxu0 0
      %927 = vmatpush2.bf16.xpose.msra.mxu0 0
      %928 = vmatprep.subr.bf16.mxu0 0
      %929 = vmatpush2.bf16.xpose.msra.mxu0 0
      %930 = vmatprep.subr.bf16.mxu0 0
      %931 = vmatpush2.bf16.xpose.msra.mxu0 0
      %932 = vmatprep.subr.bf16.mxu0 0
      %933 = vmatpush2.bf16.xpose.msra.mxu0 0
      %934 = vmatprep.subr.bf16.mxu0 0
      %935 = vmatpush2.bf16.xpose.msra.mxu0 0
      %936 = vmatprep.mubr.bf16.mxu0 0
      %937 = vmatmul.mubr.bf16.gmra.mxu0 %v899
      %v938 = vpop.f32.mrf.mxu0
      %v939 = vadd.f32 0.0, %v938
      %v940 = vpop.f32.mrf.mxu0
      %v941 = vpop.f32.mrf.mxu0
      %v942 = vpop.f32.mrf.mxu0
      %943 = vdwg.mxu0
      %v944 = vsel %vm806, -1e+09, %v939
      %s945 = scalar_lea.vmem [#allocation3], 8
      %v946 = vld [vmem:[%s945] sm:$0xff]
      %v947 = vsel %vm754, %v944, -inf
      %948 = vmax.xlane.f32.xlu0 %v947
      %v949 = vpop.xlane.xlu0 %948
      %v950 = vmax.f32 %v946, %v949
      %v951 = vsub.f32 %v946, %v950
      %v952 = vmul.f32 %v951, 1.442695
      %v953 = vpow.pop %v952
      %955 = vset.pattern.permute.xlu0 0
      %956 = vperm.xlu0 %955, %v950
      %v957 = vpop.permute.xlu0 %956
      %v959 = vsub.f32 %v944, %v957
      %v960 = vmul.f32 %v959, 1.442695
      %v961 = vpow.pop %v960
      %s962 = scalar_lea.vmem [#allocation4], 8
      %v963 = vld [vmem:[%s962] sm:$0xff]
      %v964 = vmul.f32 %v953, %v963
      %v965 = vsel %vm754, %v961, 0.0
      %966 = vadd.xlane.f32.xlu0 %v965
      %v967 = vpop.xlane.xlu0 %966
      %v968 = vadd.f32 %v964, %v967
      %969 = vst.msk [vmem:[%s962] sm:$0xff] %vm830, %v968
      %s970 = scalar_lea.vmem [#allocation5], 8
      %v971 = vld [vmem:[%s970] sm:$0xff]
      %973 = vset.pattern.permute.xlu0 0
      %974 = vperm.xlu0 %973, %v953
      %v975 = vpop.permute.xlu0 %974
      %v977 = vmul.f32 %v975, %v971
      %v978 = vpack.c.bf16 %v961, %v961
      %980 = vrot.lane.b32.xlu0 %v750, 120
      %v981 = vpop.permute.xlu0 %980
      %v983 = vsel %vm754, %v978, 0
      %v986 = vsel %vm843, %v981, 0
      %988 = vmatprep.subr.bf16.mxu0 0
      %989 = vmatpush1.bf16.msra.mxu0 0
      %990 = vmatprep.subr.bf16.mxu0 0
      %991 = vmatpush1.bf16.msra.mxu0 0
      %992 = vmatprep.subr.bf16.mxu0 0
      %993 = vmatpush1.bf16.msra.mxu0 0
      %994 = vmatprep.subr.bf16.mxu0 0
      %995 = vmatpush1.bf16.msra.mxu0 0
      %996 = vmatprep.subr.bf16.mxu0 0
      %997 = vmatpush1.bf16.msra.mxu0 0
      %998 = vmatprep.subr.bf16.mxu0 0
      %999 = vmatpush1.bf16.msra.mxu0 0
      %1000 = vmatprep.subr.bf16.mxu0 0
      %1001 = vmatpush1.bf16.msra.mxu0 0
      %1002 = vmatprep.subr.bf16.mxu0 0
      %1003 = vmatpush1.bf16.msra.mxu0 %v986
      %1004 = vmatprep.subr.bf16.mxu0 0
      %1005 = vmatpush2.bf16.msra.mxu0 0
      %1006 = vmatprep.subr.bf16.mxu0 0
      %1007 = vmatpush2.bf16.msra.mxu0 0
      %1008 = vmatprep.subr.bf16.mxu0 0
      %1009 = vmatpush2.bf16.msra.mxu0 0
      %1010 = vmatprep.subr.bf16.mxu0 0
      %1011 = vmatpush2.bf16.msra.mxu0 0
      %1012 = vmatprep.subr.bf16.mxu0 0
      %1013 = vmatpush2.bf16.msra.mxu0 0
      %1014 = vmatprep.subr.bf16.mxu0 0
      %1015 = vmatpush2.bf16.msra.mxu0 0
      %1016 = vmatprep.subr.bf16.mxu0 0
      %1017 = vmatpush2.bf16.msra.mxu0 0
      %1018 = vmatprep.subr.bf16.mxu0 0
      %1019 = vmatpush2.bf16.msra.mxu0 0
      %1020 = vmatprep.mubr.bf16.mxu0 0
      %1021 = vmatmul.mubr.bf16.gmra.mxu0 %v983
      %v1022 = vpop.f32.mrf.mxu0
      %v1023 = vadd.f32 0.0, %v1022
      %v1024 = vpop.f32.mrf.mxu0
      %v1025 = vpop.f32.mrf.mxu0
      %v1026 = vpop.f32.mrf.mxu0
      %1027 = vdwg.mxu0
      %v1028 = vadd.f32 %v977, %v1023
      %1029 = vst.msk [vmem:[%s970] sm:$0xff] %vm754, %v1028
      %1030 = vst.msk [vmem:[%s945] sm:$0xff] %vm830, %v950
      %1031 = vrot.lane.b32.xlu0 %v892, 112
      %v1032 = vpop.permute.xlu0 %1031
      %1033 = vrot.lane.b32.xlu0 %v686, 112
      %v1034 = vpop.permute.xlu0 %1033
      %v1036 = vsel %vm754, %v1032, 0
      %v1039 = vsel %vm754, %v1034, 0
      %1041 = vmatprep.subr.bf16.mxu0 0
      %1042 = vmatpush1.bf16.xpose.msra.mxu0 0
      %1043 = vmatprep.subr.bf16.mxu0 0
      %1044 = vmatpush1.bf16.xpose.msra.mxu0 0
      %1045 = vmatprep.subr.bf16.mxu0 0
      %1046 = vmatpush1.bf16.xpose.msra.mxu0 0
      %1047 = vmatprep.subr.bf16.mxu0 0
      %1048 = vmatpush1.bf16.xpose.msra.mxu0 0
      %1049 = vmatprep.subr.bf16.mxu0 0
      %1050 = vmatpush1.bf16.xpose.msra.mxu0 0
      %1051 = vmatprep.subr.bf16.mxu0 0
      %1052 = vmatpush1.bf16.xpose.msra.mxu0 0
      %1053 = vmatprep.subr.bf16.mxu0 0
      %1054 = vmatpush1.bf16.xpose.msra.mxu0 0
      %1055 = vmatprep.subr.bf16.mxu0 0
      %1056 = vmatpush1.bf16.xpose.msra.mxu0 %v1039
      %1057 = vmatprep.subr.bf16.mxu0 0
      %1058 = vmatpush2.bf16.xpose.msra.mxu0 0
      %1059 = vmatprep.subr.bf16.mxu0 0
      %1060 = vmatpush2.bf16.xpose.msra.mxu0 0
      %1061 = vmatprep.subr.bf16.mxu0 0
      %1062 = vmatpush2.bf16.xpose.msra.mxu0 0
      %1063 = vmatprep.subr.bf16.mxu0 0
      %1064 = vmatpush2.bf16.xpose.msra.mxu0 0
      %1065 = vmatprep.subr.bf16.mxu0 0
      %1066 = vmatpush2.bf16.xpose.msra.mxu0 0
      %1067 = vmatprep.subr.bf16.mxu0 0
      %1068 = vmatpush2.bf16.xpose.msra.mxu0 0
      %1069 = vmatprep.subr.bf16.mxu0 0
      %1070 = vmatpush2.bf16.xpose.msra.mxu0 0
      %1071 = vmatprep.subr.bf16.mxu0 0
      %1072 = vmatpush2.bf16.xpose.msra.mxu0 0
      %1073 = vmatprep.mubr.bf16.mxu0 0
      %1074 = vmatmul.mubr.bf16.gmra.mxu0 %v1036
      %v1075 = vpop.f32.mrf.mxu0
      %v1076 = vadd.f32 0.0, %v1075
      %v1077 = vpop.f32.mrf.mxu0
      %v1078 = vpop.f32.mrf.mxu0
      %v1079 = vpop.f32.mrf.mxu0
      %1080 = vdwg.mxu0
      %v1081 = vsel %vm806, -1e+09, %v1076
      %s1082 = scalar_lea.vmem [#allocation3], 16
      %v1083 = vld [vmem:[%s1082] sm:$0xff]
      %v1084 = vsel %vm754, %v1081, -inf
      %1085 = vmax.xlane.f32.xlu0 %v1084
      %v1086 = vpop.xlane.xlu0 %1085
      %v1087 = vmax.f32 %v1083, %v1086
      %v1088 = vsub.f32 %v1083, %v1087
      %v1089 = vmul.f32 %v1088, 1.442695
      %v1090 = vpow.pop %v1089
      %1092 = vset.pattern.permute.xlu0 0
      %1093 = vperm.xlu0 %1092, %v1087
      %v1094 = vpop.permute.xlu0 %1093
      %v1096 = vsub.f32 %v1081, %v1094
      %v1097 = vmul.f32 %v1096, 1.442695
      %v1098 = vpow.pop %v1097
      %s1099 = scalar_lea.vmem [#allocation4], 16
      %v1100 = vld [vmem:[%s1099] sm:$0xff]
      %v1101 = vmul.f32 %v1090, %v1100
      %v1102 = vsel %vm754, %v1098, 0.0
      %1103 = vadd.xlane.f32.xlu0 %v1102
      %v1104 = vpop.xlane.xlu0 %1103
      %v1105 = vadd.f32 %v1101, %v1104
      %1106 = vst.msk [vmem:[%s1099] sm:$0xff] %vm830, %v1105
      %s1107 = scalar_lea.vmem [#allocation5], 16
      %v1108 = vld [vmem:[%s1107] sm:$0xff]
      %1110 = vset.pattern.permute.xlu0 0
      %1111 = vperm.xlu0 %1110, %v1090
      %v1112 = vpop.permute.xlu0 %1111
      %v1114 = vmul.f32 %v1112, %v1108
      %v1115 = vpack.c.bf16 %v1098, %v1098
      %1116 = vrot.lane.b32.xlu0 %v750, 112
      %v1117 = vpop.permute.xlu0 %1116
      %v1119 = vsel %vm754, %v1115, 0
      %v1122 = vsel %vm843, %v1117, 0
      %1124 = vmatprep.subr.bf16.mxu0 0
      %1125 = vmatpush1.bf16.msra.mxu0 0
      %1126 = vmatprep.subr.bf16.mxu0 0
      %1127 = vmatpush1.bf16.msra.mxu0 0
      %1128 = vmatprep.subr.bf16.mxu0 0
      %1129 = vmatpush1.bf16.msra.mxu0 0
      %1130 = vmatprep.subr.bf16.mxu0 0
      %1131 = vmatpush1.bf16.msra.mxu0 0
      %1132 = vmatprep.subr.bf16.mxu0 0
      %1133 = vmatpush1.bf16.msra.mxu0 0
      %1134 = vmatprep.subr.bf16.mxu0 0
      %1135 = vmatpush1.bf16.msra.mxu0 0
      %1136 = vmatprep.subr.bf16.mxu0 0
      %1137 = vmatpush1.bf16.msra.mxu0 0
      %1138 = vmatprep.subr.bf16.mxu0 0
      %1139 = vmatpush1.bf16.msra.mxu0 %v1122
      %1140 = vmatprep.subr.bf16.mxu0 0
      %1141 = vmatpush2.bf16.msra.mxu0 0
      %1142 = vmatprep.subr.bf16.mxu0 0
      %1143 = vmatpush2.bf16.msra.mxu0 0
      %1144 = vmatprep.subr.bf16.mxu0 0
      %1145 = vmatpush2.bf16.msra.mxu0 0
      %1146 = vmatprep.subr.bf16.mxu0 0
      %1147 = vmatpush2.bf16.msra.mxu0 0
      %1148 = vmatprep.subr.bf16.mxu0 0
      %1149 = vmatpush2.bf16.msra.mxu0 0
      %1150 = vmatprep.subr.bf16.mxu0 0
      %1151 = vmatpush2.bf16.msra.mxu0 0
      %1152 = vmatprep.subr.bf16.mxu0 0
      %1153 = vmatpush2.bf16.msra.mxu0 0
      %1154 = vmatprep.subr.bf16.mxu0 0
      %1155 = vmatpush2.bf16.msra.mxu0 0
      %1156 = vmatprep.mubr.bf16.mxu0 0
      %1157 = vmatmul.mubr.bf16.gmra.mxu0 %v1119
      %v1158 = vpop.f32.mrf.mxu0
      %v1159 = vadd.f32 0.0, %v1158
      %v1160 = vpop.f32.mrf.mxu0
      %v1161 = vpop.f32.mrf.mxu0
      %v1162 = vpop.f32.mrf.mxu0
      %1163 = vdwg.mxu0
      %v1164 = vadd.f32 %v1114, %v1159
      %1165 = vst.msk [vmem:[%s1107] sm:$0xff] %vm754, %v1164
      %1166 = vst.msk [vmem:[%s1082] sm:$0xff] %vm830, %v1087
      %1167 = vrot.lane.b32.xlu0 %v892, 104
      %v1168 = vpop.permute.xlu0 %1167
      %1169 = vrot.lane.b32.xlu0 %v686, 104
      %v1170 = vpop.permute.xlu0 %1169
      %v1172 = vsel %vm754, %v1168, 0
      %v1175 = vsel %vm754, %v1170, 0
      %1177 = vmatprep.subr.bf16.mxu0 0
      %1178 = vmatpush1.bf16.xpose.msra.mxu0 0
      %1179 = vmatprep.subr.bf16.mxu0 0
      %1180 = vmatpush1.bf16.xpose.msra.mxu0 0
      %1181 = vmatprep.subr.bf16.mxu0 0
      %1182 = vmatpush1.bf16.xpose.msra.mxu0 0
      %1183 = vmatprep.subr.bf16.mxu0 0
      %1184 = vmatpush1.bf16.xpose.msra.mxu0 0
      %1185 = vmatprep.subr.bf16.mxu0 0
      %1186 = vmatpush1.bf16.xpose.msra.mxu0 0
      %1187 = vmatprep.subr.bf16.mxu0 0
      %1188 = vmatpush1.bf16.xpose.msra.mxu0 0
      %1189 = vmatprep.subr.bf16.mxu0 0
      %1190 = vmatpush1.bf16.xpose.msra.mxu0 0
      %1191 = vmatprep.subr.bf16.mxu0 0
      %1192 = vmatpush1.bf16.xpose.msra.mxu0 %v1175
      %1193 = vmatprep.subr.bf16.mxu0 0
      %1194 = vmatpush2.bf16.xpose.msra.mxu0 0
      %1195 = vmatprep.subr.bf16.mxu0 0
      %1196 = vmatpush2.bf16.xpose.msra.mxu0 0
      %1197 = vmatprep.subr.bf16.mxu0 0
      %1198 = vmatpush2.bf16.xpose.msra.mxu0 0
      %1199 = vmatprep.subr.bf16.mxu0 0
      %1200 = vmatpush2.bf16.xpose.msra.mxu0 0
      %1201 = vmatprep.subr.bf16.mxu0 0
      %1202 = vmatpush2.bf16.xpose.msra.mxu0 0
      %1203 = vmatprep.subr.bf16.mxu0 0
      %1204 = vmatpush2.bf16.xpose.msra.mxu0 0
      %1205 = vmatprep.subr.bf16.mxu0 0
      %1206 = vmatpush2.bf16.xpose.msra.mxu0 0
      %1207 = vmatprep.subr.bf16.mxu0 0
      %1208 = vmatpush2.bf16.xpose.msra.mxu0 0
      %1209 = vmatprep.mubr.bf16.mxu0 0
      %1210 = vmatmul.mubr.bf16.gmra.mxu0 %v1172
      %v1211 = vpop.f32.mrf.mxu0
      %v1212 = vadd.f32 0.0, %v1211
      %v1213 = vpop.f32.mrf.mxu0
      %v1214 = vpop.f32.mrf.mxu0
      %v1215 = vpop.f32.mrf.mxu0
      %1216 = vdwg.mxu0
      %v1217 = vsel %vm806, -1e+09, %v1212
      %s1218 = scalar_lea.vmem [#allocation3], 24
      %v1219 = vld [vmem:[%s1218] sm:$0xff]
      %v1220 = vsel %vm754, %v1217, -inf
      %1221 = vmax.xlane.f32.xlu0 %v1220
      %v1222 = vpop.xlane.xlu0 %1221
      %v1223 = vmax.f32 %v1219, %v1222
      %v1224 = vsub.f32 %v1219, %v1223
      %v1225 = vmul.f32 %v1224, 1.442695
      %v1226 = vpow.pop %v1225
      %1228 = vset.pattern.permute.xlu0 0
      %1229 = vperm.xlu0 %1228, %v1223
      %v1230 = vpop.permute.xlu0 %1229
      %v1232 = vsub.f32 %v1217, %v1230
      %v1233 = vmul.f32 %v1232, 1.442695
      %v1234 = vpow.pop %v1233
      %s1235 = scalar_lea.vmem [#allocation4], 24
      %v1236 = vld [vmem:[%s1235] sm:$0xff]
      %v1237 = vmul.f32 %v1226, %v1236
      %v1238 = vsel %vm754, %v1234, 0.0
      %1239 = vadd.xlane.f32.xlu0 %v1238
      %v1240 = vpop.xlane.xlu0 %1239
      %v1241 = vadd.f32 %v1237, %v1240
      %1242 = vst.msk [vmem:[%s1235] sm:$0xff] %vm830, %v1241
      %s1243 = scalar_lea.vmem [#allocation5], 24
      %v1244 = vld [vmem:[%s1243] sm:$0xff]
      %1246 = vset.pattern.permute.xlu0 0
      %1247 = vperm.xlu0 %1246, %v1226
      %v1248 = vpop.permute.xlu0 %1247
      %v1250 = vmul.f32 %v1248, %v1244
      %v1251 = vpack.c.bf16 %v1234, %v1234
      %1252 = vrot.lane.b32.xlu0 %v750, 104
      %v1253 = vpop.permute.xlu0 %1252
      %v1255 = vsel %vm754, %v1251, 0
      %v1258 = vsel %vm843, %v1253, 0
      %1260 = vmatprep.subr.bf16.mxu0 0
      %1261 = vmatpush1.bf16.msra.mxu0 0
      %1262 = vmatprep.subr.bf16.mxu0 0
      %1263 = vmatpush1.bf16.msra.mxu0 0
      %1264 = vmatprep.subr.bf16.mxu0 0
      %1265 = vmatpush1.bf16.msra.mxu0 0
      %1266 = vmatprep.subr.bf16.mxu0 0
      %1267 = vmatpush1.bf16.msra.mxu0 0
      %1268 = vmatprep.subr.bf16.mxu0 0
      %1269 = vmatpush1.bf16.msra.mxu0 0
      %1270 = vmatprep.subr.bf16.mxu0 0
      %1271 = vmatpush1.bf16.msra.mxu0 0
      %1272 = vmatprep.subr.bf16.mxu0 0
      %1273 = vmatpush1.bf16.msra.mxu0 0
      %1274 = vmatprep.subr.bf16.mxu0 0
      %1275 = vmatpush1.bf16.msra.mxu0 %v1258
      %1276 = vmatprep.subr.bf16.mxu0 0
      %1277 = vmatpush2.bf16.msra.mxu0 0
      %1278 = vmatprep.subr.bf16.mxu0 0
      %1279 = vmatpush2.bf16.msra.mxu0 0
      %1280 = vmatprep.subr.bf16.mxu0 0
      %1281 = vmatpush2.bf16.msra.mxu0 0
      %1282 = vmatprep.subr.bf16.mxu0 0
      %1283 = vmatpush2.bf16.msra.mxu0 0
      %1284 = vmatprep.subr.bf16.mxu0 0
      %1285 = vmatpush2.bf16.msra.mxu0 0
      %1286 = vmatprep.subr.bf16.mxu0 0
      %1287 = vmatpush2.bf16.msra.mxu0 0
      %1288 = vmatprep.subr.bf16.mxu0 0
      %1289 = vmatpush2.bf16.msra.mxu0 0
      %1290 = vmatprep.subr.bf16.mxu0 0
      %1291 = vmatpush2.bf16.msra.mxu0 0
      %1292 = vmatprep.mubr.bf16.mxu0 0
      %1293 = vmatmul.mubr.bf16.gmra.mxu0 %v1255
      %v1294 = vpop.f32.mrf.mxu0
      %v1295 = vadd.f32 0.0, %v1294
      %v1296 = vpop.f32.mrf.mxu0
      %v1297 = vpop.f32.mrf.mxu0
      %v1298 = vpop.f32.mrf.mxu0
      %1299 = vdwg.mxu0
      %v1300 = vadd.f32 %v1250, %v1295
      %1301 = vst.msk [vmem:[%s1243] sm:$0xff] %vm754, %v1300
      %1302 = vst.msk [vmem:[%s1218] sm:$0xff] %vm830, %v1223
      // Predicated region
      $region77: #{transformer_forward.11} parent=71 // pred_check
        %p1303 = pneg %p528
      $region78: #{transformer_forward.11} parent=71 // pred_check_branch
        %1305 = sbr.rel (%p1303) target = $region80
      $region79: #{transformer_forward.11} parent=71 // pred_region
        %v1306 = vld [vmem:[#allocation5] sm:$0xff]
        %v1307 = vld [vmem:[#allocation4] sm:$0xff]
        %v1308 = vrcp.pop %v1307
        %1310 = vset.pattern.permute.xlu0 0
        %1311 = vperm.xlu0 %1310, %v1308
        %v1312 = vpop.permute.xlu0 %1311
        %v1314 = vmul.f32 %v1306, %v1312
        %v1315 = vld [vmem:[%s970] sm:$0xff]
        %v1316 = vld [vmem:[%s962] sm:$0xff]
        %v1317 = vrcp.pop %v1316
        %1319 = vset.pattern.permute.xlu0 0
        %1320 = vperm.xlu0 %1319, %v1317
        %v1321 = vpop.permute.xlu0 %1320
        %v1323 = vmul.f32 %v1315, %v1321
        %v1324 = vld [vmem:[%s1107] sm:$0xff]
        %v1325 = vld [vmem:[%s1099] sm:$0xff]
        %v1326 = vrcp.pop %v1325
        %1328 = vset.pattern.permute.xlu0 0
        %1329 = vperm.xlu0 %1328, %v1326
        %v1330 = vpop.permute.xlu0 %1329
        %v1332 = vmul.f32 %v1324, %v1330
        %v1333 = vld [vmem:[%s1243] sm:$0xff]
        %v1334 = vld [vmem:[%s1235] sm:$0xff]
        %v1335 = vrcp.pop %v1334
        %1337 = vset.pattern.permute.xlu0 0
        %1338 = vperm.xlu0 %1337, %v1335
        %v1339 = vpop.permute.xlu0 %1338
        %v1341 = vmul.f32 %v1333, %v1339
        %1343 = vrot.lane.b32.xlu0 %v1323, 8
        %v1344 = vpop.permute.xlu0 %1343
        %1347 = vrot.lane.b32.xlu0 %v1332, 16
        %v1348 = vpop.permute.xlu0 %1347
        %1351 = vrot.lane.b32.xlu0 %v1341, 24
        %v1352 = vpop.permute.xlu0 %1351
        %v1354 = vsel %vm754, %v1314, %v1344
        %vm1355 = vcmask 130048
        %v1356 = vsel %vm1355, %v1354, %v1348
        %vm1357 = vcmask 195584
        %v1358 = vsel %vm1357, %v1356, %v1352
        %v1359 = vpack.c.bf16 %v1358, %v1358
        %v1360 = vld [vmem:[%s9] sm:$0xf]
        %v1361 = vld [vmem:[%s9 + $0x4] sm:$0xf]
        %v1362 = vld [vmem:[%s9 + $0x8] sm:$0xf]
        %v1363 = vld [vmem:[%s9 + $0xc] sm:$0xf]
        %v1364 = vld [vmem:[%s10] sm:$0x1]
        %v1366 = vlaneseq
        %v1367 = vshrl.u32 %v1366, 7
        %v1368 = vsub.s32 0, %v1367
        %v1369 = vrot.slane %v1364, %v1368
        %v1375 = vunpack.c.l.b16 %v1360
        %v1376 = vunpack.c.l.b16 %v1361
        %v1377 = vunpack.c.l.b16 %v1362
        %v1378 = vunpack.c.l.b16 %v1363
        %v1379 = vpack.c.b16 %v1376, %v1375
        %v1380 = vpack.c.b16 %v1378, %v1377
        %v1384 = vsel %vm642, %v1359, 0
        %1386 = vmatprep.subr.bf16.mxu0 0
        %1387 = vmatpush1.bf16.msra.mxu0 0
        %1388 = vmatprep.subr.bf16.mxu0 0
        %1389 = vmatpush1.bf16.msra.mxu0 0
        %1390 = vmatprep.subr.bf16.mxu0 0
        %1391 = vmatpush1.bf16.msra.mxu0 0
        %1392 = vmatprep.subr.bf16.mxu0 0
        %1393 = vmatpush1.bf16.msra.mxu0 0
        %1394 = vmatprep.subr.bf16.mxu0 0
        %1395 = vmatpush1.bf16.msra.mxu0 0
        %1396 = vmatprep.subr.bf16.mxu0 0
        %1397 = vmatpush1.bf16.msra.mxu0 0
        %1398 = vmatprep.subr.bf16.mxu0 0
        %1399 = vmatpush1.bf16.msra.mxu0 %v1380
        %1400 = vmatprep.subr.bf16.mxu0 0
        %1401 = vmatpush1.bf16.msra.mxu0 %v1379
        %1402 = vmatprep.subr.bf16.mxu0 0
        %1403 = vmatpush2.bf16.msra.mxu0 0
        %1404 = vmatprep.subr.bf16.mxu0 0
        %1405 = vmatpush2.bf16.msra.mxu0 0
        %1406 = vmatprep.subr.bf16.mxu0 0
        %1407 = vmatpush2.bf16.msra.mxu0 0
        %1408 = vmatprep.subr.bf16.mxu0 0
        %1409 = vmatpush2.bf16.msra.mxu0 0
        %1410 = vmatprep.subr.bf16.mxu0 0
        %1411 = vmatpush2.bf16.msra.mxu0 0
        %1412 = vmatprep.subr.bf16.mxu0 0
        %1413 = vmatpush2.bf16.msra.mxu0 0
        %1414 = vmatprep.subr.bf16.mxu0 0
        %1415 = vmatpush2.bf16.msra.mxu0 0
        %1416 = vmatprep.subr.bf16.mxu0 0
        %1417 = vmatpush2.bf16.msra.mxu0 0
        %1418 = vmatprep.mubr.bf16.mxu0 0
        %1419 = vmatmul.mubr.bf16.gmra.mxu0 %v1384
        %v1420 = vpop.f32.mrf.mxu0
        %v1421 = vadd.f32 %v1369, %v1420
        %v1422 = vpop.f32.mrf.mxu0
        %v1423 = vpop.f32.mrf.mxu0
        %v1424 = vpop.f32.mrf.mxu0
        %1425 = vdwg.mxu0
        %v1426 = vld [vmem:[%s512] sm:$0xf]
        %v1427 = vunpack.c.l.bf16 %v1426
        %v1428 = vadd.f32 %v1427, %v1421
        %v1429 = vsel %vm642, %v1428, 0.0
        %1430 = vadd.xlane.f32.xlu0 %v1429
        %v1431 = vpop.xlane.xlu0 %1430
        %v1432 = vrcp.pop 32.0
        %v1433 = vmul.f32 %v1431, %v1432
        %v1434 = vsub.f32 %v1428, %v1433
        %v1435 = vmul.f32 %v1434, %v1434
        %v1436 = vsel %vm642, %v1435, 0.0
        %1437 = vadd.xlane.f32.xlu0 %v1436
        %v1438 = vpop.xlane.xlu0 %1437
        %v1439 = vmul.f32 %v1438, %v1432
        %v1440 = vadd.f32 %v1439, 1e-05
        %v1441 = vrsqrt.pop %v1440
        %v1442 = vmul.f32 %v1434, %v1441
        %v1443 = vld [vmem:[%s11] sm:$0x1]
        %v1445 = vlaneseq
        %v1446 = vshrl.u32 %v1445, 7
        %v1447 = vsub.s32 0, %v1446
        %v1448 = vrot.slane %v1443, %v1447
        %v1450 = vmul.f32 %v1442, %v1448
        %v1451 = vld [vmem:[%s12] sm:$0x1]
        %v1453 = vlaneseq
        %v1454 = vshrl.u32 %v1453, 7
        %v1455 = vsub.s32 0, %v1454
        %v1456 = vrot.slane %v1451, %v1455
        %v1458 = vadd.f32 %v1450, %v1456
        %v1459 = vpack.c.bf16 %v1458, %v1458
        %vm1460 = vcmask 257024
        %1461 = vst.msk [vmem:[%s526] sm:$0xf] %vm1460, %v1459
      $region80: #{transformer_forward.11} parent=71 // pred_fallthru
        _
      %p1462 = scmp.lt.s32.totalorder %s29, 1
      %s1463 = scalar_select %p1462, %s29, 1
      %p1464 = scmp.lt.s32.totalorder %s30, 0
      %s1465 = scalar_select %p1464, %s30, 0
      %s1466 = sadd.s32 %s1465, %s1463
      %s1467 = smul.addr %s1466, 4
      %s1468 = scalar_lea.vmem %s13, %s1467
      // Predicated region
      $region81: #{transformer_forward.11} parent=71 // pred_check
        %p1469 = pneg %p357
      $region82: #{transformer_forward.11} parent=71 // pred_check_branch
        %1471 = sbr.rel (%p1469) target = $region84
      $region83: #{transformer_forward.11} parent=71 // pred_region
        _
      $region84: #{transformer_forward.11} parent=71 // pred_fallthru
        _
    $region72: #{transformer_forward.11} parent=5 // pred_fallthru
      _
    %p1472 = scmp.le.s32.totalorder 2, %s19
    // Predicated region
    $region85: #{transformer_forward.11} parent=5 // pred_check
      %p1473 = pneg %p1472
    $region86: #{transformer_forward.11} parent=5 // pred_check_branch
      %1475 = sbr.rel (%p1473) target = $region88
    $region87: #{transformer_forward.11} parent=5 // pred_region
      %s1476 = ssub.s32 %s19, 2
      // Predicated region
      $region89: #{transformer_forward.11} parent=87 // pred_check
        %p1477 = pneg %p363
      $region90: #{transformer_forward.11} parent=87 // pred_check_branch
        %1479 = sbr.rel (%p1477) target = $region92
      $region91: #{transformer_forward.11} parent=87 // pred_region
        %p1480 = scmp.lt.s32.totalorder %s32, 1
        %s1481 = scalar_select %p1480, %s32, 1
        %p1482 = scmp.lt.s32.totalorder %s33, 0
        %s1483 = scalar_select %p1482, %s33, 0
        %s1484 = sadd.s32 %s1483, %s1481
        %s1485 = smul.addr %s1484, 4
        %s1486 = scalar_lea.vmem %s13, %s1485
      $region92: #{transformer_forward.11} parent=87 // pred_fallthru
        _
    $region88: #{transformer_forward.11} parent=5 // pred_fallthru
      _
  $region6: #{transformer_forward.11} parent=0 // loop_footer
    %s23 = sadd.s32 1, %s19
  $region7: #{transformer_forward.11} parent=0 // loop_footer_branch
    %18 = sbr.rel target = $region3
  $region8: #{transformer_forward.11} parent=0 // loop_exit
    _

// kernel: transformer_forward.15
$region0: #{transformer_forward.15}
  #allocation0 [shape = 'u32[]', space=smem, size = 0x4, offset = 0x4, fixed_abs, tag = 'smem constant byte address 0x4 - core index']
  #allocation1 [shape = 'u32[144,128]{1,0:T(1,128)}', space=vmem, size = 0x12000, scoped, tag = 'internal scratch']
  #allocation2 [shape = 'bf16[8,32]{1,0:T(8,128)(2,1)}', space=vmem, size = 0x800, scoped, tag = 'scratch operand']
  #allocation3 [shape = 'f32[4,8,1]{2,1,0:T(8,128)}', space=vmem, size = 0x4000, scoped, tag = 'scratch operand']
  #allocation4 [shape = 'f32[4,8,1]{2,1,0:T(8,128)}', space=vmem, size = 0x4000, scoped, tag = 'scratch operand']
  #allocation5 [shape = 'f32[4,8,8]{2,1,0:T(8,128)}', space=vmem, size = 0x4000, scoped, tag = 'scratch operand']
  %s0 = inlined_call_operand.vmem [shape: s32[2,1,8], index: 0, kind: input, shape index: {}]
  %s1 = inlined_call_operand.vmem [shape: bf16[2,8,32], index: 1, kind: input, shape index: {}, may-alias: {1,2}]
  %s2 = inlined_call_operand.vmem [shape: bf16[2,8,32], index: 2, kind: input, shape index: {}, may-alias: {1,2}]
  %s3 = inlined_call_operand.vmem [shape: bf16[32,32], index: 3, kind: input, shape index: {}]
  %s4 = inlined_call_operand.vmem [shape: f32[1,32], index: 4, kind: input, shape index: {}]
  %s5 = inlined_call_operand.vmem [shape: bf16[32,32], index: 5, kind: input, shape index: {}]
  %s6 = inlined_call_operand.vmem [shape: f32[1,32], index: 6, kind: input, shape index: {}]
  %s7 = inlined_call_operand.vmem [shape: bf16[32,32], index: 7, kind: input, shape index: {}]
  %s8 = inlined_call_operand.vmem [shape: f32[1,32], index: 8, kind: input, shape index: {}]
  %s9 = inlined_call_operand.vmem [shape: bf16[32,32], index: 9, kind: input, shape index: {}]
  %s10 = inlined_call_operand.vmem [shape: f32[1,32], index: 10, kind: input, shape index: {}]
  %s11 = inlined_call_operand.vmem [shape: f32[1,32], index: 11, kind: input, shape index: {}]
  %s12 = inlined_call_operand.vmem [shape: f32[1,32], index: 12, kind: input, shape index: {}]
  %s13 = inlined_call_operand.vmem [shape: bf16[2,8,32], index: 13, kind: output, shape index: {}]
  %s14 = sld [smem:[#allocation0]]
  $region93: #{transformer_forward.15} parent=0
    _
  %s16 = ssub.s32 1, %s14
  %s17 = scalar_select 0, %s16, %s14
  loop: start=0, step=1, limit=4
  $region2: #{transformer_forward.15} parent=0 // loop_pre_header
    _
  $region3: #{transformer_forward.15} parent=0 // loop_header
    %s19 = sphi 0, %s23
    %p20 = scmp.ge.s32.totalorder %s19, 4
    %s26 = sphi 0, %s45
    %s27 = sphi 0, %s41
    %s28 = sphi 0, %s37
    %s29 = sphi 0, %s26
    %s30 = sphi 0, %s27
    %s31 = sphi 0, %s28
    %s32 = sphi 0, %s29
    %s33 = sphi 0, %s30
    %s34 = sphi 0, %s31
    %s50 = sphi 0, %s52
    %s53 = sphi 0, %s50
    %s54 = sphi 0, %s53
    %s70 = sphi 0, %s54
    %s78 = sphi 0, %s80
    %s81 = sphi 0, %s78
    %s82 = sphi 0, %s81
    %s98 = sphi 0, %s82
    %s106 = sphi 0, %s108
    %s109 = sphi 0, %s106
    %s110 = sphi 0, %s109
    %s126 = sphi 0, %s110
    %s130 = sphi 0, %s130
    %s132 = sphi 0, %s130
    %s133 = sphi 0, %s132
    %s147 = sphi 0, %s133
    %s151 = sphi 0, %s151
    %s153 = sphi 0, %s151
    %s154 = sphi 0, %s153
    %s168 = sphi 0, %s154
    %s172 = sphi 0, %s172
    %s174 = sphi 0, %s172
    %s175 = sphi 0, %s174
    %s189 = sphi 0, %s175
    %s193 = sphi 0, %s193
    %s195 = sphi 0, %s193
    %s196 = sphi 0, %s195
    %s210 = sphi 0, %s196
    %s214 = sphi 0, %s214
    %s216 = sphi 0, %s214
    %s217 = sphi 0, %s216
    %s231 = sphi 0, %s217
    %s235 = sphi 0, %s235
    %s237 = sphi 0, %s235
    %s238 = sphi 0, %s237
    %s252 = sphi 0, %s238
    %s256 = sphi 0, %s256
    %s258 = sphi 0, %s256
    %s259 = sphi 0, %s258
    %s273 = sphi 0, %s259
    %s277 = sphi 0, %s277
    %s279 = sphi 0, %s277
    %s280 = sphi 0, %s279
    %s294 = sphi 0, %s280
    %s298 = sphi 0, %s298
    %s300 = sphi 0, %s298
    %s301 = sphi 0, %s300
    %s315 = sphi 0, %s301
    %s319 = sphi 0, %s319
    %s321 = sphi 0, %s319
    %s322 = sphi 0, %s321
    %s336 = sphi 0, %s322
    %s344 = sphi 0, %s346
    %s347 = sphi 0, %s344
    %s348 = sphi 0, %s347
    %s364 = sphi 0, %s348
  $region4: #{transformer_forward.15} parent=0 // loop_header_branch
    %22 = sbr.rel (%p20) target = $region8
  $region5: #{transformer_forward.15} parent=0 // loop_body
    %s24 = ssub.s32 %s19, 1
    %s25 = ssub.s32 %s19, 2
    %s35 = sadd.s32 1, %s28
    %p36 = scmp.ge.s32.totalorder %s35, 1
    %s37 = scalar_select %p36, 0, %s35
    %s38 = sadd.s32 1, %s27
    %s39 = scalar_select %p36, %s38, %s27
    %p40 = scmp.ge.s32.totalorder %s39, 1
    %s41 = scalar_select %p40, 0, %s39
    %s42 = sadd.s32 1, %s26
    %s43 = scalar_select %p40, %s42, %s26
    %p44 = scmp.ge.s32.totalorder %s43, 2
    %s45 = scalar_select %p44, 0, %s43
    %s46 = ssub.s32 %s26, %s45
    %s47 = ssub.s32 %s28, %s37
    %s48 = sor.u32 %s46, %s47
    %p49 = scmp.eq.s32.totalorder %s48, 0
    %s51 = sadd.s32 %s50, 1
    %s52 = scalar_select %p49, %s50, %s51
    %p55 = pneg %p49
    %p56 = scmp.eq.s32.totalorder %s19, 1
    %p57 = por %p55, %p56
    %p58 = scmp.ne.s32.totalorder %s50, %s53
    %p59 = scmp.eq.s32.totalorder %s19, 0
    %p60 = por %p58, %p59
    %p61 = scmp.ne.s32.totalorder %s50, %s53
    %p62 = scmp.eq.s32.totalorder %s24, 1
    %p63 = por %p61, %p62
    %p64 = scmp.ne.s32.totalorder %s53, %s54
    %p65 = scmp.eq.s32.totalorder %s24, 0
    %p66 = por %p64, %p65
    %p67 = scmp.ne.s32.totalorder %s53, %s54
    %p68 = scmp.eq.s32.totalorder %s25, 1
    %p69 = por %p67, %p68
    %p71 = scmp.ne.s32.totalorder %s54, %s70
    %p72 = scmp.eq.s32.totalorder %s25, 0
    %p73 = por %p71, %p72
    %s74 = ssub.s32 %s26, %s45
    %s75 = ssub.s32 %s27, %s41
    %s76 = sor.u32 %s74, %s75
    %p77 = scmp.eq.s32.totalorder %s76, 0
    %s79 = sadd.s32 %s78, 1
    %s80 = scalar_select %p77, %s78, %s79
    %p83 = pneg %p77
    %p84 = scmp.eq.s32.totalorder %s19, 1
    %p85 = por %p83, %p84
    %p86 = scmp.ne.s32.totalorder %s78, %s81
    %p87 = scmp.eq.s32.totalorder %s19, 0
    %p88 = por %p86, %p87
    %p89 = scmp.ne.s32.totalorder %s78, %s81
    %p90 = scmp.eq.s32.totalorder %s24, 1
    %p91 = por %p89, %p90
    %p92 = scmp.ne.s32.totalorder %s81, %s82
    %p93 = scmp.eq.s32.totalorder %s24, 0
    %p94 = por %p92, %p93
    %p95 = scmp.ne.s32.totalorder %s81, %s82
    %p96 = scmp.eq.s32.totalorder %s25, 1
    %p97 = por %p95, %p96
    %p99 = scmp.ne.s32.totalorder %s82, %s98
    %p100 = scmp.eq.s32.totalorder %s25, 0
    %p101 = por %p99, %p100
    %s102 = ssub.s32 %s26, %s45
    %s103 = ssub.s32 %s28, %s37
    %s104 = sor.u32 %s102, %s103
    %p105 = scmp.eq.s32.totalorder %s104, 0
    %s107 = sadd.s32 %s106, 1
    %s108 = scalar_select %p105, %s106, %s107
    %p111 = pneg %p105
    %p112 = scmp.eq.s32.totalorder %s19, 1
    %p113 = por %p111, %p112
    %p114 = scmp.ne.s32.totalorder %s106, %s109
    %p115 = scmp.eq.s32.totalorder %s19, 0
    %p116 = por %p114, %p115
    %p117 = scmp.ne.s32.totalorder %s106, %s109
    %p118 = scmp.eq.s32.totalorder %s24, 1
    %p119 = por %p117, %p118
    %p120 = scmp.ne.s32.totalorder %s109, %s110
    %p121 = scmp.eq.s32.totalorder %s24, 0
    %p122 = por %p120, %p121
    %p123 = scmp.ne.s32.totalorder %s109, %s110
    %p124 = scmp.eq.s32.totalorder %s25, 1
    %p125 = por %p123, %p124
    %p127 = scmp.ne.s32.totalorder %s110, %s126
    %p128 = scmp.eq.s32.totalorder %s25, 0
    %p129 = por %p127, %p128
    %s131 = sadd.s32 %s130, 1
    %p134 = scmp.eq.s32.totalorder %s19, 1
    %p135 = scmp.ne.s32.totalorder %s130, %s132
    %p136 = scmp.eq.s32.totalorder %s19, 0
    %p137 = por %p135, %p136
    %p138 = scmp.ne.s32.totalorder %s130, %s132
    %p139 = scmp.eq.s32.totalorder %s24, 1
    %p140 = por %p138, %p139
    %p141 = scmp.ne.s32.totalorder %s132, %s133
    %p142 = scmp.eq.s32.totalorder %s24, 0
    %p143 = por %p141, %p142
    %p144 = scmp.ne.s32.totalorder %s132, %s133
    %p145 = scmp.eq.s32.totalorder %s25, 1
    %p146 = por %p144, %p145
    %p148 = scmp.ne.s32.totalorder %s133, %s147
    %p149 = scmp.eq.s32.totalorder %s25, 0
    %p150 = por %p148, %p149
    %s152 = sadd.s32 %s151, 1
    %p155 = scmp.eq.s32.totalorder %s19, 1
    %p156 = scmp.ne.s32.totalorder %s151, %s153
    %p157 = scmp.eq.s32.totalorder %s19, 0
    %p158 = por %p156, %p157
    %p159 = scmp.ne.s32.totalorder %s151, %s153
    %p160 = scmp.eq.s32.totalorder %s24, 1
    %p161 = por %p159, %p160
    %p162 = scmp.ne.s32.totalorder %s153, %s154
    %p163 = scmp.eq.s32.totalorder %s24, 0
    %p164 = por %p162, %p163
    %p165 = scmp.ne.s32.totalorder %s153, %s154
    %p166 = scmp.eq.s32.totalorder %s25, 1
    %p167 = por %p165, %p166
    %p169 = scmp.ne.s32.totalorder %s154, %s168
    %p170 = scmp.eq.s32.totalorder %s25, 0
    %p171 = por %p169, %p170
    %s173 = sadd.s32 %s172, 1
    %p176 = scmp.eq.s32.totalorder %s19, 1
    %p177 = scmp.ne.s32.totalorder %s172, %s174
    %p178 = scmp.eq.s32.totalorder %s19, 0
    %p179 = por %p177, %p178
    %p180 = scmp.ne.s32.totalorder %s172, %s174
    %p181 = scmp.eq.s32.totalorder %s24, 1
    %p182 = por %p180, %p181
    %p183 = scmp.ne.s32.totalorder %s174, %s175
    %p184 = scmp.eq.s32.totalorder %s24, 0
    %p185 = por %p183, %p184
    %p186 = scmp.ne.s32.totalorder %s174, %s175
    %p187 = scmp.eq.s32.totalorder %s25, 1
    %p188 = por %p186, %p187
    %p190 = scmp.ne.s32.totalorder %s175, %s189
    %p191 = scmp.eq.s32.totalorder %s25, 0
    %p192 = por %p190, %p191
    %s194 = sadd.s32 %s193, 1
    %p197 = scmp.eq.s32.totalorder %s19, 1
    %p198 = scmp.ne.s32.totalorder %s193, %s195
    %p199 = scmp.eq.s32.totalorder %s19, 0
    %p200 = por %p198, %p199
    %p201 = scmp.ne.s32.totalorder %s193, %s195
    %p202 = scmp.eq.s32.totalorder %s24, 1
    %p203 = por %p201, %p202
    %p204 = scmp.ne.s32.totalorder %s195, %s196
    %p205 = scmp.eq.s32.totalorder %s24, 0
    %p206 = por %p204, %p205
    %p207 = scmp.ne.s32.totalorder %s195, %s196
    %p208 = scmp.eq.s32.totalorder %s25, 1
    %p209 = por %p207, %p208
    %p211 = scmp.ne.s32.totalorder %s196, %s210
    %p212 = scmp.eq.s32.totalorder %s25, 0
    %p213 = por %p211, %p212
    %s215 = sadd.s32 %s214, 1
    %p218 = scmp.eq.s32.totalorder %s19, 1
    %p219 = scmp.ne.s32.totalorder %s214, %s216
    %p220 = scmp.eq.s32.totalorder %s19, 0
    %p221 = por %p219, %p220
    %p222 = scmp.ne.s32.totalorder %s214, %s216
    %p223 = scmp.eq.s32.totalorder %s24, 1
    %p224 = por %p222, %p223
    %p225 = scmp.ne.s32.totalorder %s216, %s217
    %p226 = scmp.eq.s32.totalorder %s24, 0
    %p227 = por %p225, %p226
    %p228 = scmp.ne.s32.totalorder %s216, %s217
    %p229 = scmp.eq.s32.totalorder %s25, 1
    %p230 = por %p228, %p229
    %p232 = scmp.ne.s32.totalorder %s217, %s231
    %p233 = scmp.eq.s32.totalorder %s25, 0
    %p234 = por %p232, %p233
    %s236 = sadd.s32 %s235, 1
    %p239 = scmp.eq.s32.totalorder %s19, 1
    %p240 = scmp.ne.s32.totalorder %s235, %s237
    %p241 = scmp.eq.s32.totalorder %s19, 0
    %p242 = por %p240, %p241
    %p243 = scmp.ne.s32.totalorder %s235, %s237
    %p244 = scmp.eq.s32.totalorder %s24, 1
    %p245 = por %p243, %p244
    %p246 = scmp.ne.s32.totalorder %s237, %s238
    %p247 = scmp.eq.s32.totalorder %s24, 0
    %p248 = por %p246, %p247
    %p249 = scmp.ne.s32.totalorder %s237, %s238
    %p250 = scmp.eq.s32.totalorder %s25, 1
    %p251 = por %p249, %p250
    %p253 = scmp.ne.s32.totalorder %s238, %s252
    %p254 = scmp.eq.s32.totalorder %s25, 0
    %p255 = por %p253, %p254
    %s257 = sadd.s32 %s256, 1
    %p260 = scmp.eq.s32.totalorder %s19, 1
    %p261 = scmp.ne.s32.totalorder %s256, %s258
    %p262 = scmp.eq.s32.totalorder %s19, 0
    %p263 = por %p261, %p262
    %p264 = scmp.ne.s32.totalorder %s256, %s258
    %p265 = scmp.eq.s32.totalorder %s24, 1
    %p266 = por %p264, %p265
    %p267 = scmp.ne.s32.totalorder %s258, %s259
    %p268 = scmp.eq.s32.totalorder %s24, 0
    %p269 = por %p267, %p268
    %p270 = scmp.ne.s32.totalorder %s258, %s259
    %p271 = scmp.eq.s32.totalorder %s25, 1
    %p272 = por %p270, %p271
    %p274 = scmp.ne.s32.totalorder %s259, %s273
    %p275 = scmp.eq.s32.totalorder %s25, 0
    %p276 = por %p274, %p275
    %s278 = sadd.s32 %s277, 1
    %p281 = scmp.eq.s32.totalorder %s19, 1
    %p282 = scmp.ne.s32.totalorder %s277, %s279
    %p283 = scmp.eq.s32.totalorder %s19, 0
    %p284 = por %p282, %p283
    %p285 = scmp.ne.s32.totalorder %s277, %s279
    %p286 = scmp.eq.s32.totalorder %s24, 1
    %p287 = por %p285, %p286
    %p288 = scmp.ne.s32.totalorder %s279, %s280
    %p289 = scmp.eq.s32.totalorder %s24, 0
    %p290 = por %p288, %p289
    %p291 = scmp.ne.s32.totalorder %s279, %s280
    %p292 = scmp.eq.s32.totalorder %s25, 1
    %p293 = por %p291, %p292
    %p295 = scmp.ne.s32.totalorder %s280, %s294
    %p296 = scmp.eq.s32.totalorder %s25, 0
    %p297 = por %p295, %p296
    %s299 = sadd.s32 %s298, 1
    %p302 = scmp.eq.s32.totalorder %s19, 1
    %p303 = scmp.ne.s32.totalorder %s298, %s300
    %p304 = scmp.eq.s32.totalorder %s19, 0
    %p305 = por %p303, %p304
    %p306 = scmp.ne.s32.totalorder %s298, %s300
    %p307 = scmp.eq.s32.totalorder %s24, 1
    %p308 = por %p306, %p307
    %p309 = scmp.ne.s32.totalorder %s300, %s301
    %p310 = scmp.eq.s32.totalorder %s24, 0
    %p311 = por %p309, %p310
    %p312 = scmp.ne.s32.totalorder %s300, %s301
    %p313 = scmp.eq.s32.totalorder %s25, 1
    %p314 = por %p312, %p313
    %p316 = scmp.ne.s32.totalorder %s301, %s315
    %p317 = scmp.eq.s32.totalorder %s25, 0
    %p318 = por %p316, %p317
    %s320 = sadd.s32 %s319, 1
    %p323 = scmp.eq.s32.totalorder %s19, 1
    %p324 = scmp.ne.s32.totalorder %s319, %s321
    %p325 = scmp.eq.s32.totalorder %s19, 0
    %p326 = por %p324, %p325
    %p327 = scmp.ne.s32.totalorder %s319, %s321
    %p328 = scmp.eq.s32.totalorder %s24, 1
    %p329 = por %p327, %p328
    %p330 = scmp.ne.s32.totalorder %s321, %s322
    %p331 = scmp.eq.s32.totalorder %s24, 0
    %p332 = por %p330, %p331
    %p333 = scmp.ne.s32.totalorder %s321, %s322
    %p334 = scmp.eq.s32.totalorder %s25, 1
    %p335 = por %p333, %p334
    %p337 = scmp.ne.s32.totalorder %s322, %s336
    %p338 = scmp.eq.s32.totalorder %s25, 0
    %p339 = por %p337, %p338
    %s340 = ssub.s32 %s26, %s45
    %s341 = ssub.s32 %s27, %s41
    %s342 = sor.u32 %s340, %s341
    %p343 = scmp.eq.s32.totalorder %s342, 0
    %s345 = sadd.s32 %s344, 1
    %s346 = scalar_select %p343, %s344, %s345
    %p349 = pneg %p343
    %p350 = scmp.eq.s32.totalorder %s19, 1
    %p351 = por %p349, %p350
    %p352 = scmp.ne.s32.totalorder %s344, %s347
    %p353 = scmp.eq.s32.totalorder %s19, 0
    %p354 = por %p352, %p353
    %p355 = scmp.ne.s32.totalorder %s344, %s347
    %p356 = scmp.eq.s32.totalorder %s24, 1
    %p357 = por %p355, %p356
    %p358 = scmp.ne.s32.totalorder %s347, %s348
    %p359 = scmp.eq.s32.totalorder %s24, 0
    %p360 = por %p358, %p359
    %p361 = scmp.ne.s32.totalorder %s347, %s348
    %p362 = scmp.eq.s32.totalorder %s25, 1
    %p363 = por %p361, %p362
    %p365 = scmp.ne.s32.totalorder %s348, %s364
    %p366 = scmp.eq.s32.totalorder %s25, 0
    %p367 = por %p365, %p366
    %p368 = scmp.le.s32.totalorder 1, %s19
    %p369 = scmp.lt.s32.totalorder %s19, 3
    %p370 = pnand %p368, %p369
    %p371 = pneg %p370
    // Predicated region
    $region9: #{transformer_forward.15} parent=5 // pred_check
      _
    $region10: #{transformer_forward.15} parent=5 // pred_check_branch
      %373 = sbr.rel (%p370) target = $region12
    $region11: #{transformer_forward.15} parent=5 // pred_region
      %s374 = ssub.s32 %s19, 1
      // Predicated region
      $region13: #{transformer_forward.15} parent=11 // pred_check
        %p375 = pneg %p143
      $region14: #{transformer_forward.15} parent=11 // pred_check_branch
        %377 = sbr.rel (%p375) target = $region16
      $region15: #{transformer_forward.15} parent=11 // pred_region
        _
      $region16: #{transformer_forward.15} parent=11 // pred_fallthru
        _
      // Predicated region
      $region17: #{transformer_forward.15} parent=11 // pred_check
        %p378 = pneg %p164
      $region18: #{transformer_forward.15} parent=11 // pred_check_branch
        %380 = sbr.rel (%p378) target = $region20
      $region19: #{transformer_forward.15} parent=11 // pred_region
        _
      $region20: #{transformer_forward.15} parent=11 // pred_fallthru
        _
      // Predicated region
      $region21: #{transformer_forward.15} parent=11 // pred_check
        %p381 = pneg %p185
      $region22: #{transformer_forward.15} parent=11 // pred_check_branch
        %383 = sbr.rel (%p381) target = $region24
      $region23: #{transformer_forward.15} parent=11 // pred_region
        _
      $region24: #{transformer_forward.15} parent=11 // pred_fallthru
        _
      // Predicated region
      $region25: #{transformer_forward.15} parent=11 // pred_check
        %p384 = pneg %p206
      $region26: #{transformer_forward.15} parent=11 // pred_check_branch
        %386 = sbr.rel (%p384) target = $region28
      $region27: #{transformer_forward.15} parent=11 // pred_region
        _
      $region28: #{transformer_forward.15} parent=11 // pred_fallthru
        _
      // Predicated region
      $region29: #{transformer_forward.15} parent=11 // pred_check
        %p387 = pneg %p227
      $region30: #{transformer_forward.15} parent=11 // pred_check_branch
        %389 = sbr.rel (%p387) target = $region32
      $region31: #{transformer_forward.15} parent=11 // pred_region
        _
      $region32: #{transformer_forward.15} parent=11 // pred_fallthru
        _
      // Predicated region
      $region33: #{transformer_forward.15} parent=11 // pred_check
        %p390 = pneg %p248
      $region34: #{transformer_forward.15} parent=11 // pred_check_branch
        %392 = sbr.rel (%p390) target = $region36
      $region35: #{transformer_forward.15} parent=11 // pred_region
        _
      $region36: #{transformer_forward.15} parent=11 // pred_fallthru
        _
      // Predicated region
      $region37: #{transformer_forward.15} parent=11 // pred_check
        %p393 = pneg %p269
      $region38: #{transformer_forward.15} parent=11 // pred_check_branch
        %395 = sbr.rel (%p393) target = $region40
      $region39: #{transformer_forward.15} parent=11 // pred_region
        _
      $region40: #{transformer_forward.15} parent=11 // pred_fallthru
        _
      // Predicated region
      $region41: #{transformer_forward.15} parent=11 // pred_check
        %p396 = pneg %p290
      $region42: #{transformer_forward.15} parent=11 // pred_check_branch
        %398 = sbr.rel (%p396) target = $region44
      $region43: #{transformer_forward.15} parent=11 // pred_region
        _
      $region44: #{transformer_forward.15} parent=11 // pred_fallthru
        _
      // Predicated region
      $region45: #{transformer_forward.15} parent=11 // pred_check
        %p399 = pneg %p311
      $region46: #{transformer_forward.15} parent=11 // pred_check_branch
        %401 = sbr.rel (%p399) target = $region48
      $region47: #{transformer_forward.15} parent=11 // pred_region
        _
      $region48: #{transformer_forward.15} parent=11 // pred_fallthru
        _
      // Predicated region
      $region49: #{transformer_forward.15} parent=11 // pred_check
        %p402 = pneg %p332
      $region50: #{transformer_forward.15} parent=11 // pred_check_branch
        %404 = sbr.rel (%p402) target = $region52
      $region51: #{transformer_forward.15} parent=11 // pred_region
        _
      $region52: #{transformer_forward.15} parent=11 // pred_fallthru
        _
    $region12: #{transformer_forward.15} parent=5 // pred_fallthru
      _
    %p405 = scmp.lt.s32.totalorder %s19, 2
    // Predicated region
    $region53: #{transformer_forward.15} parent=5 // pred_check
      %p406 = pneg %p405
    $region54: #{transformer_forward.15} parent=5 // pred_check_branch
      %408 = sbr.rel (%p406) target = $region56
    $region55: #{transformer_forward.15} parent=5 // pred_region
      // Predicated region
      $region57: #{transformer_forward.15} parent=55 // pred_check
        %p409 = pneg %p60
      $region58: #{transformer_forward.15} parent=55 // pred_check_branch
        %411 = sbr.rel (%p409) target = $region60
      $region59: #{transformer_forward.15} parent=55 // pred_region
        %p412 = scmp.lt.s32.totalorder %s26, 1
        %s413 = scalar_select %p412, %s26, 1
        %p414 = scmp.lt.s32.totalorder %s28, 0
        %s415 = scalar_select %p414, %s28, 0
        %s416 = sadd.s32 %s415, %s413
        %s417 = scalar_lea.vmem %s0, %s416
      $region60: #{transformer_forward.15} parent=55 // pred_fallthru
        _
      // Predicated region
      $region61: #{transformer_forward.15} parent=55 // pred_check
        %p418 = pneg %p88
      $region62: #{transformer_forward.15} parent=55 // pred_check_branch
        %420 = sbr.rel (%p418) target = $region64
      $region63: #{transformer_forward.15} parent=55 // pred_region
        %p421 = scmp.lt.s32.totalorder %s26, 1
        %s422 = scalar_select %p421, %s26, 1
        %p423 = scmp.lt.s32.totalorder %s27, 0
        %s424 = scalar_select %p423, %s27, 0
        %s425 = sadd.s32 %s424, %s422
        %s426 = smul.addr %s425, 4
        %s427 = scalar_lea.vmem %s1, %s426
      $region64: #{transformer_forward.15} parent=55 // pred_fallthru
        _
      // Predicated region
      $region65: #{transformer_forward.15} parent=55 // pred_check
        %p428 = pneg %p116
      $region66: #{transformer_forward.15} parent=55 // pred_check_branch
        %430 = sbr.rel (%p428) target = $region68
      $region67: #{transformer_forward.15} parent=55 // pred_region
        %p431 = scmp.lt.s32.totalorder %s26, 1
        %s432 = scalar_select %p431, %s26, 1
        %p433 = scmp.lt.s32.totalorder %s28, 0
        %s434 = scalar_select %p433, %s28, 0
        %s435 = sadd.s32 %s434, %s432
        %s436 = smul.addr %s435, 4
        %s437 = scalar_lea.vmem %s2, %s436
      $region68: #{transformer_forward.15} parent=55 // pred_fallthru
        _
    $region56: #{transformer_forward.15} parent=5 // pred_fallthru
      _
    %p438 = scmp.le.s32.totalorder 1, %s19
    %p439 = scmp.lt.s32.totalorder %s19, 3
    %p440 = pnand %p438, %p439
    %p441 = pneg %p440
    // Predicated region
    $region69: #{transformer_forward.15} parent=5 // pred_check
      _
    $region70: #{transformer_forward.15} parent=5 // pred_check_branch
      %443 = sbr.rel (%p440) target = $region72
    $region71: #{transformer_forward.15} parent=5 // pred_region
      %s444 = ssub.s32 %s19, 1
      %p445 = scmp.lt.s32.totalorder %s29, 1
      %s446 = scalar_select %p445, %s29, 1
      %p447 = scmp.lt.s32.totalorder %s31, 0
      %s448 = scalar_select %p447, %s31, 0
      %s449 = sadd.s32 %s448, %s446
      %s450 = scalar_lea.vmem %s0, %s449
      %p451 = pneg %p66
      %p452 = pneg %p63
      %p453 = scmp.lt.s32.totalorder %s29, 1
      %s454 = scalar_select %p453, %s29, 1
      %p455 = scmp.lt.s32.totalorder %s30, 0
      %s456 = scalar_select %p455, %s30, 0
      %s457 = sadd.s32 %s456, %s454
      %s458 = smul.addr %s457, 4
      %s459 = scalar_lea.vmem %s1, %s458
      %p460 = pneg %p94
      %p461 = pneg %p91
      %p462 = scmp.lt.s32.totalorder %s29, 1
      %s463 = scalar_select %p462, %s29, 1
      %p464 = scmp.lt.s32.totalorder %s31, 0
      %s465 = scalar_select %p464, %s31, 0
      %s466 = sadd.s32 %s465, %s463
      %s467 = smul.addr %s466, 4
      %s468 = scalar_lea.vmem %s2, %s467
      %p469 = pneg %p122
      %p470 = pneg %p119
      %p471 = pneg %p143
      %p472 = pneg %p140
      %p473 = pneg %p164
      %p474 = pneg %p161
      %p475 = pneg %p185
      %p476 = pneg %p182
      %p477 = pneg %p206
      %p478 = pneg %p203
      %p479 = pneg %p227
      %p480 = pneg %p224
      %p481 = pneg %p248
      %p482 = pneg %p245
      %p483 = pneg %p269
      %p484 = pneg %p266
      %p485 = pneg %p290
      %p486 = pneg %p287
      %p487 = pneg %p311
      %p488 = pneg %p308
      %p489 = pneg %p332
      %p490 = pneg %p329
      %p491 = pneg %p360
      %p492 = pneg %p357
      %p493 = scmp.lt.s32.totalorder %s29, 1
      %s494 = scalar_select %p493, %s29, 1
      %p495 = scmp.lt.s32.totalorder %s30, 0
      %s496 = scalar_select %p495, %s30, 0
      %s497 = sadd.s32 %s496, %s494
      %s498 = smul.addr %s497, 4
      %s499 = scalar_lea.vmem %s13, %s498
      %p500 = scmp.lt.s32.totalorder %s29, 1
      %s501 = scalar_select %p500, %s29, 1
      %p502 = scmp.lt.s32.totalorder %s31, 0
      %s503 = scalar_select %p502, %s31, 0
      %s504 = sadd.s32 %s503, %s501
      %s505 = scalar_lea.vmem %s0, %s504
      %p506 = scmp.lt.s32.totalorder %s29, 1
      %s507 = scalar_select %p506, %s29, 1
      %p508 = scmp.lt.s32.totalorder %s30, 0
      %s509 = scalar_select %p508, %s30, 0
      %s510 = sadd.s32 %s509, %s507
      %s511 = smul.addr %s510, 4
      %s512 = scalar_lea.vmem %s1, %s511
      %p513 = scmp.lt.s32.totalorder %s29, 1
      %s514 = scalar_select %p513, %s29, 1
      %p515 = scmp.lt.s32.totalorder %s31, 0
      %s516 = scalar_select %p515, %s31, 0
      %s517 = sadd.s32 %s516, %s514
      %s518 = smul.addr %s517, 4
      %s519 = scalar_lea.vmem %s2, %s518
      %p520 = scmp.lt.s32.totalorder %s29, 1
      %s521 = scalar_select %p520, %s29, 1
      %p522 = scmp.lt.s32.totalorder %s30, 0
      %s523 = scalar_select %p522, %s30, 0
      %s524 = sadd.s32 %s523, %s521
      %s525 = smul.addr %s524, 4
      %s526 = scalar_lea.vmem %s13, %s525
      %p528 = scmp.eq.s32.totalorder %s31, 0
      // Predicated region
      $region73: #{transformer_forward.15} parent=71 // pred_check
        %p529 = pneg %p528
      $region74: #{transformer_forward.15} parent=71 // pred_check_branch
        %531 = sbr.rel (%p529) target = $region76
      $region75: #{transformer_forward.15} parent=71 // pred_region
        %v532 = vld [vmem:[%s512] sm:$0xf]
        %v533 = vld [vmem:[%s3] sm:$0xf]
        %v534 = vld [vmem:[%s3 + $0x4] sm:$0xf]
        %v535 = vld [vmem:[%s3 + $0x8] sm:$0xf]
        %v536 = vld [vmem:[%s3 + $0xc] sm:$0xf]
        %v537 = vld [vmem:[%s4] sm:$0x1]
        %v539 = vlaneseq
        %v540 = vshrl.u32 %v539, 7
        %v541 = vsub.s32 0, %v540
        %v542 = vrot.slane %v537, %v541
        %v548 = vunpack.c.l.b16 %v533
        %v549 = vunpack.c.l.b16 %v534
        %v550 = vunpack.c.l.b16 %v535
        %v551 = vunpack.c.l.b16 %v536
        %v552 = vpack.c.b16 %v549, %v548
        %v553 = vpack.c.b16 %v551, %v550
        %vm556 = vcmask 261120
        %v558 = vsel %vm556, %v532, 0
        %560 = vmatprep.subr.bf16.mxu0 0
        %561 = vmatpush1.bf16.msra.mxu0 0
        %562 = vmatprep.subr.bf16.mxu0 0
        %563 = vmatpush1.bf16.msra.mxu0 0
        %564 = vmatprep.subr.bf16.mxu0 0
        %565 = vmatpush1.bf16.msra.mxu0 0
        %566 = vmatprep.subr.bf16.mxu0 0
        %567 = vmatpush1.bf16.msra.mxu0 0
        %568 = vmatprep.subr.bf16.mxu0 0
        %569 = vmatpush1.bf16.msra.mxu0 0
        %570 = vmatprep.subr.bf16.mxu0 0
        %571 = vmatpush1.bf16.msra.mxu0 0
        %572 = vmatprep.subr.bf16.mxu0 0
        %573 = vmatpush1.bf16.msra.mxu0 %v553
        %574 = vmatprep.subr.bf16.mxu0 0
        %575 = vmatpush1.bf16.msra.mxu0 %v552
        %576 = vmatprep.subr.bf16.mxu0 0
        %577 = vmatpush2.bf16.msra.mxu0 0
        %578 = vmatprep.subr.bf16.mxu0 0
        %579 = vmatpush2.bf16.msra.mxu0 0
        %580 = vmatprep.subr.bf16.mxu0 0
        %581 = vmatpush2.bf16.msra.mxu0 0
        %582 = vmatprep.subr.bf16.mxu0 0
        %583 = vmatpush2.bf16.msra.mxu0 0
        %584 = vmatprep.subr.bf16.mxu0 0
        %585 = vmatpush2.bf16.msra.mxu0 0
        %586 = vmatprep.subr.bf16.mxu0 0
        %587 = vmatpush2.bf16.msra.mxu0 0
        %588 = vmatprep.subr.bf16.mxu0 0
        %589 = vmatpush2.bf16.msra.mxu0 0
        %590 = vmatprep.subr.bf16.mxu0 0
        %591 = vmatpush2.bf16.msra.mxu0 0
        %592 = vmatprep.mubr.bf16.mxu0 0
        %593 = vmatmul.mubr.bf16.gmra.mxu0 %v558
        %v594 = vpop.f32.mrf.mxu0
        %v595 = vadd.f32 %v542, %v594
        %v596 = vpop.f32.mrf.mxu0
        %v597 = vpop.f32.mrf.mxu0
        %v598 = vpop.f32.mrf.mxu0
        %599 = vdwg.mxu0
        %v600 = vmul.f32 %v595, 0.35355338
        %v601 = vpack.c.bf16 %v600, %v600
        %vm602 = vcmask 257024
        %603 = vst.msk [vmem:[#allocation2] sm:$0xf] %vm602, %v601
        %vm604 = vcmask 7168
        %605 = vst.msk [vmem:[#allocation3] sm:$0xff] %vm604, -1e+30
        %606 = vst.msk [vmem:[#allocation3 + $0x8] sm:$0xff] %vm604, -1e+30
        %607 = vst.msk [vmem:[#allocation3 + $0x10] sm:$0xff] %vm604, -1e+30
        %608 = vst.msk [vmem:[#allocation3 + $0x18] sm:$0xff] %vm604, -1e+30
        %609 = vst.msk [vmem:[#allocation4] sm:$0xff] %vm604, 0.0
        %610 = vst.msk [vmem:[#allocation4 + $0x8] sm:$0xff] %vm604, 0.0
        %611 = vst.msk [vmem:[#allocation4 + $0x10] sm:$0xff] %vm604, 0.0
        %612 = vst.msk [vmem:[#allocation4 + $0x18] sm:$0xff] %vm604, 0.0
        %vm613 = vcmask 64512
        %614 = vst.msk [vmem:[#allocation5] sm:$0xff] %vm613, 0.0
        %615 = vst.msk [vmem:[#allocation5 + $0x8] sm:$0xff] %vm613, 0.0
        %616 = vst.msk [vmem:[#allocation5 + $0x10] sm:$0xff] %vm613, 0.0
        %617 = vst.msk [vmem:[#allocation5 + $0x18] sm:$0xff] %vm613, 0.0
      $region76: #{transformer_forward.15} parent=71 // pred_fallthru
        _
      %v618 = vld [vmem:[%s519] sm:$0xf]
      %v619 = vld [vmem:[%s5] sm:$0xf]
      %v620 = vld [vmem:[%s5 + $0x4] sm:$0xf]
      %v621 = vld [vmem:[%s5 + $0x8] sm:$0xf]
      %v622 = vld [vmem:[%s5 + $0xc] sm:$0xf]
      %v623 = vld [vmem:[%s6] sm:$0x1]
      %v625 = vlaneseq
      %v626 = vshrl.u32 %v625, 7
      %v627 = vsub.s32 0, %v626
      %v628 = vrot.slane %v623, %v627
      %v634 = vunpack.c.l.b16 %v619
      %v635 = vunpack.c.l.b16 %v620
      %v636 = vunpack.c.l.b16 %v621
      %v637 = vunpack.c.l.b16 %v622
      %v638 = vpack.c.b16 %v635, %v634
      %v639 = vpack.c.b16 %v637, %v636
      %vm642 = vcmask 261120
      %v644 = vsel %vm642, %v618, 0
      %646 = vmatprep.subr.bf16.mxu0 0
      %647 = vmatpush1.bf16.msra.mxu0 0
      %648 = vmatprep.subr.bf16.mxu0 0
      %649 = vmatpush1.bf16.msra.mxu0 0
      %650 = vmatprep.subr.bf16.mxu0 0
      %651 = vmatpush1.bf16.msra.mxu0 0
      %652 = vmatprep.subr.bf16.mxu0 0
      %653 = vmatpush1.bf16.msra.mxu0 0
      %654 = vmatprep.subr.bf16.mxu0 0
      %655 = vmatpush1.bf16.msra.mxu0 0
      %656 = vmatprep.subr.bf16.mxu0 0
      %657 = vmatpush1.bf16.msra.mxu0 0
      %658 = vmatprep.subr.bf16.mxu0 0
      %659 = vmatpush1.bf16.msra.mxu0 %v639
      %660 = vmatprep.subr.bf16.mxu0 0
      %661 = vmatpush1.bf16.msra.mxu0 %v638
      %662 = vmatprep.subr.bf16.mxu0 0
      %663 = vmatpush2.bf16.msra.mxu0 0
      %664 = vmatprep.subr.bf16.mxu0 0
      %665 = vmatpush2.bf16.msra.mxu0 0
      %666 = vmatprep.subr.bf16.mxu0 0
      %667 = vmatpush2.bf16.msra.mxu0 0
      %668 = vmatprep.subr.bf16.mxu0 0
      %669 = vmatpush2.bf16.msra.mxu0 0
      %670 = vmatprep.subr.bf16.mxu0 0
      %671 = vmatpush2.bf16.msra.mxu0 0
      %672 = vmatprep.subr.bf16.mxu0 0
      %673 = vmatpush2.bf16.msra.mxu0 0
      %674 = vmatprep.subr.bf16.mxu0 0
      %675 = vmatpush2.bf16.msra.mxu0 0
      %676 = vmatprep.subr.bf16.mxu0 0
      %677 = vmatpush2.bf16.msra.mxu0 0
      %678 = vmatprep.mubr.bf16.mxu0 0
      %679 = vmatmul.mubr.bf16.gmra.mxu0 %v644
      %v680 = vpop.f32.mrf.mxu0
      %v681 = vadd.f32 %v628, %v680
      %v682 = vpop.f32.mrf.mxu0
      %v683 = vpop.f32.mrf.mxu0
      %v684 = vpop.f32.mrf.mxu0
      %685 = vdwg.mxu0
      %v686 = vpack.c.bf16 %v681, %v681
      %v687 = vld [vmem:[%s7] sm:$0xf]
      %v688 = vld [vmem:[%s7 + $0x4] sm:$0xf]
      %v689 = vld [vmem:[%s7 + $0x8] sm:$0xf]
      %v690 = vld [vmem:[%s7 + $0xc] sm:$0xf]
      %v691 = vld [vmem:[%s8] sm:$0x1]
      %v693 = vlaneseq
      %v694 = vshrl.u32 %v693, 7
      %v695 = vsub.s32 0, %v694
      %v696 = vrot.slane %v691, %v695
      %v702 = vunpack.c.l.b16 %v687
      %v703 = vunpack.c.l.b16 %v688
      %v704 = vunpack.c.l.b16 %v689
      %v705 = vunpack.c.l.b16 %v690
      %v706 = vpack.c.b16 %v703, %v702
      %v707 = vpack.c.b16 %v705, %v704
      %710 = vmatprep.subr.bf16.mxu0 0
      %711 = vmatpush1.bf16.msra.mxu0 0
      %712 = vmatprep.subr.bf16.mxu0 0
      %713 = vmatpush1.bf16.msra.mxu0 0
      %714 = vmatprep.subr.bf16.mxu0 0
      %715 = vmatpush1.bf16.msra.mxu0 0
      %716 = vmatprep.subr.bf16.mxu0 0
      %717 = vmatpush1.bf16.msra.mxu0 0
      %718 = vmatprep.subr.bf16.mxu0 0
      %719 = vmatpush1.bf16.msra.mxu0 0
      %720 = vmatprep.subr.bf16.mxu0 0
      %721 = vmatpush1.bf16.msra.mxu0 0
      %722 = vmatprep.subr.bf16.mxu0 0
      %723 = vmatpush1.bf16.msra.mxu0 %v707
      %724 = vmatprep.subr.bf16.mxu0 0
      %725 = vmatpush1.bf16.msra.mxu0 %v706
      %726 = vmatprep.subr.bf16.mxu0 0
      %727 = vmatpush2.bf16.msra.mxu0 0
      %728 = vmatprep.subr.bf16.mxu0 0
      %729 = vmatpush2.bf16.msra.mxu0 0
      %730 = vmatprep.subr.bf16.mxu0 0
      %731 = vmatpush2.bf16.msra.mxu0 0
      %732 = vmatprep.subr.bf16.mxu0 0
      %733 = vmatpush2.bf16.msra.mxu0 0
      %734 = vmatprep.subr.bf16.mxu0 0
      %735 = vmatpush2.bf16.msra.mxu0 0
      %736 = vmatprep.subr.bf16.mxu0 0
      %737 = vmatpush2.bf16.msra.mxu0 0
      %738 = vmatprep.subr.bf16.mxu0 0
      %739 = vmatpush2.bf16.msra.mxu0 0
      %740 = vmatprep.subr.bf16.mxu0 0
      %741 = vmatpush2.bf16.msra.mxu0 0
      %742 = vmatprep.mubr.bf16.mxu0 0
      %743 = vmatmul.mubr.bf16.gmra.mxu0 %v644
      %v744 = vpop.f32.mrf.mxu0
      %v745 = vadd.f32 %v696, %v744
      %v746 = vpop.f32.mrf.mxu0
      %v747 = vpop.f32.mrf.mxu0
      %v748 = vpop.f32.mrf.mxu0
      %749 = vdwg.mxu0
      %v750 = vpack.c.bf16 %v745, %v745
      %v751 = vld [vmem:[#allocation2] sm:$0xf]
      %v752 = vld [vmem:[%s505] sm:$0x1]
      %vm753 = vcmp.ne.s32.totalorder %v752, 0
      %v754 = vlaneseq
      %v755 = vshrl.u32 %v754, 7
      %s756 = smul.u32 %s30, 8
      %v757 = vstv %s756
      %v758 = vadd.s32 %v755, %v757
      %v759 = vlaneseq
      %v760 = vand.u32 %v759, 127
      %s761 = smul.u32 %s31, 8
      %v762 = vstv %s761
      %v763 = vadd.s32 %v760, %v762
      %vm764 = vcmp.gt.s32.totalorder %v763, %v758
      %vm765 = vcmp.lt.s32.totalorder %v763, 8
      %vm766 = vmand %vm764, %vm765
      %vm767 = vcmask 64512
      %v769 = vsel %vm767, %v751, 0
      %v772 = vsel %vm767, %v686, 0
      %774 = vmatprep.subr.bf16.mxu0 0
      %775 = vmatpush1.bf16.xpose.msra.mxu0 0
      %776 = vmatprep.subr.bf16.mxu0 0
      %777 = vmatpush1.bf16.xpose.msra.mxu0 0
      %778 = vmatprep.subr.bf16.mxu0 0
      %779 = vmatpush1.bf16.xpose.msra.mxu0 0
      %780 = vmatprep.subr.bf16.mxu0 0
      %781 = vmatpush1.bf16.xpose.msra.mxu0 0
      %782 = vmatprep.subr.bf16.mxu0 0
      %783 = vmatpush1.bf16.xpose.msra.mxu0 0
      %784 = vmatprep.subr.bf16.mxu0 0
      %785 = vmatpush1.bf16.xpose.msra.mxu0 0
      %786 = vmatprep.subr.bf16.mxu0 0
      %787 = vmatpush1.bf16.xpose.msra.mxu0 0
      %788 = vmatprep.subr.bf16.mxu0 0
      %789 = vmatpush1.bf16.xpose.msra.mxu0 %v772
      %790 = vmatprep.subr.bf16.mxu0 0
      %791 = vmatpush2.bf16.xpose.msra.mxu0 0
      %792 = vmatprep.subr.bf16.mxu0 0
      %793 = vmatpush2.bf16.xpose.msra.mxu0 0
      %794 = vmatprep.subr.bf16.mxu0 0
      %795 = vmatpush2.bf16.xpose.msra.mxu0 0
      %796 = vmatprep.subr.bf16.mxu0 0
      %797 = vmatpush2.bf16.xpose.msra.mxu0 0
      %798 = vmatprep.subr.bf16.mxu0 0
      %799 = vmatpush2.bf16.xpose.msra.mxu0 0
      %800 = vmatprep.subr.bf16.mxu0 0
      %801 = vmatpush2.bf16.xpose.msra.mxu0 0
      %802 = vmatprep.subr.bf16.mxu0 0
      %803 = vmatpush2.bf16.xpose.msra.mxu0 0
      %804 = vmatprep.subr.bf16.mxu0 0
      %805 = vmatpush2.bf16.xpose.msra.mxu0 0
      %806 = vmatprep.mubr.bf16.mxu0 0
      %807 = vmatmul.mubr.bf16.gmra.mxu0 %v769
      %v808 = vpop.f32.mrf.mxu0
      %v809 = vadd.f32 0.0, %v808
      %v810 = vpop.f32.mrf.mxu0
      %v811 = vpop.f32.mrf.mxu0
      %v812 = vpop.f32.mrf.mxu0
      %813 = vdwg.mxu0
      %v814 = vsel %vm766, -inf, %v809
      %v815 = vsel %vm753, 1, 0
      %v816 = vlaneseq
      %v817 = vshrl.u32 %v816, 7
      %v818 = vsub.s32 0, %v817
      %v819 = vrot.slane %v815, %v818
      %vm820 = vcmp.eq.s32.totalorder %v819, 1
      %v821 = vsel %vm820, -1e+09, %v814
      %v822 = vld [vmem:[#allocation3] sm:$0xff]
      %v823 = vsel %vm767, %v821, -inf
      %824 = vmax.xlane.f32.xlu0 %v823
      %v825 = vpop.xlane.xlu0 %824
      %v826 = vmax.f32 %v822, %v825
      %v827 = vsub.f32 %v822, %v826
      %v828 = vmul.f32 %v827, 1.442695
      %v829 = vpow.pop %v828
      %831 = vset.pattern.permute.xlu0 0
      %832 = vperm.xlu0 %831, %v826
      %v833 = vpop.permute.xlu0 %832
      %v835 = vsub.f32 %v821, %v833
      %v836 = vmul.f32 %v835, 1.442695
      %v837 = vpow.pop %v836
      %v838 = vld [vmem:[#allocation4] sm:$0xff]
      %v839 = vmul.f32 %v829, %v838
      %v840 = vsel %vm767, %v837, 0.0
      %841 = vadd.xlane.f32.xlu0 %v840
      %v842 = vpop.xlane.xlu0 %841
      %v843 = vadd.f32 %v839, %v842
      %vm844 = vcmask 7168
      %845 = vst.msk [vmem:[#allocation4] sm:$0xff] %vm844, %v843
      %v846 = vld [vmem:[#allocation5] sm:$0xff]
      %848 = vset.pattern.permute.xlu0 0
      %849 = vperm.xlu0 %848, %v829
      %v850 = vpop.permute.xlu0 %849
      %v852 = vmul.f32 %v850, %v846
      %v853 = vpack.c.bf16 %v837, %v837
      %v855 = vsel %vm767, %v853, 0
      %vm857 = vcmask 1043456
      %v859 = vsel %vm857, %v750, 0
      %861 = vmatprep.subr.bf16.mxu0 0
      %862 = vmatpush1.bf16.msra.mxu0 0
      %863 = vmatprep.subr.bf16.mxu0 0
      %864 = vmatpush1.bf16.msra.mxu0 0
      %865 = vmatprep.subr.bf16.mxu0 0
      %866 = vmatpush1.bf16.msra.mxu0 0
      %867 = vmatprep.subr.bf16.mxu0 0
      %868 = vmatpush1.bf16.msra.mxu0 0
      %869 = vmatprep.subr.bf16.mxu0 0
      %870 = vmatpush1.bf16.msra.mxu0 0
      %871 = vmatprep.subr.bf16.mxu0 0
      %872 = vmatpush1.bf16.msra.mxu0 0
      %873 = vmatprep.subr.bf16.mxu0 0
      %874 = vmatpush1.bf16.msra.mxu0 0
      %875 = vmatprep.subr.bf16.mxu0 0
      %876 = vmatpush1.bf16.msra.mxu0 %v859
      %877 = vmatprep.subr.bf16.mxu0 0
      %878 = vmatpush2.bf16.msra.mxu0 0
      %879 = vmatprep.subr.bf16.mxu0 0
      %880 = vmatpush2.bf16.msra.mxu0 0
      %881 = vmatprep.subr.bf16.mxu0 0
      %882 = vmatpush2.bf16.msra.mxu0 0
      %883 = vmatprep.subr.bf16.mxu0 0
      %884 = vmatpush2.bf16.msra.mxu0 0
      %885 = vmatprep.subr.bf16.mxu0 0
      %886 = vmatpush2.bf16.msra.mxu0 0
      %887 = vmatprep.subr.bf16.mxu0 0
      %888 = vmatpush2.bf16.msra.mxu0 0
      %889 = vmatprep.subr.bf16.mxu0 0
      %890 = vmatpush2.bf16.msra.mxu0 0
      %891 = vmatprep.subr.bf16.mxu0 0
      %892 = vmatpush2.bf16.msra.mxu0 0
      %893 = vmatprep.mubr.bf16.mxu0 0
      %894 = vmatmul.mubr.bf16.gmra.mxu0 %v855
      %v895 = vpop.f32.mrf.mxu0
      %v896 = vadd.f32 0.0, %v895
      %v897 = vpop.f32.mrf.mxu0
      %v898 = vpop.f32.mrf.mxu0
      %v899 = vpop.f32.mrf.mxu0
      %900 = vdwg.mxu0
      %v901 = vadd.f32 %v852, %v896
      %902 = vst.msk [vmem:[#allocation5] sm:$0xff] %vm767, %v901
      %903 = vst.msk [vmem:[#allocation3] sm:$0xff] %vm844, %v826
      %v905 = vunpack.c.l.b16 %v751
      %v906 = vpack.c.b16 %v905, %v905
      %907 = vrot.lane.b32.xlu0 %v906, 120
      %v908 = vpop.permute.xlu0 %907
      %910 = vrot.lane.b32.xlu0 %v686, 120
      %v911 = vpop.permute.xlu0 %910
      %v913 = vsel %vm767, %v908, 0
      %v916 = vsel %vm767, %v911, 0
      %918 = vmatprep.subr.bf16.mxu0 0
      %919 = vmatpush1.bf16.xpose.msra.mxu0 0
      %920 = vmatprep.subr.bf16.mxu0 0
      %921 = vmatpush1.bf16.xpose.msra.mxu0 0
      %922 = vmatprep.subr.bf16.mxu0 0
      %923 = vmatpush1.bf16.xpose.msra.mxu0 0
      %924 = vmatprep.subr.bf16.mxu0 0
      %925 = vmatpush1.bf16.xpose.msra.mxu0 0
      %926 = vmatprep.subr.bf16.mxu0 0
      %927 = vmatpush1.bf16.xpose.msra.mxu0 0
      %928 = vmatprep.subr.bf16.mxu0 0
      %929 = vmatpush1.bf16.xpose.msra.mxu0 0
      %930 = vmatprep.subr.bf16.mxu0 0
      %931 = vmatpush1.bf16.xpose.msra.mxu0 0
      %932 = vmatprep.subr.bf16.mxu0 0
      %933 = vmatpush1.bf16.xpose.msra.mxu0 %v916
      %934 = vmatprep.subr.bf16.mxu0 0
      %935 = vmatpush2.bf16.xpose.msra.mxu0 0
      %936 = vmatprep.subr.bf16.mxu0 0
      %937 = vmatpush2.bf16.xpose.msra.mxu0 0
      %938 = vmatprep.subr.bf16.mxu0 0
      %939 = vmatpush2.bf16.xpose.msra.mxu0 0
      %940 = vmatprep.subr.bf16.mxu0 0
      %941 = vmatpush2.bf16.xpose.msra.mxu0 0
      %942 = vmatprep.subr.bf16.mxu0 0
      %943 = vmatpush2.bf16.xpose.msra.mxu0 0
      %944 = vmatprep.subr.bf16.mxu0 0
      %945 = vmatpush2.bf16.xpose.msra.mxu0 0
      %946 = vmatprep.subr.bf16.mxu0 0
      %947 = vmatpush2.bf16.xpose.msra.mxu0 0
      %948 = vmatprep.subr.bf16.mxu0 0
      %949 = vmatpush2.bf16.xpose.msra.mxu0 0
      %950 = vmatprep.mubr.bf16.mxu0 0
      %951 = vmatmul.mubr.bf16.gmra.mxu0 %v913
      %v952 = vpop.f32.mrf.mxu0
      %v953 = vadd.f32 0.0, %v952
      %v954 = vpop.f32.mrf.mxu0
      %v955 = vpop.f32.mrf.mxu0
      %v956 = vpop.f32.mrf.mxu0
      %957 = vdwg.mxu0
      %v958 = vsel %vm766, -inf, %v953
      %v959 = vsel %vm820, -1e+09, %v958
      %s960 = scalar_lea.vmem [#allocation3], 8
      %v961 = vld [vmem:[%s960] sm:$0xff]
      %v962 = vsel %vm767, %v959, -inf
      %963 = vmax.xlane.f32.xlu0 %v962
      %v964 = vpop.xlane.xlu0 %963
      %v965 = vmax.f32 %v961, %v964
      %v966 = vsub.f32 %v961, %v965
      %v967 = vmul.f32 %v966, 1.442695
      %v968 = vpow.pop %v967
      %970 = vset.pattern.permute.xlu0 0
      %971 = vperm.xlu0 %970, %v965
      %v972 = vpop.permute.xlu0 %971
      %v974 = vsub.f32 %v959, %v972
      %v975 = vmul.f32 %v974, 1.442695
      %v976 = vpow.pop %v975
      %s977 = scalar_lea.vmem [#allocation4], 8
      %v978 = vld [vmem:[%s977] sm:$0xff]
      %v979 = vmul.f32 %v968, %v978
      %v980 = vsel %vm767, %v976, 0.0
      %981 = vadd.xlane.f32.xlu0 %v980
      %v982 = vpop.xlane.xlu0 %981
      %v983 = vadd.f32 %v979, %v982
      %984 = vst.msk [vmem:[%s977] sm:$0xff] %vm844, %v983
      %s985 = scalar_lea.vmem [#allocation5], 8
      %v986 = vld [vmem:[%s985] sm:$0xff]
      %988 = vset.pattern.permute.xlu0 0
      %989 = vperm.xlu0 %988, %v968
      %v990 = vpop.permute.xlu0 %989
      %v992 = vmul.f32 %v990, %v986
      %v993 = vpack.c.bf16 %v976, %v976
      %995 = vrot.lane.b32.xlu0 %v750, 120
      %v996 = vpop.permute.xlu0 %995
      %v998 = vsel %vm767, %v993, 0
      %v1001 = vsel %vm857, %v996, 0
      %1003 = vmatprep.subr.bf16.mxu0 0
      %1004 = vmatpush1.bf16.msra.mxu0 0
      %1005 = vmatprep.subr.bf16.mxu0 0
      %1006 = vmatpush1.bf16.msra.mxu0 0
      %1007 = vmatprep.subr.bf16.mxu0 0
      %1008 = vmatpush1.bf16.msra.mxu0 0
      %1009 = vmatprep.subr.bf16.mxu0 0
      %1010 = vmatpush1.bf16.msra.mxu0 0
      %1011 = vmatprep.subr.bf16.mxu0 0
      %1012 = vmatpush1.bf16.msra.mxu0 0
      %1013 = vmatprep.subr.bf16.mxu0 0
      %1014 = vmatpush1.bf16.msra.mxu0 0
      %1015 = vmatprep.subr.bf16.mxu0 0
      %1016 = vmatpush1.bf16.msra.mxu0 0
      %1017 = vmatprep.subr.bf16.mxu0 0
      %1018 = vmatpush1.bf16.msra.mxu0 %v1001
      %1019 = vmatprep.subr.bf16.mxu0 0
      %1020 = vmatpush2.bf16.msra.mxu0 0
      %1021 = vmatprep.subr.bf16.mxu0 0
      %1022 = vmatpush2.bf16.msra.mxu0 0
      %1023 = vmatprep.subr.bf16.mxu0 0
      %1024 = vmatpush2.bf16.msra.mxu0 0
      %1025 = vmatprep.subr.bf16.mxu0 0
      %1026 = vmatpush2.bf16.msra.mxu0 0
      %1027 = vmatprep.subr.bf16.mxu0 0
      %1028 = vmatpush2.bf16.msra.mxu0 0
      %1029 = vmatprep.subr.bf16.mxu0 0
      %1030 = vmatpush2.bf16.msra.mxu0 0
      %1031 = vmatprep.subr.bf16.mxu0 0
      %1032 = vmatpush2.bf16.msra.mxu0 0
      %1033 = vmatprep.subr.bf16.mxu0 0
      %1034 = vmatpush2.bf16.msra.mxu0 0
      %1035 = vmatprep.mubr.bf16.mxu0 0
      %1036 = vmatmul.mubr.bf16.gmra.mxu0 %v998
      %v1037 = vpop.f32.mrf.mxu0
      %v1038 = vadd.f32 0.0, %v1037
      %v1039 = vpop.f32.mrf.mxu0
      %v1040 = vpop.f32.mrf.mxu0
      %v1041 = vpop.f32.mrf.mxu0
      %1042 = vdwg.mxu0
      %v1043 = vadd.f32 %v992, %v1038
      %1044 = vst.msk [vmem:[%s985] sm:$0xff] %vm767, %v1043
      %1045 = vst.msk [vmem:[%s960] sm:$0xff] %vm844, %v965
      %1046 = vrot.lane.b32.xlu0 %v906, 112
      %v1047 = vpop.permute.xlu0 %1046
      %1048 = vrot.lane.b32.xlu0 %v686, 112
      %v1049 = vpop.permute.xlu0 %1048
      %v1051 = vsel %vm767, %v1047, 0
      %v1054 = vsel %vm767, %v1049, 0
      %1056 = vmatprep.subr.bf16.mxu0 0
      %1057 = vmatpush1.bf16.xpose.msra.mxu0 0
      %1058 = vmatprep.subr.bf16.mxu0 0
      %1059 = vmatpush1.bf16.xpose.msra.mxu0 0
      %1060 = vmatprep.subr.bf16.mxu0 0
      %1061 = vmatpush1.bf16.xpose.msra.mxu0 0
      %1062 = vmatprep.subr.bf16.mxu0 0
      %1063 = vmatpush1.bf16.xpose.msra.mxu0 0
      %1064 = vmatprep.subr.bf16.mxu0 0
      %1065 = vmatpush1.bf16.xpose.msra.mxu0 0
      %1066 = vmatprep.subr.bf16.mxu0 0
      %1067 = vmatpush1.bf16.xpose.msra.mxu0 0
      %1068 = vmatprep.subr.bf16.mxu0 0
      %1069 = vmatpush1.bf16.xpose.msra.mxu0 0
      %1070 = vmatprep.subr.bf16.mxu0 0
      %1071 = vmatpush1.bf16.xpose.msra.mxu0 %v1054
      %1072 = vmatprep.subr.bf16.mxu0 0
      %1073 = vmatpush2.bf16.xpose.msra.mxu0 0
      %1074 = vmatprep.subr.bf16.mxu0 0
      %1075 = vmatpush2.bf16.xpose.msra.mxu0 0
      %1076 = vmatprep.subr.bf16.mxu0 0
      %1077 = vmatpush2.bf16.xpose.msra.mxu0 0
      %1078 = vmatprep.subr.bf16.mxu0 0
      %1079 = vmatpush2.bf16.xpose.msra.mxu0 0
      %1080 = vmatprep.subr.bf16.mxu0 0
      %1081 = vmatpush2.bf16.xpose.msra.mxu0 0
      %1082 = vmatprep.subr.bf16.mxu0 0
      %1083 = vmatpush2.bf16.xpose.msra.mxu0 0
      %1084 = vmatprep.subr.bf16.mxu0 0
      %1085 = vmatpush2.bf16.xpose.msra.mxu0 0
      %1086 = vmatprep.subr.bf16.mxu0 0
      %1087 = vmatpush2.bf16.xpose.msra.mxu0 0
      %1088 = vmatprep.mubr.bf16.mxu0 0
      %1089 = vmatmul.mubr.bf16.gmra.mxu0 %v1051
      %v1090 = vpop.f32.mrf.mxu0
      %v1091 = vadd.f32 0.0, %v1090
      %v1092 = vpop.f32.mrf.mxu0
      %v1093 = vpop.f32.mrf.mxu0
      %v1094 = vpop.f32.mrf.mxu0
      %1095 = vdwg.mxu0
      %v1096 = vsel %vm766, -inf, %v1091
      %v1097 = vsel %vm820, -1e+09, %v1096
      %s1098 = scalar_lea.vmem [#allocation3], 16
      %v1099 = vld [vmem:[%s1098] sm:$0xff]
      %v1100 = vsel %vm767, %v1097, -inf
      %1101 = vmax.xlane.f32.xlu0 %v1100
      %v1102 = vpop.xlane.xlu0 %1101
      %v1103 = vmax.f32 %v1099, %v1102
      %v1104 = vsub.f32 %v1099, %v1103
      %v1105 = vmul.f32 %v1104, 1.442695
      %v1106 = vpow.pop %v1105
      %1108 = vset.pattern.permute.xlu0 0
      %1109 = vperm.xlu0 %1108, %v1103
      %v1110 = vpop.permute.xlu0 %1109
      %v1112 = vsub.f32 %v1097, %v1110
      %v1113 = vmul.f32 %v1112, 1.442695
      %v1114 = vpow.pop %v1113
      %s1115 = scalar_lea.vmem [#allocation4], 16
      %v1116 = vld [vmem:[%s1115] sm:$0xff]
      %v1117 = vmul.f32 %v1106, %v1116
      %v1118 = vsel %vm767, %v1114, 0.0
      %1119 = vadd.xlane.f32.xlu0 %v1118
      %v1120 = vpop.xlane.xlu0 %1119
      %v1121 = vadd.f32 %v1117, %v1120
      %1122 = vst.msk [vmem:[%s1115] sm:$0xff] %vm844, %v1121
      %s1123 = scalar_lea.vmem [#allocation5], 16
      %v1124 = vld [vmem:[%s1123] sm:$0xff]
      %1126 = vset.pattern.permute.xlu0 0
      %1127 = vperm.xlu0 %1126, %v1106
      %v1128 = vpop.permute.xlu0 %1127
      %v1130 = vmul.f32 %v1128, %v1124
      %v1131 = vpack.c.bf16 %v1114, %v1114
      %1132 = vrot.lane.b32.xlu0 %v750, 112
      %v1133 = vpop.permute.xlu0 %1132
      %v1135 = vsel %vm767, %v1131, 0
      %v1138 = vsel %vm857, %v1133, 0
      %1140 = vmatprep.subr.bf16.mxu0 0
      %1141 = vmatpush1.bf16.msra.mxu0 0
      %1142 = vmatprep.subr.bf16.mxu0 0
      %1143 = vmatpush1.bf16.msra.mxu0 0
      %1144 = vmatprep.subr.bf16.mxu0 0
      %1145 = vmatpush1.bf16.msra.mxu0 0
      %1146 = vmatprep.subr.bf16.mxu0 0
      %1147 = vmatpush1.bf16.msra.mxu0 0
      %1148 = vmatprep.subr.bf16.mxu0 0
      %1149 = vmatpush1.bf16.msra.mxu0 0
      %1150 = vmatprep.subr.bf16.mxu0 0
      %1151 = vmatpush1.bf16.msra.mxu0 0
      %1152 = vmatprep.subr.bf16.mxu0 0
      %1153 = vmatpush1.bf16.msra.mxu0 0
      %1154 = vmatprep.subr.bf16.mxu0 0
      %1155 = vmatpush1.bf16.msra.mxu0 %v1138
      %1156 = vmatprep.subr.bf16.mxu0 0
      %1157 = vmatpush2.bf16.msra.mxu0 0
      %1158 = vmatprep.subr.bf16.mxu0 0
      %1159 = vmatpush2.bf16.msra.mxu0 0
      %1160 = vmatprep.subr.bf16.mxu0 0
      %1161 = vmatpush2.bf16.msra.mxu0 0
      %1162 = vmatprep.subr.bf16.mxu0 0
      %1163 = vmatpush2.bf16.msra.mxu0 0
      %1164 = vmatprep.subr.bf16.mxu0 0
      %1165 = vmatpush2.bf16.msra.mxu0 0
      %1166 = vmatprep.subr.bf16.mxu0 0
      %1167 = vmatpush2.bf16.msra.mxu0 0
      %1168 = vmatprep.subr.bf16.mxu0 0
      %1169 = vmatpush2.bf16.msra.mxu0 0
      %1170 = vmatprep.subr.bf16.mxu0 0
      %1171 = vmatpush2.bf16.msra.mxu0 0
      %1172 = vmatprep.mubr.bf16.mxu0 0
      %1173 = vmatmul.mubr.bf16.gmra.mxu0 %v1135
      %v1174 = vpop.f32.mrf.mxu0
      %v1175 = vadd.f32 0.0, %v1174
      %v1176 = vpop.f32.mrf.mxu0
      %v1177 = vpop.f32.mrf.mxu0
      %v1178 = vpop.f32.mrf.mxu0
      %1179 = vdwg.mxu0
      %v1180 = vadd.f32 %v1130, %v1175
      %1181 = vst.msk [vmem:[%s1123] sm:$0xff] %vm767, %v1180
      %1182 = vst.msk [vmem:[%s1098] sm:$0xff] %vm844, %v1103
      %1183 = vrot.lane.b32.xlu0 %v906, 104
      %v1184 = vpop.permute.xlu0 %1183
      %1185 = vrot.lane.b32.xlu0 %v686, 104
      %v1186 = vpop.permute.xlu0 %1185
      %v1188 = vsel %vm767, %v1184, 0
      %v1191 = vsel %vm767, %v1186, 0
      %1193 = vmatprep.subr.bf16.mxu0 0
      %1194 = vmatpush1.bf16.xpose.msra.mxu0 0
      %1195 = vmatprep.subr.bf16.mxu0 0
      %1196 = vmatpush1.bf16.xpose.msra.mxu0 0
      %1197 = vmatprep.subr.bf16.mxu0 0
      %1198 = vmatpush1.bf16.xpose.msra.mxu0 0
      %1199 = vmatprep.subr.bf16.mxu0 0
      %1200 = vmatpush1.bf16.xpose.msra.mxu0 0
      %1201 = vmatprep.subr.bf16.mxu0 0
      %1202 = vmatpush1.bf16.xpose.msra.mxu0 0
      %1203 = vmatprep.subr.bf16.mxu0 0
      %1204 = vmatpush1.bf16.xpose.msra.mxu0 0
      %1205 = vmatprep.subr.bf16.mxu0 0
      %1206 = vmatpush1.bf16.xpose.msra.mxu0 0
      %1207 = vmatprep.subr.bf16.mxu0 0
      %1208 = vmatpush1.bf16.xpose.msra.mxu0 %v1191
      %1209 = vmatprep.subr.bf16.mxu0 0
      %1210 = vmatpush2.bf16.xpose.msra.mxu0 0
      %1211 = vmatprep.subr.bf16.mxu0 0
      %1212 = vmatpush2.bf16.xpose.msra.mxu0 0
      %1213 = vmatprep.subr.bf16.mxu0 0
      %1214 = vmatpush2.bf16.xpose.msra.mxu0 0
      %1215 = vmatprep.subr.bf16.mxu0 0
      %1216 = vmatpush2.bf16.xpose.msra.mxu0 0
      %1217 = vmatprep.subr.bf16.mxu0 0
      %1218 = vmatpush2.bf16.xpose.msra.mxu0 0
      %1219 = vmatprep.subr.bf16.mxu0 0
      %1220 = vmatpush2.bf16.xpose.msra.mxu0 0
      %1221 = vmatprep.subr.bf16.mxu0 0
      %1222 = vmatpush2.bf16.xpose.msra.mxu0 0
      %1223 = vmatprep.subr.bf16.mxu0 0
      %1224 = vmatpush2.bf16.xpose.msra.mxu0 0
      %1225 = vmatprep.mubr.bf16.mxu0 0
      %1226 = vmatmul.mubr.bf16.gmra.mxu0 %v1188
      %v1227 = vpop.f32.mrf.mxu0
      %v1228 = vadd.f32 0.0, %v1227
      %v1229 = vpop.f32.mrf.mxu0
      %v1230 = vpop.f32.mrf.mxu0
      %v1231 = vpop.f32.mrf.mxu0
      %1232 = vdwg.mxu0
      %v1233 = vsel %vm766, -inf, %v1228
      %v1234 = vsel %vm820, -1e+09, %v1233
      %s1235 = scalar_lea.vmem [#allocation3], 24
      %v1236 = vld [vmem:[%s1235] sm:$0xff]
      %v1237 = vsel %vm767, %v1234, -inf
      %1238 = vmax.xlane.f32.xlu0 %v1237
      %v1239 = vpop.xlane.xlu0 %1238
      %v1240 = vmax.f32 %v1236, %v1239
      %v1241 = vsub.f32 %v1236, %v1240
      %v1242 = vmul.f32 %v1241, 1.442695
      %v1243 = vpow.pop %v1242
      %1245 = vset.pattern.permute.xlu0 0
      %1246 = vperm.xlu0 %1245, %v1240
      %v1247 = vpop.permute.xlu0 %1246
      %v1249 = vsub.f32 %v1234, %v1247
      %v1250 = vmul.f32 %v1249, 1.442695
      %v1251 = vpow.pop %v1250
      %s1252 = scalar_lea.vmem [#allocation4], 24
      %v1253 = vld [vmem:[%s1252] sm:$0xff]
      %v1254 = vmul.f32 %v1243, %v1253
      %v1255 = vsel %vm767, %v1251, 0.0
      %1256 = vadd.xlane.f32.xlu0 %v1255
      %v1257 = vpop.xlane.xlu0 %1256
      %v1258 = vadd.f32 %v1254, %v1257
      %1259 = vst.msk [vmem:[%s1252] sm:$0xff] %vm844, %v1258
      %s1260 = scalar_lea.vmem [#allocation5], 24
      %v1261 = vld [vmem:[%s1260] sm:$0xff]
      %1263 = vset.pattern.permute.xlu0 0
      %1264 = vperm.xlu0 %1263, %v1243
      %v1265 = vpop.permute.xlu0 %1264
      %v1267 = vmul.f32 %v1265, %v1261
      %v1268 = vpack.c.bf16 %v1251, %v1251
      %1269 = vrot.lane.b32.xlu0 %v750, 104
      %v1270 = vpop.permute.xlu0 %1269
      %v1272 = vsel %vm767, %v1268, 0
      %v1275 = vsel %vm857, %v1270, 0
      %1277 = vmatprep.subr.bf16.mxu0 0
      %1278 = vmatpush1.bf16.msra.mxu0 0
      %1279 = vmatprep.subr.bf16.mxu0 0
      %1280 = vmatpush1.bf16.msra.mxu0 0
      %1281 = vmatprep.subr.bf16.mxu0 0
      %1282 = vmatpush1.bf16.msra.mxu0 0
      %1283 = vmatprep.subr.bf16.mxu0 0
      %1284 = vmatpush1.bf16.msra.mxu0 0
      %1285 = vmatprep.subr.bf16.mxu0 0
      %1286 = vmatpush1.bf16.msra.mxu0 0
      %1287 = vmatprep.subr.bf16.mxu0 0
      %1288 = vmatpush1.bf16.msra.mxu0 0
      %1289 = vmatprep.subr.bf16.mxu0 0
      %1290 = vmatpush1.bf16.msra.mxu0 0
      %1291 = vmatprep.subr.bf16.mxu0 0
      %1292 = vmatpush1.bf16.msra.mxu0 %v1275
      %1293 = vmatprep.subr.bf16.mxu0 0
      %1294 = vmatpush2.bf16.msra.mxu0 0
      %1295 = vmatprep.subr.bf16.mxu0 0
      %1296 = vmatpush2.bf16.msra.mxu0 0
      %1297 = vmatprep.subr.bf16.mxu0 0
      %1298 = vmatpush2.bf16.msra.mxu0 0
      %1299 = vmatprep.subr.bf16.mxu0 0
      %1300 = vmatpush2.bf16.msra.mxu0 0
      %1301 = vmatprep.subr.bf16.mxu0 0
      %1302 = vmatpush2.bf16.msra.mxu0 0
      %1303 = vmatprep.subr.bf16.mxu0 0
      %1304 = vmatpush2.bf16.msra.mxu0 0
      %1305 = vmatprep.subr.bf16.mxu0 0
      %1306 = vmatpush2.bf16.msra.mxu0 0
      %1307 = vmatprep.subr.bf16.mxu0 0
      %1308 = vmatpush2.bf16.msra.mxu0 0
      %1309 = vmatprep.mubr.bf16.mxu0 0
      %1310 = vmatmul.mubr.bf16.gmra.mxu0 %v1272
      %v1311 = vpop.f32.mrf.mxu0
      %v1312 = vadd.f32 0.0, %v1311
      %v1313 = vpop.f32.mrf.mxu0
      %v1314 = vpop.f32.mrf.mxu0
      %v1315 = vpop.f32.mrf.mxu0
      %1316 = vdwg.mxu0
      %v1317 = vadd.f32 %v1267, %v1312
      %1318 = vst.msk [vmem:[%s1260] sm:$0xff] %vm767, %v1317
      %1319 = vst.msk [vmem:[%s1235] sm:$0xff] %vm844, %v1240
      // Predicated region
      $region77: #{transformer_forward.15} parent=71 // pred_check
        %p1320 = pneg %p528
      $region78: #{transformer_forward.15} parent=71 // pred_check_branch
        %1322 = sbr.rel (%p1320) target = $region80
      $region79: #{transformer_forward.15} parent=71 // pred_region
        %v1323 = vld [vmem:[#allocation5] sm:$0xff]
        %v1324 = vld [vmem:[#allocation4] sm:$0xff]
        %v1325 = vrcp.pop %v1324
        %1327 = vset.pattern.permute.xlu0 0
        %1328 = vperm.xlu0 %1327, %v1325
        %v1329 = vpop.permute.xlu0 %1328
        %v1331 = vmul.f32 %v1323, %v1329
        %v1332 = vld [vmem:[%s985] sm:$0xff]
        %v1333 = vld [vmem:[%s977] sm:$0xff]
        %v1334 = vrcp.pop %v1333
        %1336 = vset.pattern.permute.xlu0 0
        %1337 = vperm.xlu0 %1336, %v1334
        %v1338 = vpop.permute.xlu0 %1337
        %v1340 = vmul.f32 %v1332, %v1338
        %v1341 = vld [vmem:[%s1123] sm:$0xff]
        %v1342 = vld [vmem:[%s1115] sm:$0xff]
        %v1343 = vrcp.pop %v1342
        %1345 = vset.pattern.permute.xlu0 0
        %1346 = vperm.xlu0 %1345, %v1343
        %v1347 = vpop.permute.xlu0 %1346
        %v1349 = vmul.f32 %v1341, %v1347
        %v1350 = vld [vmem:[%s1260] sm:$0xff]
        %v1351 = vld [vmem:[%s1252] sm:$0xff]
        %v1352 = vrcp.pop %v1351
        %1354 = vset.pattern.permute.xlu0 0
        %1355 = vperm.xlu0 %1354, %v1352
        %v1356 = vpop.permute.xlu0 %1355
        %v1358 = vmul.f32 %v1350, %v1356
        %1360 = vrot.lane.b32.xlu0 %v1340, 8
        %v1361 = vpop.permute.xlu0 %1360
        %1364 = vrot.lane.b32.xlu0 %v1349, 16
        %v1365 = vpop.permute.xlu0 %1364
        %1368 = vrot.lane.b32.xlu0 %v1358, 24
        %v1369 = vpop.permute.xlu0 %1368
        %v1371 = vsel %vm767, %v1331, %v1361
        %vm1372 = vcmask 130048
        %v1373 = vsel %vm1372, %v1371, %v1365
        %vm1374 = vcmask 195584
        %v1375 = vsel %vm1374, %v1373, %v1369
        %v1376 = vpack.c.bf16 %v1375, %v1375
        %v1377 = vld [vmem:[%s9] sm:$0xf]
        %v1378 = vld [vmem:[%s9 + $0x4] sm:$0xf]
        %v1379 = vld [vmem:[%s9 + $0x8] sm:$0xf]
        %v1380 = vld [vmem:[%s9 + $0xc] sm:$0xf]
        %v1381 = vld [vmem:[%s10] sm:$0x1]
        %v1383 = vlaneseq
        %v1384 = vshrl.u32 %v1383, 7
        %v1385 = vsub.s32 0, %v1384
        %v1386 = vrot.slane %v1381, %v1385
        %v1392 = vunpack.c.l.b16 %v1377
        %v1393 = vunpack.c.l.b16 %v1378
        %v1394 = vunpack.c.l.b16 %v1379
        %v1395 = vunpack.c.l.b16 %v1380
        %v1396 = vpack.c.b16 %v1393, %v1392
        %v1397 = vpack.c.b16 %v1395, %v1394
        %v1401 = vsel %vm642, %v1376, 0
        %1403 = vmatprep.subr.bf16.mxu0 0
        %1404 = vmatpush1.bf16.msra.mxu0 0
        %1405 = vmatprep.subr.bf16.mxu0 0
        %1406 = vmatpush1.bf16.msra.mxu0 0
        %1407 = vmatprep.subr.bf16.mxu0 0
        %1408 = vmatpush1.bf16.msra.mxu0 0
        %1409 = vmatprep.subr.bf16.mxu0 0
        %1410 = vmatpush1.bf16.msra.mxu0 0
        %1411 = vmatprep.subr.bf16.mxu0 0
        %1412 = vmatpush1.bf16.msra.mxu0 0
        %1413 = vmatprep.subr.bf16.mxu0 0
        %1414 = vmatpush1.bf16.msra.mxu0 0
        %1415 = vmatprep.subr.bf16.mxu0 0
        %1416 = vmatpush1.bf16.msra.mxu0 %v1397
        %1417 = vmatprep.subr.bf16.mxu0 0
        %1418 = vmatpush1.bf16.msra.mxu0 %v1396
        %1419 = vmatprep.subr.bf16.mxu0 0
        %1420 = vmatpush2.bf16.msra.mxu0 0
        %1421 = vmatprep.subr.bf16.mxu0 0
        %1422 = vmatpush2.bf16.msra.mxu0 0
        %1423 = vmatprep.subr.bf16.mxu0 0
        %1424 = vmatpush2.bf16.msra.mxu0 0
        %1425 = vmatprep.subr.bf16.mxu0 0
        %1426 = vmatpush2.bf16.msra.mxu0 0
        %1427 = vmatprep.subr.bf16.mxu0 0
        %1428 = vmatpush2.bf16.msra.mxu0 0
        %1429 = vmatprep.subr.bf16.mxu0 0
        %1430 = vmatpush2.bf16.msra.mxu0 0
        %1431 = vmatprep.subr.bf16.mxu0 0
        %1432 = vmatpush2.bf16.msra.mxu0 0
        %1433 = vmatprep.subr.bf16.mxu0 0
        %1434 = vmatpush2.bf16.msra.mxu0 0
        %1435 = vmatprep.mubr.bf16.mxu0 0
        %1436 = vmatmul.mubr.bf16.gmra.mxu0 %v1401
        %v1437 = vpop.f32.mrf.mxu0
        %v1438 = vadd.f32 %v1386, %v1437
        %v1439 = vpop.f32.mrf.mxu0
        %v1440 = vpop.f32.mrf.mxu0
        %v1441 = vpop.f32.mrf.mxu0
        %1442 = vdwg.mxu0
        %v1443 = vld [vmem:[%s512] sm:$0xf]
        %v1444 = vunpack.c.l.bf16 %v1443
        %v1445 = vadd.f32 %v1444, %v1438
        %v1446 = vsel %vm642, %v1445, 0.0
        %1447 = vadd.xlane.f32.xlu0 %v1446
        %v1448 = vpop.xlane.xlu0 %1447
        %v1449 = vrcp.pop 32.0
        %v1450 = vmul.f32 %v1448, %v1449
        %v1451 = vsub.f32 %v1445, %v1450
        %v1452 = vmul.f32 %v1451, %v1451
        %v1453 = vsel %vm642, %v1452, 0.0
        %1454 = vadd.xlane.f32.xlu0 %v1453
        %v1455 = vpop.xlane.xlu0 %1454
        %v1456 = vmul.f32 %v1455, %v1449
        %v1457 = vadd.f32 %v1456, 1e-05
        %v1458 = vrsqrt.pop %v1457
        %v1459 = vmul.f32 %v1451, %v1458
        %v1460 = vld [vmem:[%s11] sm:$0x1]
        %v1462 = vlaneseq
        %v1463 = vshrl.u32 %v1462, 7
        %v1464 = vsub.s32 0, %v1463
        %v1465 = vrot.slane %v1460, %v1464
        %v1467 = vmul.f32 %v1459, %v1465
        %v1468 = vld [vmem:[%s12] sm:$0x1]
        %v1470 = vlaneseq
        %v1471 = vshrl.u32 %v1470, 7
        %v1472 = vsub.s32 0, %v1471
        %v1473 = vrot.slane %v1468, %v1472
        %v1475 = vadd.f32 %v1467, %v1473
        %v1476 = vpack.c.bf16 %v1475, %v1475
        %vm1477 = vcmask 257024
        %1478 = vst.msk [vmem:[%s526] sm:$0xf] %vm1477, %v1476
      $region80: #{transformer_forward.15} parent=71 // pred_fallthru
        _
      %p1479 = scmp.lt.s32.totalorder %s29, 1
      %s1480 = scalar_select %p1479, %s29, 1
      %p1481 = scmp.lt.s32.totalorder %s30, 0
      %s1482 = scalar_select %p1481, %s30, 0
      %s1483 = sadd.s32 %s1482, %s1480
      %s1484 = smul.addr %s1483, 4
      %s1485 = scalar_lea.vmem %s13, %s1484
      // Predicated region
      $region81: #{transformer_forward.15} parent=71 // pred_check
        %p1486 = pneg %p357
      $region82: #{transformer_forward.15} parent=71 // pred_check_branch
        %1488 = sbr.rel (%p1486) target = $region84
      $region83: #{transformer_forward.15} parent=71 // pred_region
        _
      $region84: #{transformer_forward.15} parent=71 // pred_fallthru
        _
    $region72: #{transformer_forward.15} parent=5 // pred_fallthru
      _
    %p1489 = scmp.le.s32.totalorder 2, %s19
    // Predicated region
    $region85: #{transformer_forward.15} parent=5 // pred_check
      %p1490 = pneg %p1489
    $region86: #{transformer_forward.15} parent=5 // pred_check_branch
      %1492 = sbr.rel (%p1490) target = $region88
    $region87: #{transformer_forward.15} parent=5 // pred_region
      %s1493 = ssub.s32 %s19, 2
      // Predicated region
      $region89: #{transformer_forward.15} parent=87 // pred_check
        %p1494 = pneg %p363
      $region90: #{transformer_forward.15} parent=87 // pred_check_branch
        %1496 = sbr.rel (%p1494) target = $region92
      $region91: #{transformer_forward.15} parent=87 // pred_region
        %p1497 = scmp.lt.s32.totalorder %s32, 1
        %s1498 = scalar_select %p1497, %s32, 1
        %p1499 = scmp.lt.s32.totalorder %s33, 0
        %s1500 = scalar_select %p1499, %s33, 0
        %s1501 = sadd.s32 %s1500, %s1498
        %s1502 = smul.addr %s1501, 4
        %s1503 = scalar_lea.vmem %s13, %s1502
      $region92: #{transformer_forward.15} parent=87 // pred_fallthru
        _
    $region88: #{transformer_forward.15} parent=5 // pred_fallthru
      _
  $region6: #{transformer_forward.15} parent=0 // loop_footer
    %s23 = sadd.s32 1, %s19
  $region7: #{transformer_forward.15} parent=0 // loop_footer_branch
    %18 = sbr.rel target = $region3
  $region8: #{transformer_forward.15} parent=0 // loop_exit
    _

</llo_original>
